<compile_context>
chip_gen: v5e
topology: v5e:2x2
jax: 0.10.0
libtpu: 0.0.40
codegen_flags: <defaults>
</compile_context>

<pallas_src>
import jax
import jax.numpy as jnp
from jax import lax
from jax.experimental import pallas as pl
from jax.experimental.pallas import tpu as pltpu

VOCAB = 65          # vocab_size (len of sorted char set; synthetic choice)
VPAD = 128          # lane-dense padded lm_head width
EMB = 64            # embedding_dim
BLOCK = 8           # block_size (max sequence length T)
N_HEAD = 4
N_LAYER = 4
HEAD = EMB // N_HEAD
EPS = 1e-5          # PyTorch nn.LayerNorm default eps
NEG = -1e30         # large finite negative for additive mask


def _layernorm(x, gamma, beta):
    mu = jnp.mean(x, axis=-1, keepdims=True)
    var = jnp.mean((x - mu) ** 2, axis=-1, keepdims=True)
    return (x - mu) * lax.rsqrt(var + EPS) * gamma + beta


def _to_head_major(t):
    # (BT, N_HEAD*HEAD) -> (N_HEAD*BT, HEAD); head h occupies rows [h*BT,(h+1)*BT)
    return jnp.concatenate(
        [t[:, h * HEAD:(h + 1) * HEAD] for h in range(N_HEAD)], axis=0)


def _from_head_major(t, bt):
    # (N_HEAD*BT, HEAD) -> (BT, N_HEAD*HEAD)
    return jnp.concatenate(
        [t[h * bt:(h + 1) * bt, :] for h in range(N_HEAD)], axis=1)


def model_kernel(x_ref,      # (B*T, D) f32      embedded, flattened input
                 mask_ref,   # (NH*BT, NH*BT) f32  additive same-head/causal mask
                 wqkv_ref,   # (L, D, 3D) bf16   fused [wq|wk|wv]
                 wp_ref,     # (L, D, D)  bf16   attention output projection
                 vecs_ref,   # (L, 6, D)  f32    [bp, g1, be1, g2, be2, b2]
                 w1_ref,     # (L, D, 4D) bf16
                 b1_ref,     # (L, 1, 4D) f32
                 w2_ref,     # (L, 4D, D) bf16
                 wlm_ref,    # (D, VPAD)  bf16   zero-padded lm_head weight
                 blm_ref,    # (1, VPAD)  f32    zero-padded lm_head bias
                 o_ref):     # (B*T, VPAD) f32   padded logits
    bt = x_ref.shape[0]
    x = x_ref[...]                         # residual stream stays f32
    add_mask = mask_ref[...]
    scale = EMB ** -0.5                    # C**-0.5, exactly as in the reference
    bf16 = jnp.bfloat16

    for l in range(N_LAYER):               # static unroll over 4 layers
        vl = vecs_ref[l]                   # (6, D) f32
        bp, g1, be1 = vl[0:1], vl[1:2], vl[2:3]
        g2, be2, b2 = vl[3:4], vl[4:5], vl[5:6]

        # --- multi-head causal self-attention (2 MXU calls for all heads) ---
        xn = _layernorm(x, g1, be1)
        qkv = jnp.dot(xn.astype(bf16), wqkv_ref[l],
                      preferred_element_type=jnp.float32)        # (BT, 3D)
        q_hm = _to_head_major(qkv[:, 0 * EMB:1 * EMB]).astype(bf16)  # (NH*BT, HEAD)
        k_hm = _to_head_major(qkv[:, 1 * EMB:2 * EMB]).astype(bf16)
        v_hm = _to_head_major(qkv[:, 2 * EMB:3 * EMB]).astype(bf16)

        s = lax.dot_general(q_hm, k_hm, (((1,), (1,)), ((), ())),
                            preferred_element_type=jnp.float32) * scale
        s = s + add_mask                   # same-head + same-batch + causal
        m = jnp.max(s, axis=-1, keepdims=True)
        e = jnp.exp(s - m)                 # masked entries underflow to 0
        p = e * pl.reciprocal(jnp.sum(e, axis=-1, keepdims=True), approx=True)
        o_hm = jnp.dot(p.astype(bf16), v_hm,
                       preferred_element_type=jnp.float32)       # (NH*BT, HEAD)
        sa = _from_head_major(o_hm, bt)                          # (BT, D) f32
        sa = jnp.dot(sa.astype(bf16), wp_ref[l],
                     preferred_element_type=jnp.float32) + bp
        x = x + sa

        # --- feed-forward ---
        xn2 = _layernorm(x, g2, be2)
        h1 = jnp.maximum(
            jnp.dot(xn2.astype(bf16), w1_ref[l],
                    preferred_element_type=jnp.float32) + b1_ref[l], 0.0)
        ff = jnp.dot(h1.astype(bf16), w2_ref[l],
                     preferred_element_type=jnp.float32) + b2
        x = x + ff

    # lm_head (no ln_f — matches reference forward); lane-dense 128-wide store.
    o_ref[...] = (jnp.dot(x.astype(bf16), wlm_ref[...],
                          preferred_element_type=jnp.float32) + blm_ref[...])


def pack_params(p):
    """Fuse QKV, stack per-layer vectors, cast MXU weights to bf16, pad lm_head."""
    bf16 = jnp.bfloat16
    wqkv = jnp.concatenate([p['wq'], p['wk'], p['wv']], axis=-1).astype(bf16)  # (L,D,3D)
    wp = p['wp'].astype(bf16)                                                  # (L,D,D)
    vecs = jnp.stack([p['bp'], p['g1'], p['be1'],
                      p['g2'], p['be2'], p['b2']], axis=1).astype(jnp.float32)  # (L,6,D)
    w1 = p['w1'].astype(bf16)                                                  # (L,D,4D)
    b1 = p['b1'][:, None, :].astype(jnp.float32)                               # (L,1,4D)
    w2 = p['w2'].astype(bf16)                                                  # (L,4D,D)
    wlm_pad = jnp.zeros((EMB, VPAD), jnp.float32).at[:, :VOCAB].set(
        p['wlm']).astype(bf16)
    blm_pad = jnp.zeros((1, VPAD), jnp.float32).at[:, :VOCAB].set(p['blm'])
    return dict(tok_emb=p['tok_emb'], pos_emb=p['pos_emb'],
                wqkv=wqkv, wp=wp, vecs=vecs, w1=w1, b1=b1, w2=w2,
                wlm_pad=wlm_pad, blm_pad=blm_pad)


def _build_mask(B, T):
    """Additive mask over head-major flattened rows: same head, same batch
    element, causal -> 0, else -1e30.  Shape (N_HEAD*B*T, N_HEAD*B*T)."""
    bt = B * T
    n = N_HEAD * bt
    idx = jnp.arange(n, dtype=jnp.int32)
    h, r = idx // bt, idx % bt
    keep = ((h[:, None] == h[None, :]) &
            ((r[:, None] // T) == (r[None, :] // T)) &
            ((r[None, :] % T) <= (r[:, None] % T)))
    return jnp.where(keep, 0.0, NEG).astype(jnp.float32)


@jax.jit
def forward(tokens, packed):
    """Returns (logits, loss=None), like the PyTorch module with targets=None."""
    B, T = tokens.shape
    tok_emb = packed['tok_emb'][tokens]                   # (B, T, D) — gather glue
    pos_emb = packed['pos_emb'][:T]                       # (T, D)
    x = (tok_emb + pos_emb).astype(jnp.float32).reshape(B * T, EMB)
    add_mask = _build_mask(B, T)                          # hoisted out of kernel

    weights = (packed['wqkv'], packed['wp'], packed['vecs'], packed['w1'],
               packed['b1'], packed['w2'], packed['wlm_pad'], packed['blm_pad'])

    def full_spec(a):
        nd = a.ndim
        return pl.BlockSpec(a.shape, lambda i, _nd=nd: (0,) * _nd)

    out = pl.pallas_call(
        model_kernel,
        out_shape=jax.ShapeDtypeStruct((B * T, VPAD), jnp.float32),
        grid_spec=pltpu.PrefetchScalarGridSpec(
            num_scalar_prefetch=0,
            grid=(1,),                                    # whole batch, one step
            in_specs=[pl.BlockSpec((B * T, EMB), lambda i: (0, 0)),
                      pl.BlockSpec(add_mask.shape, lambda i: (0, 0))]
                     + [full_spec(w) for w in weights],
            out_specs=pl.BlockSpec((B * T, VPAD), lambda i: (0, 0)),
        ),
        compiler_params=pltpu.CompilerParams(dimension_semantics=("arbitrary",)),
    )(x, add_mask, *weights)

    logits = out.reshape(B, T, VPAD)[:, :, :VOCAB]        # drop lane padding
    return logits, None


# ---------------- pure-JAX f32 reference for validation ----------------
def ref_forward(tokens, p):
    B, T = tokens.shape
    x = p['tok_emb'][tokens] + p['pos_emb'][:T]
    causal = jnp.tril(jnp.ones((T, T), bool))
    scale = EMB ** -0.5
    for l in range(N_LAYER):
        xn = _layernorm(x, p['g1'][l], p['be1'][l])
        q = (xn @ p['wq'][l]).reshape(B, T, N_HEAD, HEAD)
        k = (xn @ p['wk'][l]).reshape(B, T, N_HEAD, HEAD)
        v = (xn @ p['wv'][l]).reshape(B, T, N_HEAD, HEAD)
        wei = jnp.einsum('bthd,bshd->bhts', q, k) * scale
        wei = jnp.where(causal, wei, -jnp.inf)
        wei = jax.nn.softmax(wei, axis=-1)
        o = jnp.einsum('bhts,bshd->bthd', wei, v).reshape(B, T, EMB)
        x = x + o @ p['wp'][l] + p['bp'][l]
        xn2 = _layernorm(x, p['g2'][l], p['be2'][l])
        x = x + jnp.maximum(xn2 @ p['w1'][l] + p['b1'][l], 0.0) @ p['w2'][l] + p['b2'][l]
    return x @ p['wlm'] + p['blm'][0]


def init_params(key):
    ks = jax.random.split(key, 16)
    L, D, H4, V = N_LAYER, EMB, 4 * EMB, VOCAB

    def n(k, shape, s=0.02):
        return jax.random.normal(k, shape, jnp.float32) * s

    return dict(
        tok_emb=n(ks[0], (V, D), 1.0),
        pos_emb=n(ks[1], (BLOCK, D), 1.0),
        wq=n(ks[2], (L, D, D)), wk=n(ks[3], (L, D, D)), wv=n(ks[4], (L, D, D)),
        wp=n(ks[5], (L, D, D)), bp=n(ks[6], (L, D)),
        g1=1.0 + n(ks[7], (L, D)), be1=n(ks[8], (L, D)),
        g2=1.0 + n(ks[9], (L, D)), be2=n(ks[10], (L, D)),
        w1=n(ks[11], (L, D, H4)), b1=n(ks[12], (L, H4)),
        w2=n(ks[13], (L, H4, D)), b2=n(ks[14], (L, D)),
        wlm=n(ks[15], (D, V)), blm=jnp.zeros((1, V), jnp.float32),
    )


if __name__ == "__main__":
    key = jax.random.PRNGKey(0)
    pkey, tkey = jax.random.split(key)
    params = init_params(pkey)
    packed = pack_params(params)

    B, T = 2, BLOCK
    tokens = jax.random.randint(tkey, (B, T), 0, VOCAB, dtype=jnp.int32)

    logits, loss = forward(tokens, packed)
    logits = jax.block_until_ready(logits)

    ref = ref_forward(tokens, params)
    assert logits.shape == (B, T, VOCAB)
    assert loss is None
    # bf16 MXU operands vs f32 reference -> loosened tolerance (per review).
    assert jnp.allclose(logits, ref, rtol=2e-2, atol=2e-2), "Pallas/JAX mismatch"
    print("KERNEL_OK")
</pallas_src>

<mosaic_0001>
module attributes {stable_mosaic.version = 11 : i64} {
  func.func @model_kernel(%arg0: i32, %arg1: memref<16x64xf32, #tpu.memory_space<vmem>>, %arg2: memref<64x64xf32, #tpu.memory_space<vmem>>, %arg3: memref<4x64x192xbf16, #tpu.memory_space<vmem>>, %arg4: memref<4x64x64xbf16, #tpu.memory_space<vmem>>, %arg5: memref<4x6x64xf32, #tpu.memory_space<vmem>>, %arg6: memref<4x64x256xbf16, #tpu.memory_space<vmem>>, %arg7: memref<4x1x256xf32, #tpu.memory_space<vmem>>, %arg8: memref<4x256x64xbf16, #tpu.memory_space<vmem>>, %arg9: memref<64x128xbf16, #tpu.memory_space<vmem>>, %arg10: memref<1x128xf32, #tpu.memory_space<vmem>>, %arg11: memref<16x128xf32, #tpu.memory_space<vmem>>) attributes {dimension_semantics = [#tpu.dimension_semantics<arbitrary>], iteration_bounds = array<i64: 1>, scalar_prefetch = 0 : i64, scratch_operands = 0 : i64, tpu.core_type = #tpu.core_type<tc>, window_params = [{pipeline_mode = #tpu.pipeline_mode<synchronous>, transform_indices = @transform_0, window_bounds = array<i64: 16, 64>}, {pipeline_mode = #tpu.pipeline_mode<synchronous>, transform_indices = @transform_1, window_bounds = array<i64: 64, 64>}, {pipeline_mode = #tpu.pipeline_mode<synchronous>, transform_indices = @transform_2, window_bounds = array<i64: 4, 64, 192>}, {pipeline_mode = #tpu.pipeline_mode<synchronous>, transform_indices = @transform_3, window_bounds = array<i64: 4, 64, 64>}, {pipeline_mode = #tpu.pipeline_mode<synchronous>, transform_indices = @transform_4, window_bounds = array<i64: 4, 6, 64>}, {pipeline_mode = #tpu.pipeline_mode<synchronous>, transform_indices = @transform_5, window_bounds = array<i64: 4, 64, 256>}, {pipeline_mode = #tpu.pipeline_mode<synchronous>, transform_indices = @transform_6, window_bounds = array<i64: 4, 1, 256>}, {pipeline_mode = #tpu.pipeline_mode<synchronous>, transform_indices = @transform_7, window_bounds = array<i64: 4, 256, 64>}, {pipeline_mode = #tpu.pipeline_mode<synchronous>, transform_indices = @transform_8, window_bounds = array<i64: 64, 128>}, {pipeline_mode = #tpu.pipeline_mode<synchronous>, transform_indices = @transform_9, window_bounds = array<i64: 1, 128>}, {pipeline_mode = #tpu.pipeline_mode<synchronous>, transform_indices = @transform_10, window_bounds = array<i64: 16, 128>}]} {
    %c0 = arith.constant 0 : index
    %c0_0 = arith.constant 0 : index
    %0 = vector.load %arg1[%c0, %c0_0] : memref<16x64xf32, #tpu.memory_space<vmem>>, vector<16x64xf32>
    %c0_1 = arith.constant 0 : index
    %c0_2 = arith.constant 0 : index
    %1 = vector.load %arg2[%c0_1, %c0_2] : memref<64x64xf32, #tpu.memory_space<vmem>>, vector<64x64xf32>
    %c0_3 = arith.constant 0 : index
    %c0_4 = arith.constant 0 : index
    %c0_5 = arith.constant 0 : index
    %2 = vector.load %arg5[%c0_3, %c0_4, %c0_5] : memref<4x6x64xf32, #tpu.memory_space<vmem>>, vector<1x6x64xf32>
    %3 = vector.shape_cast %2 : vector<1x6x64xf32> to vector<6x64xf32>
    %4 = vector.extract_strided_slice %3 {offsets = [0, 0], sizes = [1, 64], strides = [1, 1]} : vector<6x64xf32> to vector<1x64xf32>
    %5 = vector.extract_strided_slice %3 {offsets = [1, 0], sizes = [1, 64], strides = [1, 1]} : vector<6x64xf32> to vector<1x64xf32>
    %6 = vector.extract_strided_slice %3 {offsets = [2, 0], sizes = [1, 64], strides = [1, 1]} : vector<6x64xf32> to vector<1x64xf32>
    %7 = vector.extract_strided_slice %3 {offsets = [3, 0], sizes = [1, 64], strides = [1, 1]} : vector<6x64xf32> to vector<1x64xf32>
    %8 = vector.extract_strided_slice %3 {offsets = [4, 0], sizes = [1, 64], strides = [1, 1]} : vector<6x64xf32> to vector<1x64xf32>
    %9 = vector.extract_strided_slice %3 {offsets = [5, 0], sizes = [1, 64], strides = [1, 1]} : vector<6x64xf32> to vector<1x64xf32>
    %cst = arith.constant dense<0.000000e+00> : vector<16xf32>
    %10 = vector.multi_reduction <add>, %0, %cst [1] : vector<16x64xf32> to vector<16xf32>
    %11 = vector.shape_cast %10 : vector<16xf32> to vector<16x1xf32>
    %cst_6 = arith.constant 6.400000e+01 : f32
    %12 = vector.broadcast %cst_6 : f32 to vector<16x1xf32>
    %13 = arith.divf %11, %12 : vector<16x1xf32>
    %14 = vector.broadcast %13 : vector<16x1xf32> to vector<16x64xf32>
    %15 = arith.subf %0, %14 : vector<16x64xf32>
    %16 = arith.mulf %15, %15 : vector<16x64xf32>
    %cst_7 = arith.constant dense<0.000000e+00> : vector<16xf32>
    %17 = vector.multi_reduction <add>, %16, %cst_7 [1] : vector<16x64xf32> to vector<16xf32>
    %18 = vector.shape_cast %17 : vector<16xf32> to vector<16x1xf32>
    %cst_8 = arith.constant 6.400000e+01 : f32
    %19 = vector.broadcast %cst_8 : f32 to vector<16x1xf32>
    %20 = arith.divf %18, %19 : vector<16x1xf32>
    %21 = vector.broadcast %13 : vector<16x1xf32> to vector<16x64xf32>
    %22 = arith.subf %0, %21 : vector<16x64xf32>
    %cst_9 = arith.constant 9.99999974E-6 : f32
    %23 = vector.broadcast %cst_9 : f32 to vector<16x1xf32>
    %24 = arith.addf %20, %23 : vector<16x1xf32>
    %25 = math.rsqrt %24 : vector<16x1xf32>
    %26 = vector.broadcast %25 : vector<16x1xf32> to vector<16x64xf32>
    %27 = arith.mulf %22, %26 : vector<16x64xf32>
    %28 = vector.broadcast %5 : vector<1x64xf32> to vector<16x64xf32>
    %29 = arith.mulf %27, %28 : vector<16x64xf32>
    %30 = vector.broadcast %6 : vector<1x64xf32> to vector<16x64xf32>
    %31 = arith.addf %29, %30 : vector<16x64xf32>
    %32 = arith.truncf %31 : vector<16x64xf32> to vector<16x64xbf16>
    %c0_10 = arith.constant 0 : index
    %c0_11 = arith.constant 0 : index
    %c0_12 = arith.constant 0 : index
    %33 = vector.load %arg3[%c0_10, %c0_11, %c0_12] : memref<4x64x192xbf16, #tpu.memory_space<vmem>>, vector<1x64x192xbf16>
    %34 = vector.shape_cast %33 : vector<1x64x192xbf16> to vector<64x192xbf16>
    %cst_13 = arith.constant dense<0.000000e+00> : vector<16x192xf32>
    %35 = tpu.matmul %32, %34, %cst_13 {dimension_numbers = #tpu.dot_dimension_numbers<[1], [0], [0], [1], [0, 0, 1, 1], [], []>} : vector<16x64xbf16>, vector<64x192xbf16>, vector<16x192xf32> -> vector<16x192xf32>
    %36 = vector.extract_strided_slice %35 {offsets = [0, 0], sizes = [16, 64], strides = [1, 1]} : vector<16x192xf32> to vector<16x64xf32>
    %37 = vector.extract_strided_slice %36 {offsets = [0, 0], sizes = [16, 16], strides = [1, 1]} : vector<16x64xf32> to vector<16x16xf32>
    %38 = vector.extract_strided_slice %36 {offsets = [0, 16], sizes = [16, 16], strides = [1, 1]} : vector<16x64xf32> to vector<16x16xf32>
    %39 = vector.extract_strided_slice %36 {offsets = [0, 32], sizes = [16, 16], strides = [1, 1]} : vector<16x64xf32> to vector<16x16xf32>
    %40 = vector.extract_strided_slice %36 {offsets = [0, 48], sizes = [16, 16], strides = [1, 1]} : vector<16x64xf32> to vector<16x16xf32>
    %41 = tpu.concatenate %37, %38, %39, %40 in 0 : vector<16x16xf32>, vector<16x16xf32>, vector<16x16xf32>, vector<16x16xf32> -> vector<64x16xf32>
    %42 = arith.truncf %41 : vector<64x16xf32> to vector<64x16xbf16>
    %43 = vector.extract_strided_slice %35 {offsets = [0, 64], sizes = [16, 64], strides = [1, 1]} : vector<16x192xf32> to vector<16x64xf32>
    %44 = vector.extract_strided_slice %43 {offsets = [0, 0], sizes = [16, 16], strides = [1, 1]} : vector<16x64xf32> to vector<16x16xf32>
    %45 = vector.extract_strided_slice %43 {offsets = [0, 16], sizes = [16, 16], strides = [1, 1]} : vector<16x64xf32> to vector<16x16xf32>
    %46 = vector.extract_strided_slice %43 {offsets = [0, 32], sizes = [16, 16], strides = [1, 1]} : vector<16x64xf32> to vector<16x16xf32>
    %47 = vector.extract_strided_slice %43 {offsets = [0, 48], sizes = [16, 16], strides = [1, 1]} : vector<16x64xf32> to vector<16x16xf32>
    %48 = tpu.concatenate %44, %45, %46, %47 in 0 : vector<16x16xf32>, vector<16x16xf32>, vector<16x16xf32>, vector<16x16xf32> -> vector<64x16xf32>
    %49 = arith.truncf %48 : vector<64x16xf32> to vector<64x16xbf16>
    %50 = vector.extract_strided_slice %35 {offsets = [0, 128], sizes = [16, 64], strides = [1, 1]} : vector<16x192xf32> to vector<16x64xf32>
    %51 = vector.extract_strided_slice %50 {offsets = [0, 0], sizes = [16, 16], strides = [1, 1]} : vector<16x64xf32> to vector<16x16xf32>
    %52 = vector.extract_strided_slice %50 {offsets = [0, 16], sizes = [16, 16], strides = [1, 1]} : vector<16x64xf32> to vector<16x16xf32>
    %53 = vector.extract_strided_slice %50 {offsets = [0, 32], sizes = [16, 16], strides = [1, 1]} : vector<16x64xf32> to vector<16x16xf32>
    %54 = vector.extract_strided_slice %50 {offsets = [0, 48], sizes = [16, 16], strides = [1, 1]} : vector<16x64xf32> to vector<16x16xf32>
    %55 = tpu.concatenate %51, %52, %53, %54 in 0 : vector<16x16xf32>, vector<16x16xf32>, vector<16x16xf32>, vector<16x16xf32> -> vector<64x16xf32>
    %56 = arith.truncf %55 : vector<64x16xf32> to vector<64x16xbf16>
    %cst_14 = arith.constant dense<0.000000e+00> : vector<64x64xf32>
    %57 = tpu.matmul %42, %49, %cst_14 {dimension_numbers = #tpu.dot_dimension_numbers<[1], [1], [0], [0], [0, 0, 1, 0], [], []>} : vector<64x16xbf16>, vector<64x16xbf16>, vector<64x64xf32> -> vector<64x64xf32>
    %cst_15 = arith.constant 1.250000e-01 : f32
    %58 = vector.broadcast %cst_15 : f32 to vector<64x64xf32>
    %59 = arith.mulf %57, %58 : vector<64x64xf32>
    %60 = arith.addf %59, %1 : vector<64x64xf32>
    %cst_16 = arith.constant dense<0xFF800000> : vector<64xf32>
    %61 = vector.multi_reduction <maximumf>, %60, %cst_16 [1] : vector<64x64xf32> to vector<64xf32>
    %62 = vector.shape_cast %61 : vector<64xf32> to vector<64x1xf32>
    %63 = vector.broadcast %62 : vector<64x1xf32> to vector<64x64xf32>
    %64 = arith.subf %60, %63 : vector<64x64xf32>
    %65 = math.exp %64 : vector<64x64xf32>
    %cst_17 = arith.constant dense<0.000000e+00> : vector<64xf32>
    %66 = vector.multi_reduction <add>, %65, %cst_17 [1] : vector<64x64xf32> to vector<64xf32>
    %67 = vector.shape_cast %66 : vector<64xf32> to vector<64x1xf32>
    %68 = tpu.reciprocal %67 {approx = true} : vector<64x1xf32> -> vector<64x1xf32>
    %69 = vector.broadcast %68 : vector<64x1xf32> to vector<64x64xf32>
    %70 = arith.mulf %65, %69 : vector<64x64xf32>
    %71 = arith.truncf %70 : vector<64x64xf32> to vector<64x64xbf16>
    %cst_18 = arith.constant dense<0.000000e+00> : vector<64x16xf32>
    %72 = tpu.matmul %71, %56, %cst_18 {dimension_numbers = #tpu.dot_dimension_numbers<[1], [0], [0], [1], [0, 0, 1, 1], [], []>} : vector<64x64xbf16>, vector<64x16xbf16>, vector<64x16xf32> -> vector<64x16xf32>
    %73 = vector.extract_strided_slice %72 {offsets = [0, 0], sizes = [16, 16], strides = [1, 1]} : vector<64x16xf32> to vector<16x16xf32>
    %74 = vector.extract_strided_slice %72 {offsets = [16, 0], sizes = [16, 16], strides = [1, 1]} : vector<64x16xf32> to vector<16x16xf32>
    %75 = vector.extract_strided_slice %72 {offsets = [32, 0], sizes = [16, 16], strides = [1, 1]} : vector<64x16xf32> to vector<16x16xf32>
    %76 = vector.extract_strided_slice %72 {offsets = [48, 0], sizes = [16, 16], strides = [1, 1]} : vector<64x16xf32> to vector<16x16xf32>
    %77 = tpu.concatenate %73, %74, %75, %76 in 1 : vector<16x16xf32>, vector<16x16xf32>, vector<16x16xf32>, vector<16x16xf32> -> vector<16x64xf32>
    %78 = arith.truncf %77 : vector<16x64xf32> to vector<16x64xbf16>
    %c0_19 = arith.constant 0 : index
    %c0_20 = arith.constant 0 : index
    %c0_21 = arith.constant 0 : index
    %79 = vector.load %arg4[%c0_19, %c0_20, %c0_21] : memref<4x64x64xbf16, #tpu.memory_space<vmem>>, vector<1x64x64xbf16>
    %80 = vector.shape_cast %79 : vector<1x64x64xbf16> to vector<64x64xbf16>
    %cst_22 = arith.constant dense<0.000000e+00> : vector<16x64xf32>
    %81 = tpu.matmul %78, %80, %cst_22 {dimension_numbers = #tpu.dot_dimension_numbers<[1], [0], [0], [1], [0, 0, 1, 1], [], []>} : vector<16x64xbf16>, vector<64x64xbf16>, vector<16x64xf32> -> vector<16x64xf32>
    %82 = vector.broadcast %4 : vector<1x64xf32> to vector<16x64xf32>
    %83 = arith.addf %81, %82 : vector<16x64xf32>
    %84 = arith.addf %0, %83 : vector<16x64xf32>
    %cst_23 = arith.constant dense<0.000000e+00> : vector<16xf32>
    %85 = vector.multi_reduction <add>, %84, %cst_23 [1] : vector<16x64xf32> to vector<16xf32>
    %86 = vector.shape_cast %85 : vector<16xf32> to vector<16x1xf32>
    %cst_24 = arith.constant 6.400000e+01 : f32
    %87 = vector.broadcast %cst_24 : f32 to vector<16x1xf32>
    %88 = arith.divf %86, %87 : vector<16x1xf32>
    %89 = vector.broadcast %88 : vector<16x1xf32> to vector<16x64xf32>
    %90 = arith.subf %84, %89 : vector<16x64xf32>
    %91 = arith.mulf %90, %90 : vector<16x64xf32>
    %cst_25 = arith.constant dense<0.000000e+00> : vector<16xf32>
    %92 = vector.multi_reduction <add>, %91, %cst_25 [1] : vector<16x64xf32> to vector<16xf32>
    %93 = vector.shape_cast %92 : vector<16xf32> to vector<16x1xf32>
    %cst_26 = arith.constant 6.400000e+01 : f32
    %94 = vector.broadcast %cst_26 : f32 to vector<16x1xf32>
    %95 = arith.divf %93, %94 : vector<16x1xf32>
    %96 = vector.broadcast %88 : vector<16x1xf32> to vector<16x64xf32>
    %97 = arith.subf %84, %96 : vector<16x64xf32>
    %cst_27 = arith.constant 9.99999974E-6 : f32
    %98 = vector.broadcast %cst_27 : f32 to vector<16x1xf32>
    %99 = arith.addf %95, %98 : vector<16x1xf32>
    %100 = math.rsqrt %99 : vector<16x1xf32>
    %101 = vector.broadcast %100 : vector<16x1xf32> to vector<16x64xf32>
    %102 = arith.mulf %97, %101 : vector<16x64xf32>
    %103 = vector.broadcast %7 : vector<1x64xf32> to vector<16x64xf32>
    %104 = arith.mulf %102, %103 : vector<16x64xf32>
    %105 = vector.broadcast %8 : vector<1x64xf32> to vector<16x64xf32>
    %106 = arith.addf %104, %105 : vector<16x64xf32>
    %107 = arith.truncf %106 : vector<16x64xf32> to vector<16x64xbf16>
    %c0_28 = arith.constant 0 : index
    %c0_29 = arith.constant 0 : index
    %c0_30 = arith.constant 0 : index
    %108 = vector.load %arg6[%c0_28, %c0_29, %c0_30] : memref<4x64x256xbf16, #tpu.memory_space<vmem>>, vector<1x64x256xbf16>
    %109 = vector.shape_cast %108 : vector<1x64x256xbf16> to vector<64x256xbf16>
    %cst_31 = arith.constant dense<0.000000e+00> : vector<16x256xf32>
    %110 = tpu.matmul %107, %109, %cst_31 {dimension_numbers = #tpu.dot_dimension_numbers<[1], [0], [0], [1], [0, 0, 1, 1], [], []>} : vector<16x64xbf16>, vector<64x256xbf16>, vector<16x256xf32> -> vector<16x256xf32>
    %c0_32 = arith.constant 0 : index
    %c0_33 = arith.constant 0 : index
    %c0_34 = arith.constant 0 : index
    %111 = vector.load %arg7[%c0_32, %c0_33, %c0_34] : memref<4x1x256xf32, #tpu.memory_space<vmem>>, vector<1x1x256xf32>
    %112 = vector.shape_cast %111 : vector<1x1x256xf32> to vector<1x256xf32>
    %113 = vector.broadcast %112 : vector<1x256xf32> to vector<16x256xf32>
    %114 = arith.addf %110, %113 : vector<16x256xf32>
    %cst_35 = arith.constant 0.000000e+00 : f32
    %115 = vector.broadcast %cst_35 : f32 to vector<16x256xf32>
    %116 = arith.maximumf %114, %115 : vector<16x256xf32>
    %117 = arith.truncf %116 : vector<16x256xf32> to vector<16x256xbf16>
    %c0_36 = arith.constant 0 : index
    %c0_37 = arith.constant 0 : index
    %c0_38 = arith.constant 0 : index
    %118 = vector.load %arg8[%c0_36, %c0_37, %c0_38] : memref<4x256x64xbf16, #tpu.memory_space<vmem>>, vector<1x256x64xbf16>
    %119 = vector.shape_cast %118 : vector<1x256x64xbf16> to vector<256x64xbf16>
    %cst_39 = arith.constant dense<0.000000e+00> : vector<16x64xf32>
    %120 = tpu.matmul %117, %119, %cst_39 {dimension_numbers = #tpu.dot_dimension_numbers<[1], [0], [0], [1], [0, 0, 1, 1], [], []>} : vector<16x256xbf16>, vector<256x64xbf16>, vector<16x64xf32> -> vector<16x64xf32>
    %121 = vector.broadcast %9 : vector<1x64xf32> to vector<16x64xf32>
    %122 = arith.addf %120, %121 : vector<16x64xf32>
    %123 = arith.addf %84, %122 : vector<16x64xf32>
    %c1 = arith.constant 1 : index
    %c0_40 = arith.constant 0 : index
    %c0_41 = arith.constant 0 : index
    %124 = vector.load %arg5[%c1, %c0_40, %c0_41] : memref<4x6x64xf32, #tpu.memory_space<vmem>>, vector<1x6x64xf32>
    %125 = vector.shape_cast %124 : vector<1x6x64xf32> to vector<6x64xf32>
    %126 = vector.extract_strided_slice %125 {offsets = [0, 0], sizes = [1, 64], strides = [1, 1]} : vector<6x64xf32> to vector<1x64xf32>
    %127 = vector.extract_strided_slice %125 {offsets = [1, 0], sizes = [1, 64], strides = [1, 1]} : vector<6x64xf32> to vector<1x64xf32>
    %128 = vector.extract_strided_slice %125 {offsets = [2, 0], sizes = [1, 64], strides = [1, 1]} : vector<6x64xf32> to vector<1x64xf32>
    %129 = vector.extract_strided_slice %125 {offsets = [3, 0], sizes = [1, 64], strides = [1, 1]} : vector<6x64xf32> to vector<1x64xf32>
    %130 = vector.extract_strided_slice %125 {offsets = [4, 0], sizes = [1, 64], strides = [1, 1]} : vector<6x64xf32> to vector<1x64xf32>
    %131 = vector.extract_strided_slice %125 {offsets = [5, 0], sizes = [1, 64], strides = [1, 1]} : vector<6x64xf32> to vector<1x64xf32>
    %cst_42 = arith.constant dense<0.000000e+00> : vector<16xf32>
    %132 = vector.multi_reduction <add>, %123, %cst_42 [1] : vector<16x64xf32> to vector<16xf32>
    %133 = vector.shape_cast %132 : vector<16xf32> to vector<16x1xf32>
    %cst_43 = arith.constant 6.400000e+01 : f32
    %134 = vector.broadcast %cst_43 : f32 to vector<16x1xf32>
    %135 = arith.divf %133, %134 : vector<16x1xf32>
    %136 = vector.broadcast %135 : vector<16x1xf32> to vector<16x64xf32>
    %137 = arith.subf %123, %136 : vector<16x64xf32>
    %138 = arith.mulf %137, %137 : vector<16x64xf32>
    %cst_44 = arith.constant dense<0.000000e+00> : vector<16xf32>
    %139 = vector.multi_reduction <add>, %138, %cst_44 [1] : vector<16x64xf32> to vector<16xf32>
    %140 = vector.shape_cast %139 : vector<16xf32> to vector<16x1xf32>
    %cst_45 = arith.constant 6.400000e+01 : f32
    %141 = vector.broadcast %cst_45 : f32 to vector<16x1xf32>
    %142 = arith.divf %140, %141 : vector<16x1xf32>
    %143 = vector.broadcast %135 : vector<16x1xf32> to vector<16x64xf32>
    %144 = arith.subf %123, %143 : vector<16x64xf32>
    %cst_46 = arith.constant 9.99999974E-6 : f32
    %145 = vector.broadcast %cst_46 : f32 to vector<16x1xf32>
    %146 = arith.addf %142, %145 : vector<16x1xf32>
    %147 = math.rsqrt %146 : vector<16x1xf32>
    %148 = vector.broadcast %147 : vector<16x1xf32> to vector<16x64xf32>
    %149 = arith.mulf %144, %148 : vector<16x64xf32>
    %150 = vector.broadcast %127 : vector<1x64xf32> to vector<16x64xf32>
    %151 = arith.mulf %149, %150 : vector<16x64xf32>
    %152 = vector.broadcast %128 : vector<1x64xf32> to vector<16x64xf32>
    %153 = arith.addf %151, %152 : vector<16x64xf32>
    %154 = arith.truncf %153 : vector<16x64xf32> to vector<16x64xbf16>
    %c1_47 = arith.constant 1 : index
    %c0_48 = arith.constant 0 : index
    %c0_49 = arith.constant 0 : index
    %155 = vector.load %arg3[%c1_47, %c0_48, %c0_49] : memref<4x64x192xbf16, #tpu.memory_space<vmem>>, vector<1x64x192xbf16>
    %156 = vector.shape_cast %155 : vector<1x64x192xbf16> to vector<64x192xbf16>
    %cst_50 = arith.constant dense<0.000000e+00> : vector<16x192xf32>
    %157 = tpu.matmul %154, %156, %cst_50 {dimension_numbers = #tpu.dot_dimension_numbers<[1], [0], [0], [1], [0, 0, 1, 1], [], []>} : vector<16x64xbf16>, vector<64x192xbf16>, vector<16x192xf32> -> vector<16x192xf32>
    %158 = vector.extract_strided_slice %157 {offsets = [0, 0], sizes = [16, 64], strides = [1, 1]} : vector<16x192xf32> to vector<16x64xf32>
    %159 = vector.extract_strided_slice %158 {offsets = [0, 0], sizes = [16, 16], strides = [1, 1]} : vector<16x64xf32> to vector<16x16xf32>
    %160 = vector.extract_strided_slice %158 {offsets = [0, 16], sizes = [16, 16], strides = [1, 1]} : vector<16x64xf32> to vector<16x16xf32>
    %161 = vector.extract_strided_slice %158 {offsets = [0, 32], sizes = [16, 16], strides = [1, 1]} : vector<16x64xf32> to vector<16x16xf32>
    %162 = vector.extract_strided_slice %158 {offsets = [0, 48], sizes = [16, 16], strides = [1, 1]} : vector<16x64xf32> to vector<16x16xf32>
    %163 = tpu.concatenate %159, %160, %161, %162 in 0 : vector<16x16xf32>, vector<16x16xf32>, vector<16x16xf32>, vector<16x16xf32> -> vector<64x16xf32>
    %164 = arith.truncf %163 : vector<64x16xf32> to vector<64x16xbf16>
    %165 = vector.extract_strided_slice %157 {offsets = [0, 64], sizes = [16, 64], strides = [1, 1]} : vector<16x192xf32> to vector<16x64xf32>
    %166 = vector.extract_strided_slice %165 {offsets = [0, 0], sizes = [16, 16], strides = [1, 1]} : vector<16x64xf32> to vector<16x16xf32>
    %167 = vector.extract_strided_slice %165 {offsets = [0, 16], sizes = [16, 16], strides = [1, 1]} : vector<16x64xf32> to vector<16x16xf32>
    %168 = vector.extract_strided_slice %165 {offsets = [0, 32], sizes = [16, 16], strides = [1, 1]} : vector<16x64xf32> to vector<16x16xf32>
    %169 = vector.extract_strided_slice %165 {offsets = [0, 48], sizes = [16, 16], strides = [1, 1]} : vector<16x64xf32> to vector<16x16xf32>
    %170 = tpu.concatenate %166, %167, %168, %169 in 0 : vector<16x16xf32>, vector<16x16xf32>, vector<16x16xf32>, vector<16x16xf32> -> vector<64x16xf32>
    %171 = arith.truncf %170 : vector<64x16xf32> to vector<64x16xbf16>
    %172 = vector.extract_strided_slice %157 {offsets = [0, 128], sizes = [16, 64], strides = [1, 1]} : vector<16x192xf32> to vector<16x64xf32>
    %173 = vector.extract_strided_slice %172 {offsets = [0, 0], sizes = [16, 16], strides = [1, 1]} : vector<16x64xf32> to vector<16x16xf32>
    %174 = vector.extract_strided_slice %172 {offsets = [0, 16], sizes = [16, 16], strides = [1, 1]} : vector<16x64xf32> to vector<16x16xf32>
    %175 = vector.extract_strided_slice %172 {offsets = [0, 32], sizes = [16, 16], strides = [1, 1]} : vector<16x64xf32> to vector<16x16xf32>
    %176 = vector.extract_strided_slice %172 {offsets = [0, 48], sizes = [16, 16], strides = [1, 1]} : vector<16x64xf32> to vector<16x16xf32>
    %177 = tpu.concatenate %173, %174, %175, %176 in 0 : vector<16x16xf32>, vector<16x16xf32>, vector<16x16xf32>, vector<16x16xf32> -> vector<64x16xf32>
    %178 = arith.truncf %177 : vector<64x16xf32> to vector<64x16xbf16>
    %cst_51 = arith.constant dense<0.000000e+00> : vector<64x64xf32>
    %179 = tpu.matmul %164, %171, %cst_51 {dimension_numbers = #tpu.dot_dimension_numbers<[1], [1], [0], [0], [0, 0, 1, 0], [], []>} : vector<64x16xbf16>, vector<64x16xbf16>, vector<64x64xf32> -> vector<64x64xf32>
    %cst_52 = arith.constant 1.250000e-01 : f32
    %180 = vector.broadcast %cst_52 : f32 to vector<64x64xf32>
    %181 = arith.mulf %179, %180 : vector<64x64xf32>
    %182 = arith.addf %181, %1 : vector<64x64xf32>
    %cst_53 = arith.constant dense<0xFF800000> : vector<64xf32>
    %183 = vector.multi_reduction <maximumf>, %182, %cst_53 [1] : vector<64x64xf32> to vector<64xf32>
    %184 = vector.shape_cast %183 : vector<64xf32> to vector<64x1xf32>
    %185 = vector.broadcast %184 : vector<64x1xf32> to vector<64x64xf32>
    %186 = arith.subf %182, %185 : vector<64x64xf32>
    %187 = math.exp %186 : vector<64x64xf32>
    %cst_54 = arith.constant dense<0.000000e+00> : vector<64xf32>
    %188 = vector.multi_reduction <add>, %187, %cst_54 [1] : vector<64x64xf32> to vector<64xf32>
    %189 = vector.shape_cast %188 : vector<64xf32> to vector<64x1xf32>
    %190 = tpu.reciprocal %189 {approx = true} : vector<64x1xf32> -> vector<64x1xf32>
    %191 = vector.broadcast %190 : vector<64x1xf32> to vector<64x64xf32>
    %192 = arith.mulf %187, %191 : vector<64x64xf32>
    %193 = arith.truncf %192 : vector<64x64xf32> to vector<64x64xbf16>
    %cst_55 = arith.constant dense<0.000000e+00> : vector<64x16xf32>
    %194 = tpu.matmul %193, %178, %cst_55 {dimension_numbers = #tpu.dot_dimension_numbers<[1], [0], [0], [1], [0, 0, 1, 1], [], []>} : vector<64x64xbf16>, vector<64x16xbf16>, vector<64x16xf32> -> vector<64x16xf32>
    %195 = vector.extract_strided_slice %194 {offsets = [0, 0], sizes = [16, 16], strides = [1, 1]} : vector<64x16xf32> to vector<16x16xf32>
    %196 = vector.extract_strided_slice %194 {offsets = [16, 0], sizes = [16, 16], strides = [1, 1]} : vector<64x16xf32> to vector<16x16xf32>
    %197 = vector.extract_strided_slice %194 {offsets = [32, 0], sizes = [16, 16], strides = [1, 1]} : vector<64x16xf32> to vector<16x16xf32>
    %198 = vector.extract_strided_slice %194 {offsets = [48, 0], sizes = [16, 16], strides = [1, 1]} : vector<64x16xf32> to vector<16x16xf32>
    %199 = tpu.concatenate %195, %196, %197, %198 in 1 : vector<16x16xf32>, vector<16x16xf32>, vector<16x16xf32>, vector<16x16xf32> -> vector<16x64xf32>
    %200 = arith.truncf %199 : vector<16x64xf32> to vector<16x64xbf16>
    %c1_56 = arith.constant 1 : index
    %c0_57 = arith.constant 0 : index
    %c0_58 = arith.constant 0 : index
    %201 = vector.load %arg4[%c1_56, %c0_57, %c0_58] : memref<4x64x64xbf16, #tpu.memory_space<vmem>>, vector<1x64x64xbf16>
    %202 = vector.shape_cast %201 : vector<1x64x64xbf16> to vector<64x64xbf16>
    %cst_59 = arith.constant dense<0.000000e+00> : vector<16x64xf32>
    %203 = tpu.matmul %200, %202, %cst_59 {dimension_numbers = #tpu.dot_dimension_numbers<[1], [0], [0], [1], [0, 0, 1, 1], [], []>} : vector<16x64xbf16>, vector<64x64xbf16>, vector<16x64xf32> -> vector<16x64xf32>
    %204 = vector.broadcast %126 : vector<1x64xf32> to vector<16x64xf32>
    %205 = arith.addf %203, %204 : vector<16x64xf32>
    %206 = arith.addf %123, %205 : vector<16x64xf32>
    %cst_60 = arith.constant dense<0.000000e+00> : vector<16xf32>
    %207 = vector.multi_reduction <add>, %206, %cst_60 [1] : vector<16x64xf32> to vector<16xf32>
    %208 = vector.shape_cast %207 : vector<16xf32> to vector<16x1xf32>
    %cst_61 = arith.constant 6.400000e+01 : f32
    %209 = vector.broadcast %cst_61 : f32 to vector<16x1xf32>
    %210 = arith.divf %208, %209 : vector<16x1xf32>
    %211 = vector.broadcast %210 : vector<16x1xf32> to vector<16x64xf32>
    %212 = arith.subf %206, %211 : vector<16x64xf32>
    %213 = arith.mulf %212, %212 : vector<16x64xf32>
    %cst_62 = arith.constant dense<0.000000e+00> : vector<16xf32>
    %214 = vector.multi_reduction <add>, %213, %cst_62 [1] : vector<16x64xf32> to vector<16xf32>
    %215 = vector.shape_cast %214 : vector<16xf32> to vector<16x1xf32>
    %cst_63 = arith.constant 6.400000e+01 : f32
    %216 = vector.broadcast %cst_63 : f32 to vector<16x1xf32>
    %217 = arith.divf %215, %216 : vector<16x1xf32>
    %218 = vector.broadcast %210 : vector<16x1xf32> to vector<16x64xf32>
    %219 = arith.subf %206, %218 : vector<16x64xf32>
    %cst_64 = arith.constant 9.99999974E-6 : f32
    %220 = vector.broadcast %cst_64 : f32 to vector<16x1xf32>
    %221 = arith.addf %217, %220 : vector<16x1xf32>
    %222 = math.rsqrt %221 : vector<16x1xf32>
    %223 = vector.broadcast %222 : vector<16x1xf32> to vector<16x64xf32>
    %224 = arith.mulf %219, %223 : vector<16x64xf32>
    %225 = vector.broadcast %129 : vector<1x64xf32> to vector<16x64xf32>
    %226 = arith.mulf %224, %225 : vector<16x64xf32>
    %227 = vector.broadcast %130 : vector<1x64xf32> to vector<16x64xf32>
    %228 = arith.addf %226, %227 : vector<16x64xf32>
    %229 = arith.truncf %228 : vector<16x64xf32> to vector<16x64xbf16>
    %c1_65 = arith.constant 1 : index
    %c0_66 = arith.constant 0 : index
    %c0_67 = arith.constant 0 : index
    %230 = vector.load %arg6[%c1_65, %c0_66, %c0_67] : memref<4x64x256xbf16, #tpu.memory_space<vmem>>, vector<1x64x256xbf16>
    %231 = vector.shape_cast %230 : vector<1x64x256xbf16> to vector<64x256xbf16>
    %cst_68 = arith.constant dense<0.000000e+00> : vector<16x256xf32>
    %232 = tpu.matmul %229, %231, %cst_68 {dimension_numbers = #tpu.dot_dimension_numbers<[1], [0], [0], [1], [0, 0, 1, 1], [], []>} : vector<16x64xbf16>, vector<64x256xbf16>, vector<16x256xf32> -> vector<16x256xf32>
    %c1_69 = arith.constant 1 : index
    %c0_70 = arith.constant 0 : index
    %c0_71 = arith.constant 0 : index
    %233 = vector.load %arg7[%c1_69, %c0_70, %c0_71] : memref<4x1x256xf32, #tpu.memory_space<vmem>>, vector<1x1x256xf32>
    %234 = vector.shape_cast %233 : vector<1x1x256xf32> to vector<1x256xf32>
    %235 = vector.broadcast %234 : vector<1x256xf32> to vector<16x256xf32>
    %236 = arith.addf %232, %235 : vector<16x256xf32>
    %cst_72 = arith.constant 0.000000e+00 : f32
    %237 = vector.broadcast %cst_72 : f32 to vector<16x256xf32>
    %238 = arith.maximumf %236, %237 : vector<16x256xf32>
    %239 = arith.truncf %238 : vector<16x256xf32> to vector<16x256xbf16>
    %c1_73 = arith.constant 1 : index
    %c0_74 = arith.constant 0 : index
    %c0_75 = arith.constant 0 : index
    %240 = vector.load %arg8[%c1_73, %c0_74, %c0_75] : memref<4x256x64xbf16, #tpu.memory_space<vmem>>, vector<1x256x64xbf16>
    %241 = vector.shape_cast %240 : vector<1x256x64xbf16> to vector<256x64xbf16>
    %cst_76 = arith.constant dense<0.000000e+00> : vector<16x64xf32>
    %242 = tpu.matmul %239, %241, %cst_76 {dimension_numbers = #tpu.dot_dimension_numbers<[1], [0], [0], [1], [0, 0, 1, 1], [], []>} : vector<16x256xbf16>, vector<256x64xbf16>, vector<16x64xf32> -> vector<16x64xf32>
    %243 = vector.broadcast %131 : vector<1x64xf32> to vector<16x64xf32>
    %244 = arith.addf %242, %243 : vector<16x64xf32>
    %245 = arith.addf %206, %244 : vector<16x64xf32>
    %c2 = arith.constant 2 : index
    %c0_77 = arith.constant 0 : index
    %c0_78 = arith.constant 0 : index
    %246 = vector.load %arg5[%c2, %c0_77, %c0_78] : memref<4x6x64xf32, #tpu.memory_space<vmem>>, vector<1x6x64xf32>
    %247 = vector.shape_cast %246 : vector<1x6x64xf32> to vector<6x64xf32>
    %248 = vector.extract_strided_slice %247 {offsets = [0, 0], sizes = [1, 64], strides = [1, 1]} : vector<6x64xf32> to vector<1x64xf32>
    %249 = vector.extract_strided_slice %247 {offsets = [1, 0], sizes = [1, 64], strides = [1, 1]} : vector<6x64xf32> to vector<1x64xf32>
    %250 = vector.extract_strided_slice %247 {offsets = [2, 0], sizes = [1, 64], strides = [1, 1]} : vector<6x64xf32> to vector<1x64xf32>
    %251 = vector.extract_strided_slice %247 {offsets = [3, 0], sizes = [1, 64], strides = [1, 1]} : vector<6x64xf32> to vector<1x64xf32>
    %252 = vector.extract_strided_slice %247 {offsets = [4, 0], sizes = [1, 64], strides = [1, 1]} : vector<6x64xf32> to vector<1x64xf32>
    %253 = vector.extract_strided_slice %247 {offsets = [5, 0], sizes = [1, 64], strides = [1, 1]} : vector<6x64xf32> to vector<1x64xf32>
    %cst_79 = arith.constant dense<0.000000e+00> : vector<16xf32>
    %254 = vector.multi_reduction <add>, %245, %cst_79 [1] : vector<16x64xf32> to vector<16xf32>
    %255 = vector.shape_cast %254 : vector<16xf32> to vector<16x1xf32>
    %cst_80 = arith.constant 6.400000e+01 : f32
    %256 = vector.broadcast %cst_80 : f32 to vector<16x1xf32>
    %257 = arith.divf %255, %256 : vector<16x1xf32>
    %258 = vector.broadcast %257 : vector<16x1xf32> to vector<16x64xf32>
    %259 = arith.subf %245, %258 : vector<16x64xf32>
    %260 = arith.mulf %259, %259 : vector<16x64xf32>
    %cst_81 = arith.constant dense<0.000000e+00> : vector<16xf32>
    %261 = vector.multi_reduction <add>, %260, %cst_81 [1] : vector<16x64xf32> to vector<16xf32>
    %262 = vector.shape_cast %261 : vector<16xf32> to vector<16x1xf32>
    %cst_82 = arith.constant 6.400000e+01 : f32
    %263 = vector.broadcast %cst_82 : f32 to vector<16x1xf32>
    %264 = arith.divf %262, %263 : vector<16x1xf32>
    %265 = vector.broadcast %257 : vector<16x1xf32> to vector<16x64xf32>
    %266 = arith.subf %245, %265 : vector<16x64xf32>
    %cst_83 = arith.constant 9.99999974E-6 : f32
    %267 = vector.broadcast %cst_83 : f32 to vector<16x1xf32>
    %268 = arith.addf %264, %267 : vector<16x1xf32>
    %269 = math.rsqrt %268 : vector<16x1xf32>
    %270 = vector.broadcast %269 : vector<16x1xf32> to vector<16x64xf32>
    %271 = arith.mulf %266, %270 : vector<16x64xf32>
    %272 = vector.broadcast %249 : vector<1x64xf32> to vector<16x64xf32>
    %273 = arith.mulf %271, %272 : vector<16x64xf32>
    %274 = vector.broadcast %250 : vector<1x64xf32> to vector<16x64xf32>
    %275 = arith.addf %273, %274 : vector<16x64xf32>
    %276 = arith.truncf %275 : vector<16x64xf32> to vector<16x64xbf16>
    %c2_84 = arith.constant 2 : index
    %c0_85 = arith.constant 0 : index
    %c0_86 = arith.constant 0 : index
    %277 = vector.load %arg3[%c2_84, %c0_85, %c0_86] : memref<4x64x192xbf16, #tpu.memory_space<vmem>>, vector<1x64x192xbf16>
    %278 = vector.shape_cast %277 : vector<1x64x192xbf16> to vector<64x192xbf16>
    %cst_87 = arith.constant dense<0.000000e+00> : vector<16x192xf32>
    %279 = tpu.matmul %276, %278, %cst_87 {dimension_numbers = #tpu.dot_dimension_numbers<[1], [0], [0], [1], [0, 0, 1, 1], [], []>} : vector<16x64xbf16>, vector<64x192xbf16>, vector<16x192xf32> -> vector<16x192xf32>
    %280 = vector.extract_strided_slice %279 {offsets = [0, 0], sizes = [16, 64], strides = [1, 1]} : vector<16x192xf32> to vector<16x64xf32>
    %281 = vector.extract_strided_slice %280 {offsets = [0, 0], sizes = [16, 16], strides = [1, 1]} : vector<16x64xf32> to vector<16x16xf32>
    %282 = vector.extract_strided_slice %280 {offsets = [0, 16], sizes = [16, 16], strides = [1, 1]} : vector<16x64xf32> to vector<16x16xf32>
    %283 = vector.extract_strided_slice %280 {offsets = [0, 32], sizes = [16, 16], strides = [1, 1]} : vector<16x64xf32> to vector<16x16xf32>
    %284 = vector.extract_strided_slice %280 {offsets = [0, 48], sizes = [16, 16], strides = [1, 1]} : vector<16x64xf32> to vector<16x16xf32>
    %285 = tpu.concatenate %281, %282, %283, %284 in 0 : vector<16x16xf32>, vector<16x16xf32>, vector<16x16xf32>, vector<16x16xf32> -> vector<64x16xf32>
    %286 = arith.truncf %285 : vector<64x16xf32> to vector<64x16xbf16>
    %287 = vector.extract_strided_slice %279 {offsets = [0, 64], sizes = [16, 64], strides = [1, 1]} : vector<16x192xf32> to vector<16x64xf32>
    %288 = vector.extract_strided_slice %287 {offsets = [0, 0], sizes = [16, 16], strides = [1, 1]} : vector<16x64xf32> to vector<16x16xf32>
    %289 = vector.extract_strided_slice %287 {offsets = [0, 16], sizes = [16, 16], strides = [1, 1]} : vector<16x64xf32> to vector<16x16xf32>
    %290 = vector.extract_strided_slice %287 {offsets = [0, 32], sizes = [16, 16], strides = [1, 1]} : vector<16x64xf32> to vector<16x16xf32>
    %291 = vector.extract_strided_slice %287 {offsets = [0, 48], sizes = [16, 16], strides = [1, 1]} : vector<16x64xf32> to vector<16x16xf32>
    %292 = tpu.concatenate %288, %289, %290, %291 in 0 : vector<16x16xf32>, vector<16x16xf32>, vector<16x16xf32>, vector<16x16xf32> -> vector<64x16xf32>
    %293 = arith.truncf %292 : vector<64x16xf32> to vector<64x16xbf16>
    %294 = vector.extract_strided_slice %279 {offsets = [0, 128], sizes = [16, 64], strides = [1, 1]} : vector<16x192xf32> to vector<16x64xf32>
    %295 = vector.extract_strided_slice %294 {offsets = [0, 0], sizes = [16, 16], strides = [1, 1]} : vector<16x64xf32> to vector<16x16xf32>
    %296 = vector.extract_strided_slice %294 {offsets = [0, 16], sizes = [16, 16], strides = [1, 1]} : vector<16x64xf32> to vector<16x16xf32>
    %297 = vector.extract_strided_slice %294 {offsets = [0, 32], sizes = [16, 16], strides = [1, 1]} : vector<16x64xf32> to vector<16x16xf32>
    %298 = vector.extract_strided_slice %294 {offsets = [0, 48], sizes = [16, 16], strides = [1, 1]} : vector<16x64xf32> to vector<16x16xf32>
    %299 = tpu.concatenate %295, %296, %297, %298 in 0 : vector<16x16xf32>, vector<16x16xf32>, vector<16x16xf32>, vector<16x16xf32> -> vector<64x16xf32>
    %300 = arith.truncf %299 : vector<64x16xf32> to vector<64x16xbf16>
    %cst_88 = arith.constant dense<0.000000e+00> : vector<64x64xf32>
    %301 = tpu.matmul %286, %293, %cst_88 {dimension_numbers = #tpu.dot_dimension_numbers<[1], [1], [0], [0], [0, 0, 1, 0], [], []>} : vector<64x16xbf16>, vector<64x16xbf16>, vector<64x64xf32> -> vector<64x64xf32>
    %cst_89 = arith.constant 1.250000e-01 : f32
    %302 = vector.broadcast %cst_89 : f32 to vector<64x64xf32>
    %303 = arith.mulf %301, %302 : vector<64x64xf32>
    %304 = arith.addf %303, %1 : vector<64x64xf32>
    %cst_90 = arith.constant dense<0xFF800000> : vector<64xf32>
    %305 = vector.multi_reduction <maximumf>, %304, %cst_90 [1] : vector<64x64xf32> to vector<64xf32>
    %306 = vector.shape_cast %305 : vector<64xf32> to vector<64x1xf32>
    %307 = vector.broadcast %306 : vector<64x1xf32> to vector<64x64xf32>
    %308 = arith.subf %304, %307 : vector<64x64xf32>
    %309 = math.exp %308 : vector<64x64xf32>
    %cst_91 = arith.constant dense<0.000000e+00> : vector<64xf32>
    %310 = vector.multi_reduction <add>, %309, %cst_91 [1] : vector<64x64xf32> to vector<64xf32>
    %311 = vector.shape_cast %310 : vector<64xf32> to vector<64x1xf32>
    %312 = tpu.reciprocal %311 {approx = true} : vector<64x1xf32> -> vector<64x1xf32>
    %313 = vector.broadcast %312 : vector<64x1xf32> to vector<64x64xf32>
    %314 = arith.mulf %309, %313 : vector<64x64xf32>
    %315 = arith.truncf %314 : vector<64x64xf32> to vector<64x64xbf16>
    %cst_92 = arith.constant dense<0.000000e+00> : vector<64x16xf32>
    %316 = tpu.matmul %315, %300, %cst_92 {dimension_numbers = #tpu.dot_dimension_numbers<[1], [0], [0], [1], [0, 0, 1, 1], [], []>} : vector<64x64xbf16>, vector<64x16xbf16>, vector<64x16xf32> -> vector<64x16xf32>
    %317 = vector.extract_strided_slice %316 {offsets = [0, 0], sizes = [16, 16], strides = [1, 1]} : vector<64x16xf32> to vector<16x16xf32>
    %318 = vector.extract_strided_slice %316 {offsets = [16, 0], sizes = [16, 16], strides = [1, 1]} : vector<64x16xf32> to vector<16x16xf32>
    %319 = vector.extract_strided_slice %316 {offsets = [32, 0], sizes = [16, 16], strides = [1, 1]} : vector<64x16xf32> to vector<16x16xf32>
    %320 = vector.extract_strided_slice %316 {offsets = [48, 0], sizes = [16, 16], strides = [1, 1]} : vector<64x16xf32> to vector<16x16xf32>
    %321 = tpu.concatenate %317, %318, %319, %320 in 1 : vector<16x16xf32>, vector<16x16xf32>, vector<16x16xf32>, vector<16x16xf32> -> vector<16x64xf32>
    %322 = arith.truncf %321 : vector<16x64xf32> to vector<16x64xbf16>
    %c2_93 = arith.constant 2 : index
    %c0_94 = arith.constant 0 : index
    %c0_95 = arith.constant 0 : index
    %323 = vector.load %arg4[%c2_93, %c0_94, %c0_95] : memref<4x64x64xbf16, #tpu.memory_space<vmem>>, vector<1x64x64xbf16>
    %324 = vector.shape_cast %323 : vector<1x64x64xbf16> to vector<64x64xbf16>
    %cst_96 = arith.constant dense<0.000000e+00> : vector<16x64xf32>
    %325 = tpu.matmul %322, %324, %cst_96 {dimension_numbers = #tpu.dot_dimension_numbers<[1], [0], [0], [1], [0, 0, 1, 1], [], []>} : vector<16x64xbf16>, vector<64x64xbf16>, vector<16x64xf32> -> vector<16x64xf32>
    %326 = vector.broadcast %248 : vector<1x64xf32> to vector<16x64xf32>
    %327 = arith.addf %325, %326 : vector<16x64xf32>
    %328 = arith.addf %245, %327 : vector<16x64xf32>
    %cst_97 = arith.constant dense<0.000000e+00> : vector<16xf32>
    %329 = vector.multi_reduction <add>, %328, %cst_97 [1] : vector<16x64xf32> to vector<16xf32>
    %330 = vector.shape_cast %329 : vector<16xf32> to vector<16x1xf32>
    %cst_98 = arith.constant 6.400000e+01 : f32
    %331 = vector.broadcast %cst_98 : f32 to vector<16x1xf32>
    %332 = arith.divf %330, %331 : vector<16x1xf32>
    %333 = vector.broadcast %332 : vector<16x1xf32> to vector<16x64xf32>
    %334 = arith.subf %328, %333 : vector<16x64xf32>
    %335 = arith.mulf %334, %334 : vector<16x64xf32>
    %cst_99 = arith.constant dense<0.000000e+00> : vector<16xf32>
    %336 = vector.multi_reduction <add>, %335, %cst_99 [1] : vector<16x64xf32> to vector<16xf32>
    %337 = vector.shape_cast %336 : vector<16xf32> to vector<16x1xf32>
    %cst_100 = arith.constant 6.400000e+01 : f32
    %338 = vector.broadcast %cst_100 : f32 to vector<16x1xf32>
    %339 = arith.divf %337, %338 : vector<16x1xf32>
    %340 = vector.broadcast %332 : vector<16x1xf32> to vector<16x64xf32>
    %341 = arith.subf %328, %340 : vector<16x64xf32>
    %cst_101 = arith.constant 9.99999974E-6 : f32
    %342 = vector.broadcast %cst_101 : f32 to vector<16x1xf32>
    %343 = arith.addf %339, %342 : vector<16x1xf32>
    %344 = math.rsqrt %343 : vector<16x1xf32>
    %345 = vector.broadcast %344 : vector<16x1xf32> to vector<16x64xf32>
    %346 = arith.mulf %341, %345 : vector<16x64xf32>
    %347 = vector.broadcast %251 : vector<1x64xf32> to vector<16x64xf32>
    %348 = arith.mulf %346, %347 : vector<16x64xf32>
    %349 = vector.broadcast %252 : vector<1x64xf32> to vector<16x64xf32>
    %350 = arith.addf %348, %349 : vector<16x64xf32>
    %351 = arith.truncf %350 : vector<16x64xf32> to vector<16x64xbf16>
    %c2_102 = arith.constant 2 : index
    %c0_103 = arith.constant 0 : index
    %c0_104 = arith.constant 0 : index
    %352 = vector.load %arg6[%c2_102, %c0_103, %c0_104] : memref<4x64x256xbf16, #tpu.memory_space<vmem>>, vector<1x64x256xbf16>
    %353 = vector.shape_cast %352 : vector<1x64x256xbf16> to vector<64x256xbf16>
    %cst_105 = arith.constant dense<0.000000e+00> : vector<16x256xf32>
    %354 = tpu.matmul %351, %353, %cst_105 {dimension_numbers = #tpu.dot_dimension_numbers<[1], [0], [0], [1], [0, 0, 1, 1], [], []>} : vector<16x64xbf16>, vector<64x256xbf16>, vector<16x256xf32> -> vector<16x256xf32>
    %c2_106 = arith.constant 2 : index
    %c0_107 = arith.constant 0 : index
    %c0_108 = arith.constant 0 : index
    %355 = vector.load %arg7[%c2_106, %c0_107, %c0_108] : memref<4x1x256xf32, #tpu.memory_space<vmem>>, vector<1x1x256xf32>
    %356 = vector.shape_cast %355 : vector<1x1x256xf32> to vector<1x256xf32>
    %357 = vector.broadcast %356 : vector<1x256xf32> to vector<16x256xf32>
    %358 = arith.addf %354, %357 : vector<16x256xf32>
    %cst_109 = arith.constant 0.000000e+00 : f32
    %359 = vector.broadcast %cst_109 : f32 to vector<16x256xf32>
    %360 = arith.maximumf %358, %359 : vector<16x256xf32>
    %361 = arith.truncf %360 : vector<16x256xf32> to vector<16x256xbf16>
    %c2_110 = arith.constant 2 : index
    %c0_111 = arith.constant 0 : index
    %c0_112 = arith.constant 0 : index
    %362 = vector.load %arg8[%c2_110, %c0_111, %c0_112] : memref<4x256x64xbf16, #tpu.memory_space<vmem>>, vector<1x256x64xbf16>
    %363 = vector.shape_cast %362 : vector<1x256x64xbf16> to vector<256x64xbf16>
    %cst_113 = arith.constant dense<0.000000e+00> : vector<16x64xf32>
    %364 = tpu.matmul %361, %363, %cst_113 {dimension_numbers = #tpu.dot_dimension_numbers<[1], [0], [0], [1], [0, 0, 1, 1], [], []>} : vector<16x256xbf16>, vector<256x64xbf16>, vector<16x64xf32> -> vector<16x64xf32>
    %365 = vector.broadcast %253 : vector<1x64xf32> to vector<16x64xf32>
    %366 = arith.addf %364, %365 : vector<16x64xf32>
    %367 = arith.addf %328, %366 : vector<16x64xf32>
    %c3 = arith.constant 3 : index
    %c0_114 = arith.constant 0 : index
    %c0_115 = arith.constant 0 : index
    %368 = vector.load %arg5[%c3, %c0_114, %c0_115] : memref<4x6x64xf32, #tpu.memory_space<vmem>>, vector<1x6x64xf32>
    %369 = vector.shape_cast %368 : vector<1x6x64xf32> to vector<6x64xf32>
    %370 = vector.extract_strided_slice %369 {offsets = [0, 0], sizes = [1, 64], strides = [1, 1]} : vector<6x64xf32> to vector<1x64xf32>
    %371 = vector.extract_strided_slice %369 {offsets = [1, 0], sizes = [1, 64], strides = [1, 1]} : vector<6x64xf32> to vector<1x64xf32>
    %372 = vector.extract_strided_slice %369 {offsets = [2, 0], sizes = [1, 64], strides = [1, 1]} : vector<6x64xf32> to vector<1x64xf32>
    %373 = vector.extract_strided_slice %369 {offsets = [3, 0], sizes = [1, 64], strides = [1, 1]} : vector<6x64xf32> to vector<1x64xf32>
    %374 = vector.extract_strided_slice %369 {offsets = [4, 0], sizes = [1, 64], strides = [1, 1]} : vector<6x64xf32> to vector<1x64xf32>
    %375 = vector.extract_strided_slice %369 {offsets = [5, 0], sizes = [1, 64], strides = [1, 1]} : vector<6x64xf32> to vector<1x64xf32>
    %cst_116 = arith.constant dense<0.000000e+00> : vector<16xf32>
    %376 = vector.multi_reduction <add>, %367, %cst_116 [1] : vector<16x64xf32> to vector<16xf32>
    %377 = vector.shape_cast %376 : vector<16xf32> to vector<16x1xf32>
    %cst_117 = arith.constant 6.400000e+01 : f32
    %378 = vector.broadcast %cst_117 : f32 to vector<16x1xf32>
    %379 = arith.divf %377, %378 : vector<16x1xf32>
    %380 = vector.broadcast %379 : vector<16x1xf32> to vector<16x64xf32>
    %381 = arith.subf %367, %380 : vector<16x64xf32>
    %382 = arith.mulf %381, %381 : vector<16x64xf32>
    %cst_118 = arith.constant dense<0.000000e+00> : vector<16xf32>
    %383 = vector.multi_reduction <add>, %382, %cst_118 [1] : vector<16x64xf32> to vector<16xf32>
    %384 = vector.shape_cast %383 : vector<16xf32> to vector<16x1xf32>
    %cst_119 = arith.constant 6.400000e+01 : f32
    %385 = vector.broadcast %cst_119 : f32 to vector<16x1xf32>
    %386 = arith.divf %384, %385 : vector<16x1xf32>
    %387 = vector.broadcast %379 : vector<16x1xf32> to vector<16x64xf32>
    %388 = arith.subf %367, %387 : vector<16x64xf32>
    %cst_120 = arith.constant 9.99999974E-6 : f32
    %389 = vector.broadcast %cst_120 : f32 to vector<16x1xf32>
    %390 = arith.addf %386, %389 : vector<16x1xf32>
    %391 = math.rsqrt %390 : vector<16x1xf32>
    %392 = vector.broadcast %391 : vector<16x1xf32> to vector<16x64xf32>
    %393 = arith.mulf %388, %392 : vector<16x64xf32>
    %394 = vector.broadcast %371 : vector<1x64xf32> to vector<16x64xf32>
    %395 = arith.mulf %393, %394 : vector<16x64xf32>
    %396 = vector.broadcast %372 : vector<1x64xf32> to vector<16x64xf32>
    %397 = arith.addf %395, %396 : vector<16x64xf32>
    %398 = arith.truncf %397 : vector<16x64xf32> to vector<16x64xbf16>
    %c3_121 = arith.constant 3 : index
    %c0_122 = arith.constant 0 : index
    %c0_123 = arith.constant 0 : index
    %399 = vector.load %arg3[%c3_121, %c0_122, %c0_123] : memref<4x64x192xbf16, #tpu.memory_space<vmem>>, vector<1x64x192xbf16>
    %400 = vector.shape_cast %399 : vector<1x64x192xbf16> to vector<64x192xbf16>
    %cst_124 = arith.constant dense<0.000000e+00> : vector<16x192xf32>
    %401 = tpu.matmul %398, %400, %cst_124 {dimension_numbers = #tpu.dot_dimension_numbers<[1], [0], [0], [1], [0, 0, 1, 1], [], []>} : vector<16x64xbf16>, vector<64x192xbf16>, vector<16x192xf32> -> vector<16x192xf32>
    %402 = vector.extract_strided_slice %401 {offsets = [0, 0], sizes = [16, 64], strides = [1, 1]} : vector<16x192xf32> to vector<16x64xf32>
    %403 = vector.extract_strided_slice %402 {offsets = [0, 0], sizes = [16, 16], strides = [1, 1]} : vector<16x64xf32> to vector<16x16xf32>
    %404 = vector.extract_strided_slice %402 {offsets = [0, 16], sizes = [16, 16], strides = [1, 1]} : vector<16x64xf32> to vector<16x16xf32>
    %405 = vector.extract_strided_slice %402 {offsets = [0, 32], sizes = [16, 16], strides = [1, 1]} : vector<16x64xf32> to vector<16x16xf32>
    %406 = vector.extract_strided_slice %402 {offsets = [0, 48], sizes = [16, 16], strides = [1, 1]} : vector<16x64xf32> to vector<16x16xf32>
    %407 = tpu.concatenate %403, %404, %405, %406 in 0 : vector<16x16xf32>, vector<16x16xf32>, vector<16x16xf32>, vector<16x16xf32> -> vector<64x16xf32>
    %408 = arith.truncf %407 : vector<64x16xf32> to vector<64x16xbf16>
    %409 = vector.extract_strided_slice %401 {offsets = [0, 64], sizes = [16, 64], strides = [1, 1]} : vector<16x192xf32> to vector<16x64xf32>
    %410 = vector.extract_strided_slice %409 {offsets = [0, 0], sizes = [16, 16], strides = [1, 1]} : vector<16x64xf32> to vector<16x16xf32>
    %411 = vector.extract_strided_slice %409 {offsets = [0, 16], sizes = [16, 16], strides = [1, 1]} : vector<16x64xf32> to vector<16x16xf32>
    %412 = vector.extract_strided_slice %409 {offsets = [0, 32], sizes = [16, 16], strides = [1, 1]} : vector<16x64xf32> to vector<16x16xf32>
    %413 = vector.extract_strided_slice %409 {offsets = [0, 48], sizes = [16, 16], strides = [1, 1]} : vector<16x64xf32> to vector<16x16xf32>
    %414 = tpu.concatenate %410, %411, %412, %413 in 0 : vector<16x16xf32>, vector<16x16xf32>, vector<16x16xf32>, vector<16x16xf32> -> vector<64x16xf32>
    %415 = arith.truncf %414 : vector<64x16xf32> to vector<64x16xbf16>
    %416 = vector.extract_strided_slice %401 {offsets = [0, 128], sizes = [16, 64], strides = [1, 1]} : vector<16x192xf32> to vector<16x64xf32>
    %417 = vector.extract_strided_slice %416 {offsets = [0, 0], sizes = [16, 16], strides = [1, 1]} : vector<16x64xf32> to vector<16x16xf32>
    %418 = vector.extract_strided_slice %416 {offsets = [0, 16], sizes = [16, 16], strides = [1, 1]} : vector<16x64xf32> to vector<16x16xf32>
    %419 = vector.extract_strided_slice %416 {offsets = [0, 32], sizes = [16, 16], strides = [1, 1]} : vector<16x64xf32> to vector<16x16xf32>
    %420 = vector.extract_strided_slice %416 {offsets = [0, 48], sizes = [16, 16], strides = [1, 1]} : vector<16x64xf32> to vector<16x16xf32>
    %421 = tpu.concatenate %417, %418, %419, %420 in 0 : vector<16x16xf32>, vector<16x16xf32>, vector<16x16xf32>, vector<16x16xf32> -> vector<64x16xf32>
    %422 = arith.truncf %421 : vector<64x16xf32> to vector<64x16xbf16>
    %cst_125 = arith.constant dense<0.000000e+00> : vector<64x64xf32>
    %423 = tpu.matmul %408, %415, %cst_125 {dimension_numbers = #tpu.dot_dimension_numbers<[1], [1], [0], [0], [0, 0, 1, 0], [], []>} : vector<64x16xbf16>, vector<64x16xbf16>, vector<64x64xf32> -> vector<64x64xf32>
    %cst_126 = arith.constant 1.250000e-01 : f32
    %424 = vector.broadcast %cst_126 : f32 to vector<64x64xf32>
    %425 = arith.mulf %423, %424 : vector<64x64xf32>
    %426 = arith.addf %425, %1 : vector<64x64xf32>
    %cst_127 = arith.constant dense<0xFF800000> : vector<64xf32>
    %427 = vector.multi_reduction <maximumf>, %426, %cst_127 [1] : vector<64x64xf32> to vector<64xf32>
    %428 = vector.shape_cast %427 : vector<64xf32> to vector<64x1xf32>
    %429 = vector.broadcast %428 : vector<64x1xf32> to vector<64x64xf32>
    %430 = arith.subf %426, %429 : vector<64x64xf32>
    %431 = math.exp %430 : vector<64x64xf32>
    %cst_128 = arith.constant dense<0.000000e+00> : vector<64xf32>
    %432 = vector.multi_reduction <add>, %431, %cst_128 [1] : vector<64x64xf32> to vector<64xf32>
    %433 = vector.shape_cast %432 : vector<64xf32> to vector<64x1xf32>
    %434 = tpu.reciprocal %433 {approx = true} : vector<64x1xf32> -> vector<64x1xf32>
    %435 = vector.broadcast %434 : vector<64x1xf32> to vector<64x64xf32>
    %436 = arith.mulf %431, %435 : vector<64x64xf32>
    %437 = arith.truncf %436 : vector<64x64xf32> to vector<64x64xbf16>
    %cst_129 = arith.constant dense<0.000000e+00> : vector<64x16xf32>
    %438 = tpu.matmul %437, %422, %cst_129 {dimension_numbers = #tpu.dot_dimension_numbers<[1], [0], [0], [1], [0, 0, 1, 1], [], []>} : vector<64x64xbf16>, vector<64x16xbf16>, vector<64x16xf32> -> vector<64x16xf32>
    %439 = vector.extract_strided_slice %438 {offsets = [0, 0], sizes = [16, 16], strides = [1, 1]} : vector<64x16xf32> to vector<16x16xf32>
    %440 = vector.extract_strided_slice %438 {offsets = [16, 0], sizes = [16, 16], strides = [1, 1]} : vector<64x16xf32> to vector<16x16xf32>
    %441 = vector.extract_strided_slice %438 {offsets = [32, 0], sizes = [16, 16], strides = [1, 1]} : vector<64x16xf32> to vector<16x16xf32>
    %442 = vector.extract_strided_slice %438 {offsets = [48, 0], sizes = [16, 16], strides = [1, 1]} : vector<64x16xf32> to vector<16x16xf32>
    %443 = tpu.concatenate %439, %440, %441, %442 in 1 : vector<16x16xf32>, vector<16x16xf32>, vector<16x16xf32>, vector<16x16xf32> -> vector<16x64xf32>
    %444 = arith.truncf %443 : vector<16x64xf32> to vector<16x64xbf16>
    %c3_130 = arith.constant 3 : index
    %c0_131 = arith.constant 0 : index
    %c0_132 = arith.constant 0 : index
    %445 = vector.load %arg4[%c3_130, %c0_131, %c0_132] : memref<4x64x64xbf16, #tpu.memory_space<vmem>>, vector<1x64x64xbf16>
    %446 = vector.shape_cast %445 : vector<1x64x64xbf16> to vector<64x64xbf16>
    %cst_133 = arith.constant dense<0.000000e+00> : vector<16x64xf32>
    %447 = tpu.matmul %444, %446, %cst_133 {dimension_numbers = #tpu.dot_dimension_numbers<[1], [0], [0], [1], [0, 0, 1, 1], [], []>} : vector<16x64xbf16>, vector<64x64xbf16>, vector<16x64xf32> -> vector<16x64xf32>
    %448 = vector.broadcast %370 : vector<1x64xf32> to vector<16x64xf32>
    %449 = arith.addf %447, %448 : vector<16x64xf32>
    %450 = arith.addf %367, %449 : vector<16x64xf32>
    %cst_134 = arith.constant dense<0.000000e+00> : vector<16xf32>
    %451 = vector.multi_reduction <add>, %450, %cst_134 [1] : vector<16x64xf32> to vector<16xf32>
    %452 = vector.shape_cast %451 : vector<16xf32> to vector<16x1xf32>
    %cst_135 = arith.constant 6.400000e+01 : f32
    %453 = vector.broadcast %cst_135 : f32 to vector<16x1xf32>
    %454 = arith.divf %452, %453 : vector<16x1xf32>
    %455 = vector.broadcast %454 : vector<16x1xf32> to vector<16x64xf32>
    %456 = arith.subf %450, %455 : vector<16x64xf32>
    %457 = arith.mulf %456, %456 : vector<16x64xf32>
    %cst_136 = arith.constant dense<0.000000e+00> : vector<16xf32>
    %458 = vector.multi_reduction <add>, %457, %cst_136 [1] : vector<16x64xf32> to vector<16xf32>
    %459 = vector.shape_cast %458 : vector<16xf32> to vector<16x1xf32>
    %cst_137 = arith.constant 6.400000e+01 : f32
    %460 = vector.broadcast %cst_137 : f32 to vector<16x1xf32>
    %461 = arith.divf %459, %460 : vector<16x1xf32>
    %462 = vector.broadcast %454 : vector<16x1xf32> to vector<16x64xf32>
    %463 = arith.subf %450, %462 : vector<16x64xf32>
    %cst_138 = arith.constant 9.99999974E-6 : f32
    %464 = vector.broadcast %cst_138 : f32 to vector<16x1xf32>
    %465 = arith.addf %461, %464 : vector<16x1xf32>
    %466 = math.rsqrt %465 : vector<16x1xf32>
    %467 = vector.broadcast %466 : vector<16x1xf32> to vector<16x64xf32>
    %468 = arith.mulf %463, %467 : vector<16x64xf32>
    %469 = vector.broadcast %373 : vector<1x64xf32> to vector<16x64xf32>
    %470 = arith.mulf %468, %469 : vector<16x64xf32>
    %471 = vector.broadcast %374 : vector<1x64xf32> to vector<16x64xf32>
    %472 = arith.addf %470, %471 : vector<16x64xf32>
    %473 = arith.truncf %472 : vector<16x64xf32> to vector<16x64xbf16>
    %c3_139 = arith.constant 3 : index
    %c0_140 = arith.constant 0 : index
    %c0_141 = arith.constant 0 : index
    %474 = vector.load %arg6[%c3_139, %c0_140, %c0_141] : memref<4x64x256xbf16, #tpu.memory_space<vmem>>, vector<1x64x256xbf16>
    %475 = vector.shape_cast %474 : vector<1x64x256xbf16> to vector<64x256xbf16>
    %cst_142 = arith.constant dense<0.000000e+00> : vector<16x256xf32>
    %476 = tpu.matmul %473, %475, %cst_142 {dimension_numbers = #tpu.dot_dimension_numbers<[1], [0], [0], [1], [0, 0, 1, 1], [], []>} : vector<16x64xbf16>, vector<64x256xbf16>, vector<16x256xf32> -> vector<16x256xf32>
    %c3_143 = arith.constant 3 : index
    %c0_144 = arith.constant 0 : index
    %c0_145 = arith.constant 0 : index
    %477 = vector.load %arg7[%c3_143, %c0_144, %c0_145] : memref<4x1x256xf32, #tpu.memory_space<vmem>>, vector<1x1x256xf32>
    %478 = vector.shape_cast %477 : vector<1x1x256xf32> to vector<1x256xf32>
    %479 = vector.broadcast %478 : vector<1x256xf32> to vector<16x256xf32>
    %480 = arith.addf %476, %479 : vector<16x256xf32>
    %cst_146 = arith.constant 0.000000e+00 : f32
    %481 = vector.broadcast %cst_146 : f32 to vector<16x256xf32>
    %482 = arith.maximumf %480, %481 : vector<16x256xf32>
    %483 = arith.truncf %482 : vector<16x256xf32> to vector<16x256xbf16>
    %c3_147 = arith.constant 3 : index
    %c0_148 = arith.constant 0 : index
    %c0_149 = arith.constant 0 : index
    %484 = vector.load %arg8[%c3_147, %c0_148, %c0_149] : memref<4x256x64xbf16, #tpu.memory_space<vmem>>, vector<1x256x64xbf16>
    %485 = vector.shape_cast %484 : vector<1x256x64xbf16> to vector<256x64xbf16>
    %cst_150 = arith.constant dense<0.000000e+00> : vector<16x64xf32>
    %486 = tpu.matmul %483, %485, %cst_150 {dimension_numbers = #tpu.dot_dimension_numbers<[1], [0], [0], [1], [0, 0, 1, 1], [], []>} : vector<16x256xbf16>, vector<256x64xbf16>, vector<16x64xf32> -> vector<16x64xf32>
    %487 = vector.broadcast %375 : vector<1x64xf32> to vector<16x64xf32>
    %488 = arith.addf %486, %487 : vector<16x64xf32>
    %489 = arith.addf %450, %488 : vector<16x64xf32>
    %490 = arith.truncf %489 : vector<16x64xf32> to vector<16x64xbf16>
    %c0_151 = arith.constant 0 : index
    %c0_152 = arith.constant 0 : index
    %491 = vector.load %arg9[%c0_151, %c0_152] : memref<64x128xbf16, #tpu.memory_space<vmem>>, vector<64x128xbf16>
    %cst_153 = arith.constant dense<0.000000e+00> : vector<16x128xf32>
    %492 = tpu.matmul %490, %491, %cst_153 {dimension_numbers = #tpu.dot_dimension_numbers<[1], [0], [0], [1], [0, 0, 1, 1], [], []>} : vector<16x64xbf16>, vector<64x128xbf16>, vector<16x128xf32> -> vector<16x128xf32>
    %c0_154 = arith.constant 0 : index
    %c0_155 = arith.constant 0 : index
    %493 = vector.load %arg10[%c0_154, %c0_155] : memref<1x128xf32, #tpu.memory_space<vmem>>, vector<1x128xf32>
    %494 = vector.broadcast %493 : vector<1x128xf32> to vector<16x128xf32>
    %495 = arith.addf %492, %494 : vector<16x128xf32>
    %c0_156 = arith.constant 0 : index
    %c0_157 = arith.constant 0 : index
    %496 = vector.load %arg11[%c0_156, %c0_157] : memref<16x128xf32, #tpu.memory_space<vmem>>, vector<16x128xf32>
    tpu.vector_store %arg11[%c0_156, %c0_157], %495 {strides = array<i32>} : memref<16x128xf32, #tpu.memory_space<vmem>>, vector<16x128xf32>,
    return
  }
  func.func @transform_0(%arg0: i32) -> (i32, i32) {
    %c0_i32 = arith.constant 0 : i32
    %c0_i32_0 = arith.constant 0 : i32
    %c0_i32_1 = arith.constant 0 : i32
    return %c0_i32, %c0_i32_0 : i32, i32
  }
  func.func @transform_1(%arg0: i32) -> (i32, i32) {
    %c0_i32 = arith.constant 0 : i32
    %c0_i32_0 = arith.constant 0 : i32
    %c0_i32_1 = arith.constant 0 : i32
    return %c0_i32, %c0_i32_0 : i32, i32
  }
  func.func @transform_2(%arg0: i32) -> (i32, i32, i32) {
    %c0_i32 = arith.constant 0 : i32
    %c0_i32_0 = arith.constant 0 : i32
    %c0_i32_1 = arith.constant 0 : i32
    %c0_i32_2 = arith.constant 0 : i32
    return %c0_i32, %c0_i32_0, %c0_i32_1 : i32, i32, i32
  }
  func.func @transform_3(%arg0: i32) -> (i32, i32, i32) {
    %c0_i32 = arith.constant 0 : i32
    %c0_i32_0 = arith.constant 0 : i32
    %c0_i32_1 = arith.constant 0 : i32
    %c0_i32_2 = arith.constant 0 : i32
    return %c0_i32, %c0_i32_0, %c0_i32_1 : i32, i32, i32
  }
  func.func @transform_4(%arg0: i32) -> (i32, i32, i32) {
    %c0_i32 = arith.constant 0 : i32
    %c0_i32_0 = arith.constant 0 : i32
    %c0_i32_1 = arith.constant 0 : i32
    %c0_i32_2 = arith.constant 0 : i32
    return %c0_i32, %c0_i32_0, %c0_i32_1 : i32, i32, i32
  }
  func.func @transform_5(%arg0: i32) -> (i32, i32, i32) {
    %c0_i32 = arith.constant 0 : i32
    %c0_i32_0 = arith.constant 0 : i32
    %c0_i32_1 = arith.constant 0 : i32
    %c0_i32_2 = arith.constant 0 : i32
    return %c0_i32, %c0_i32_0, %c0_i32_1 : i32, i32, i32
  }
  func.func @transform_6(%arg0: i32) -> (i32, i32, i32) {
    %c0_i32 = arith.constant 0 : i32
    %c0_i32_0 = arith.constant 0 : i32
    %c0_i32_1 = arith.constant 0 : i32
    %c0_i32_2 = arith.constant 0 : i32
    return %c0_i32, %c0_i32_0, %c0_i32_1 : i32, i32, i32
  }
  func.func @transform_7(%arg0: i32) -> (i32, i32, i32) {
    %c0_i32 = arith.constant 0 : i32
    %c0_i32_0 = arith.constant 0 : i32
    %c0_i32_1 = arith.constant 0 : i32
    %c0_i32_2 = arith.constant 0 : i32
    return %c0_i32, %c0_i32_0, %c0_i32_1 : i32, i32, i32
  }
  func.func @transform_8(%arg0: i32) -> (i32, i32) {
    %c0_i32 = arith.constant 0 : i32
    %c0_i32_0 = arith.constant 0 : i32
    %c0_i32_1 = arith.constant 0 : i32
    return %c0_i32, %c0_i32_0 : i32, i32
  }
  func.func @transform_9(%arg0: i32) -> (i32, i32) {
    %c0_i32 = arith.constant 0 : i32
    %c0_i32_0 = arith.constant 0 : i32
    %c0_i32_1 = arith.constant 0 : i32
    return %c0_i32, %c0_i32_0 : i32, i32
  }
  func.func @transform_10(%arg0: i32) -> (i32, i32) {
    %c0_i32 = arith.constant 0 : i32
    %c0_i32_0 = arith.constant 0 : i32
    %c0_i32_1 = arith.constant 0 : i32
    return %c0_i32, %c0_i32_0 : i32, i32
  }
}

</mosaic_0001>

<llo_original>
// kernel: forward.1
$region0: #{forward.1}
  #allocation0 [shape = 'u32[]', space=smem, size = 0x4, offset = 0x4, fixed_abs, tag = 'smem constant byte address 0x4 - core index']
  #allocation1 [shape = 'u32[72,128]{1,0:T(1,128)}', space=vmem, size = 0x9000, scoped, tag = 'internal scratch']
  %s0 = inlined_call_operand.vmem [shape: f32[16,64], index: 0, kind: input, shape index: {}]
  %s1 = inlined_call_operand.vmem [shape: f32[64,64], index: 1, kind: input, shape index: {}]
  %s2 = inlined_call_operand.vmem [shape: bf16[4,64,192], index: 2, kind: input, shape index: {}]
  %s3 = inlined_call_operand.vmem [shape: bf16[4,64,64], index: 3, kind: input, shape index: {}]
  %s4 = inlined_call_operand.vmem [shape: f32[4,6,64], index: 4, kind: input, shape index: {}]
  %s5 = inlined_call_operand.vmem [shape: bf16[4,64,256], index: 5, kind: input, shape index: {}]
  %s6 = inlined_call_operand.vmem [shape: f32[4,1,256], index: 6, kind: input, shape index: {}]
  %s7 = inlined_call_operand.vmem [shape: bf16[4,256,64], index: 7, kind: input, shape index: {}]
  %s8 = inlined_call_operand.vmem [shape: bf16[64,128], index: 8, kind: input, shape index: {}]
  %s9 = inlined_call_operand.vmem [shape: f32[1,128], index: 9, kind: input, shape index: {}]
  %s10 = inlined_call_operand.hbm [shape: f32[16,128], index: 10, kind: output, shape index: {}]
  %s11 = sld [smem:[#allocation0]]
  $region50: #{forward.1} parent=0
    _
  %s13 = ssub.s32 1, %s11
  %s14 = scalar_select 0, %s13, %s11
  $region1: #{forward.1} parent=0
    #allocation2 [shape = 'u8[8192]{0}', space=vmem, size = 0x2000, scoped, tag = 'output window, operand 0, single buffered']
    #allocation3 [shape = 's32[1]{0}', space=sflag, size = 0x4, scoped, tag = 'scoped memory for forward.1']
    %15 = vsyncpa [#allocation3], 0
    // Predicated region
    $region2: #{forward.1} parent=1 // pred_check
      _
    $region3: #{forward.1} parent=1 // pred_check_branch
      %17 = sbr.rel (0) target = $region5
    $region4: #{forward.1} parent=1 // pred_region
      _
    $region5: #{forward.1} parent=1 // pred_fallthru
      _
    // Predicated region
    $region6: #{forward.1} parent=1 // pred_check
      _
    $region7: #{forward.1} parent=1 // pred_check_branch
      %19 = sbr.rel (0) target = $region9
    $region8: #{forward.1} parent=1 // pred_region
      _
    $region9: #{forward.1} parent=1 // pred_fallthru
      _
    // Predicated region
    $region10: #{forward.1} parent=1 // pred_check
      _
    $region11: #{forward.1} parent=1 // pred_check_branch
      %21 = sbr.rel (0) target = $region13
    $region12: #{forward.1} parent=1 // pred_region
      _
    $region13: #{forward.1} parent=1 // pred_fallthru
      _
    // Predicated region
    $region14: #{forward.1} parent=1 // pred_check
      _
    $region15: #{forward.1} parent=1 // pred_check_branch
      %23 = sbr.rel (0) target = $region17
    $region16: #{forward.1} parent=1 // pred_region
      _
    $region17: #{forward.1} parent=1 // pred_fallthru
      _
    // Predicated region
    $region18: #{forward.1} parent=1 // pred_check
      _
    $region19: #{forward.1} parent=1 // pred_check_branch
      %25 = sbr.rel (0) target = $region21
    $region20: #{forward.1} parent=1 // pred_region
      _
    $region21: #{forward.1} parent=1 // pred_fallthru
      _
    // Predicated region
    $region22: #{forward.1} parent=1 // pred_check
      _
    $region23: #{forward.1} parent=1 // pred_check_branch
      %27 = sbr.rel (0) target = $region25
    $region24: #{forward.1} parent=1 // pred_region
      _
    $region25: #{forward.1} parent=1 // pred_fallthru
      _
    // Predicated region
    $region26: #{forward.1} parent=1 // pred_check
      _
    $region27: #{forward.1} parent=1 // pred_check_branch
      %29 = sbr.rel (0) target = $region29
    $region28: #{forward.1} parent=1 // pred_region
      _
    $region29: #{forward.1} parent=1 // pred_fallthru
      _
    // Predicated region
    $region30: #{forward.1} parent=1 // pred_check
      _
    $region31: #{forward.1} parent=1 // pred_check_branch
      %31 = sbr.rel (0) target = $region33
    $region32: #{forward.1} parent=1 // pred_region
      _
    $region33: #{forward.1} parent=1 // pred_fallthru
      _
    // Predicated region
    $region34: #{forward.1} parent=1 // pred_check
      _
    $region35: #{forward.1} parent=1 // pred_check_branch
      %33 = sbr.rel (0) target = $region37
    $region36: #{forward.1} parent=1 // pred_region
      _
    $region37: #{forward.1} parent=1 // pred_fallthru
      _
    // Predicated region
    $region38: #{forward.1} parent=1 // pred_check
      _
    $region39: #{forward.1} parent=1 // pred_check_branch
      %35 = sbr.rel (0) target = $region41
    $region40: #{forward.1} parent=1 // pred_region
      _
    $region41: #{forward.1} parent=1 // pred_fallthru
      _
    %v37 = vld [vmem:[%s0] sm:$0xff]
    %v38 = vld [vmem:[%s0 + $0x8] sm:$0xff]
    %v39 = vld [vmem:[%s1] sm:$0xff]
    %v40 = vld [vmem:[%s1 + $0x8] sm:$0xff]
    %v41 = vld [vmem:[%s1 + $0x10] sm:$0xff]
    %v42 = vld [vmem:[%s1 + $0x18] sm:$0xff]
    %v43 = vld [vmem:[%s1 + $0x20] sm:$0xff]
    %v44 = vld [vmem:[%s1 + $0x28] sm:$0xff]
    %v45 = vld [vmem:[%s1 + $0x30] sm:$0xff]
    %v46 = vld [vmem:[%s1 + $0x38] sm:$0xff]
    %v47 = vld [vmem:[%s4] sm:$0x3f]
    %vm48 = vcmask 523264
    %v49 = vsel %vm48, %v37, 0.0
    %50 = vadd.xlane.f32.xlu0 %v49
    %v51 = vpop.xlane.xlu0 %50
    %v52 = vsel %vm48, %v38, 0.0
    %53 = vadd.xlane.f32.xlu0 %v52
    %v54 = vpop.xlane.xlu0 %53
    %v55 = vrcp.pop 64.0
    %v56 = vmul.f32 64.0, %v55
    %v57 = vsub.f32 1.0, %v56
    %v58 = vmul.f32 %v55, %v57
    %v59 = vadd.f32 %v55, %v58
    %vm60 = vweird.f32 %v55
    %v61 = vsel %vm60, %v55, %v59
    %v62 = vmul.f32 %v51, %v61
    %v63 = vmul.f32 %v54, %v61
    %v64 = vsub.f32 %v37, %v62
    %v65 = vsub.f32 %v38, %v63
    %v66 = vmul.f32 %v64, %v64
    %v67 = vmul.f32 %v65, %v65
    %v68 = vsel %vm48, %v66, 0.0
    %69 = vadd.xlane.f32.xlu0 %v68
    %v70 = vpop.xlane.xlu0 %69
    %v71 = vsel %vm48, %v67, 0.0
    %72 = vadd.xlane.f32.xlu0 %v71
    %v73 = vpop.xlane.xlu0 %72
    %v74 = vmul.f32 %v70, %v61
    %v75 = vmul.f32 %v73, %v61
    %v76 = vadd.f32 %v74, 1e-05
    %v77 = vadd.f32 %v75, 1e-05
    %v78 = vrsqrt.pop %v76
    %v79 = vmul.f32 %v78, %v76
    %v80 = vmul.f32 %v79, %v78
    %v81 = vmul.f32 0.5, %v80
    %v82 = vsub.f32 1.5, %v81
    %v83 = vmul.f32 %v78, %v82
    %vm84 = vweird.f32 %v76
    %vm85 = vweird.f32 %v78
    %vm86 = vmor %vm84, %vm85
    %v87 = vsel %vm86, %v78, %v83
    %v88 = vrsqrt.pop %v77
    %v89 = vmul.f32 %v88, %v77
    %v90 = vmul.f32 %v89, %v88
    %v91 = vmul.f32 0.5, %v90
    %v92 = vsub.f32 1.5, %v91
    %v93 = vmul.f32 %v88, %v92
    %vm94 = vweird.f32 %v77
    %vm95 = vweird.f32 %v88
    %vm96 = vmor %vm94, %vm95
    %v97 = vsel %vm96, %v88, %v93
    %v98 = vmul.f32 %v64, %v87
    %v99 = vmul.f32 %v65, %v97
    %v100 = vperm.slane %v47, 1
    %v101 = vmul.f32 %v98, %v100
    %v102 = vmul.f32 %v99, %v100
    %v103 = vperm.slane %v47, 2
    %v104 = vadd.f32 %v101, %v103
    %v105 = vadd.f32 %v102, %v103
    %v106 = vpack.c.bf16 %v105, %v104
    %v107 = vld [vmem:[%s2] sm:$0xff]
    %v108 = vld [vmem:[%s2 + $0x8] sm:$0xff]
    %v109 = vld [vmem:[%s2 + $0x10] sm:$0xff]
    %v110 = vld [vmem:[%s2 + $0x18] sm:$0xff]
    %v111 = vld [vmem:[%s2 + $0x20] sm:$0xff]
    %v112 = vld [vmem:[%s2 + $0x28] sm:$0xff]
    %v113 = vld [vmem:[%s2 + $0x30] sm:$0xff]
    %v114 = vld [vmem:[%s2 + $0x38] sm:$0xff]
    %v123 = vunpack.c.l.b16 %v107
    %v124 = vunpack.c.h.b16 %v107
    %v125 = vunpack.c.l.b16 %v108
    %v126 = vunpack.c.h.b16 %v108
    %v127 = vunpack.c.l.b16 %v109
    %v128 = vunpack.c.h.b16 %v109
    %v129 = vunpack.c.l.b16 %v110
    %v130 = vunpack.c.h.b16 %v110
    %v131 = vunpack.c.l.b16 %v111
    %v132 = vunpack.c.h.b16 %v111
    %v133 = vunpack.c.l.b16 %v112
    %v134 = vunpack.c.h.b16 %v112
    %v135 = vunpack.c.l.b16 %v113
    %v136 = vunpack.c.h.b16 %v113
    %v137 = vunpack.c.l.b16 %v114
    %v138 = vunpack.c.h.b16 %v114
    %v139 = vpack.c.b16 %v125, %v123
    %v140 = vpack.c.b16 %v126, %v124
    %v141 = vpack.c.b16 %v129, %v127
    %v142 = vpack.c.b16 %v130, %v128
    %v143 = vpack.c.b16 %v133, %v131
    %v144 = vpack.c.b16 %v134, %v132
    %v145 = vpack.c.b16 %v137, %v135
    %v146 = vpack.c.b16 %v138, %v136
    %v156 = vsel %vm48, %v106, 0
    %158 = vmatpush.bf16.msra.mxu0 0
    %159 = vmatpush.bf16.msra.mxu0 0
    %160 = vmatpush.bf16.msra.mxu0 0
    %161 = vmatpush.bf16.msra.mxu0 0
    %162 = vmatpush.bf16.msra.mxu0 %v145
    %163 = vmatpush.bf16.msra.mxu0 %v143
    %164 = vmatpush.bf16.msra.mxu0 %v141
    %165 = vmatpush.bf16.msra.mxu0 %v139
    %166 = vmatmul.bf16.gmra.mxu0 %v156
    %v167 = vpop.f32.mrf.mxu0
    %v168 = vadd.f32 0.0, %v167
    %v169 = vpop.f32.mrf.mxu0
    %v170 = vadd.f32 0.0, %v169
    %171 = vdwg.mxu0
    %172 = vmatpush.bf16.msra.mxu0 0
    %173 = vmatpush.bf16.msra.mxu0 0
    %174 = vmatpush.bf16.msra.mxu0 0
    %175 = vmatpush.bf16.msra.mxu0 0
    %176 = vmatpush.bf16.msra.mxu0 %v146
    %177 = vmatpush.bf16.msra.mxu0 %v144
    %178 = vmatpush.bf16.msra.mxu0 %v142
    %179 = vmatpush.bf16.msra.mxu0 %v140
    %180 = vmatmul.bf16.gmra.mxu0 %v156
    %v181 = vpop.f32.mrf.mxu0
    %v182 = vadd.f32 0.0, %v181
    %v183 = vpop.f32.mrf.mxu0
    %v184 = vadd.f32 0.0, %v183
    %185 = vdwg.mxu0
    %188 = vrot.lane.b32.xlu0 %v168, 112
    %v189 = vpop.permute.xlu0 %188
    %190 = vrot.lane.b32.xlu0 %v170, 112
    %v191 = vpop.permute.xlu0 %190
    %194 = vrot.lane.b32.xlu0 %v168, 96
    %v195 = vpop.permute.xlu0 %194
    %196 = vrot.lane.b32.xlu0 %v170, 96
    %v197 = vpop.permute.xlu0 %196
    %200 = vrot.lane.b32.xlu0 %v168, 80
    %v201 = vpop.permute.xlu0 %200
    %202 = vrot.lane.b32.xlu0 %v170, 80
    %v203 = vpop.permute.xlu0 %202
    %v206 = vpack.c.bf16 %v170, %v168
    %v207 = vpack.c.bf16 %v191, %v189
    %v208 = vpack.c.bf16 %v197, %v195
    %v209 = vpack.c.bf16 %v203, %v201
    %212 = vrot.lane.b32.xlu0 %v182, 112
    %v213 = vpop.permute.xlu0 %212
    %214 = vrot.lane.b32.xlu0 %v184, 112
    %v215 = vpop.permute.xlu0 %214
    %218 = vrot.lane.b32.xlu0 %v182, 96
    %v219 = vpop.permute.xlu0 %218
    %220 = vrot.lane.b32.xlu0 %v184, 96
    %v221 = vpop.permute.xlu0 %220
    %224 = vrot.lane.b32.xlu0 %v182, 80
    %v225 = vpop.permute.xlu0 %224
    %226 = vrot.lane.b32.xlu0 %v184, 80
    %v227 = vpop.permute.xlu0 %226
    %v230 = vpack.c.bf16 %v184, %v182
    %v231 = vpack.c.bf16 %v215, %v213
    %v232 = vpack.c.bf16 %v221, %v219
    %v233 = vpack.c.bf16 %v227, %v225
    %238 = vrot.lane.b32.xlu0 %v206, 64
    %v239 = vpop.permute.xlu0 %238
    %240 = vrot.lane.b32.xlu0 %v207, 64
    %v241 = vpop.permute.xlu0 %240
    %242 = vrot.lane.b32.xlu0 %v208, 64
    %v243 = vpop.permute.xlu0 %242
    %244 = vrot.lane.b32.xlu0 %v209, 64
    %v245 = vpop.permute.xlu0 %244
    %vm246 = vcmask 130048
    %v248 = vsel %vm246, %v206, 0
    %v251 = vsel %vm246, %v207, 0
    %v254 = vsel %vm246, %v208, 0
    %v257 = vsel %vm246, %v209, 0
    %v260 = vsel %vm246, %v239, 0
    %v263 = vsel %vm246, %v241, 0
    %v266 = vsel %vm246, %v243, 0
    %v269 = vsel %vm246, %v245, 0
    %271 = vmatpush.bf16.xpose.msra.mxu0 0
    %272 = vmatpush.bf16.xpose.msra.mxu0 0
    %273 = vmatpush.bf16.xpose.msra.mxu0 0
    %274 = vmatpush.bf16.xpose.msra.mxu0 0
    %275 = vmatpush.bf16.xpose.msra.mxu0 %v269
    %276 = vmatpush.bf16.xpose.msra.mxu0 %v266
    %277 = vmatpush.bf16.xpose.msra.mxu0 %v263
    %278 = vmatpush.bf16.xpose.msra.mxu0 %v260
    %279 = vmatmul.bf16.gmra.mxu0 %v248
    %v280 = vpop.f32.mrf.mxu0
    %v281 = vadd.f32 0.0, %v280
    %v282 = vpop.f32.mrf.mxu0
    %v283 = vadd.f32 0.0, %v282
    %284 = vmatmul.bf16.gmra.mxu0 %v251
    %v285 = vpop.f32.mrf.mxu0
    %v286 = vadd.f32 0.0, %v285
    %v287 = vpop.f32.mrf.mxu0
    %v288 = vadd.f32 0.0, %v287
    %289 = vmatmul.bf16.gmra.mxu0 %v254
    %v290 = vpop.f32.mrf.mxu0
    %v291 = vadd.f32 0.0, %v290
    %v292 = vpop.f32.mrf.mxu0
    %v293 = vadd.f32 0.0, %v292
    %294 = vmatmul.bf16.gmra.mxu0 %v257
    %v295 = vpop.f32.mrf.mxu0
    %v296 = vadd.f32 0.0, %v295
    %v297 = vpop.f32.mrf.mxu0
    %v298 = vadd.f32 0.0, %v297
    %299 = vdwg.mxu0
    %v300 = vmul.f32 %v281, 0.125
    %v301 = vmul.f32 %v283, 0.125
    %v302 = vmul.f32 %v286, 0.125
    %v303 = vmul.f32 %v288, 0.125
    %v304 = vmul.f32 %v291, 0.125
    %v305 = vmul.f32 %v293, 0.125
    %v306 = vmul.f32 %v296, 0.125
    %v307 = vmul.f32 %v298, 0.125
    %v308 = vadd.f32 %v300, %v39
    %v309 = vadd.f32 %v301, %v40
    %v310 = vadd.f32 %v302, %v41
    %v311 = vadd.f32 %v303, %v42
    %v312 = vadd.f32 %v304, %v43
    %v313 = vadd.f32 %v305, %v44
    %v314 = vadd.f32 %v306, %v45
    %v315 = vadd.f32 %v307, %v46
    %v316 = vsel %vm48, %v308, -inf
    %317 = vmax.xlane.f32.xlu0 %v316
    %v318 = vpop.xlane.xlu0 %317
    %v319 = vsel %vm48, %v309, -inf
    %320 = vmax.xlane.f32.xlu0 %v319
    %v321 = vpop.xlane.xlu0 %320
    %v322 = vsel %vm48, %v310, -inf
    %323 = vmax.xlane.f32.xlu0 %v322
    %v324 = vpop.xlane.xlu0 %323
    %v325 = vsel %vm48, %v311, -inf
    %326 = vmax.xlane.f32.xlu0 %v325
    %v327 = vpop.xlane.xlu0 %326
    %v328 = vsel %vm48, %v312, -inf
    %329 = vmax.xlane.f32.xlu0 %v328
    %v330 = vpop.xlane.xlu0 %329
    %v331 = vsel %vm48, %v313, -inf
    %332 = vmax.xlane.f32.xlu0 %v331
    %v333 = vpop.xlane.xlu0 %332
    %v334 = vsel %vm48, %v314, -inf
    %335 = vmax.xlane.f32.xlu0 %v334
    %v336 = vpop.xlane.xlu0 %335
    %v337 = vsel %vm48, %v315, -inf
    %338 = vmax.xlane.f32.xlu0 %v337
    %v339 = vpop.xlane.xlu0 %338
    %v340 = vsub.f32 %v308, %v318
    %v341 = vsub.f32 %v309, %v321
    %v342 = vsub.f32 %v310, %v324
    %v343 = vsub.f32 %v311, %v327
    %v344 = vsub.f32 %v312, %v330
    %v345 = vsub.f32 %v313, %v333
    %v346 = vsub.f32 %v314, %v336
    %v347 = vsub.f32 %v315, %v339
    %v348 = vmul.f32 %v340, 1.442695
    %v349 = vpow.pop %v348
    %v350 = vmul.f32 %v341, 1.442695
    %v351 = vpow.pop %v350
    %v352 = vmul.f32 %v342, 1.442695
    %v353 = vpow.pop %v352
    %v354 = vmul.f32 %v343, 1.442695
    %v355 = vpow.pop %v354
    %v356 = vmul.f32 %v344, 1.442695
    %v357 = vpow.pop %v356
    %v358 = vmul.f32 %v345, 1.442695
    %v359 = vpow.pop %v358
    %v360 = vmul.f32 %v346, 1.442695
    %v361 = vpow.pop %v360
    %v362 = vmul.f32 %v347, 1.442695
    %v363 = vpow.pop %v362
    %v364 = vsel %vm48, %v349, 0.0
    %365 = vadd.xlane.f32.xlu0 %v364
    %v366 = vpop.xlane.xlu0 %365
    %v367 = vsel %vm48, %v351, 0.0
    %368 = vadd.xlane.f32.xlu0 %v367
    %v369 = vpop.xlane.xlu0 %368
    %v370 = vsel %vm48, %v353, 0.0
    %371 = vadd.xlane.f32.xlu0 %v370
    %v372 = vpop.xlane.xlu0 %371
    %v373 = vsel %vm48, %v355, 0.0
    %374 = vadd.xlane.f32.xlu0 %v373
    %v375 = vpop.xlane.xlu0 %374
    %v376 = vsel %vm48, %v357, 0.0
    %377 = vadd.xlane.f32.xlu0 %v376
    %v378 = vpop.xlane.xlu0 %377
    %v379 = vsel %vm48, %v359, 0.0
    %380 = vadd.xlane.f32.xlu0 %v379
    %v381 = vpop.xlane.xlu0 %380
    %v382 = vsel %vm48, %v361, 0.0
    %383 = vadd.xlane.f32.xlu0 %v382
    %v384 = vpop.xlane.xlu0 %383
    %v385 = vsel %vm48, %v363, 0.0
    %386 = vadd.xlane.f32.xlu0 %v385
    %v387 = vpop.xlane.xlu0 %386
    %v388 = vrcp.pop %v366
    %v389 = vrcp.pop %v369
    %v390 = vrcp.pop %v372
    %v391 = vrcp.pop %v375
    %v392 = vrcp.pop %v378
    %v393 = vrcp.pop %v381
    %v394 = vrcp.pop %v384
    %v395 = vrcp.pop %v387
    %v396 = vmul.f32 %v349, %v388
    %v397 = vmul.f32 %v351, %v389
    %v398 = vmul.f32 %v353, %v390
    %v399 = vmul.f32 %v355, %v391
    %v400 = vmul.f32 %v357, %v392
    %v401 = vmul.f32 %v359, %v393
    %v402 = vmul.f32 %v361, %v394
    %v403 = vmul.f32 %v363, %v395
    %v404 = vpack.c.bf16 %v397, %v396
    %v405 = vpack.c.bf16 %v399, %v398
    %v406 = vpack.c.bf16 %v401, %v400
    %v407 = vpack.c.bf16 %v403, %v402
    %v409 = vsel %vm48, %v404, 0
    %v412 = vsel %vm48, %v405, 0
    %v415 = vsel %vm48, %v406, 0
    %v418 = vsel %vm48, %v407, 0
    %420 = vmatpush.bf16.msra.mxu0 0
    %421 = vmatpush.bf16.msra.mxu0 0
    %422 = vmatpush.bf16.msra.mxu0 0
    %423 = vmatpush.bf16.msra.mxu0 0
    %424 = vmatpush.bf16.msra.mxu0 %v233
    %425 = vmatpush.bf16.msra.mxu0 %v232
    %426 = vmatpush.bf16.msra.mxu0 %v231
    %427 = vmatpush.bf16.msra.mxu0 %v230
    %428 = vmatmul.bf16.gmra.mxu0 %v409
    %v429 = vpop.f32.mrf.mxu0
    %v430 = vadd.f32 0.0, %v429
    %v431 = vpop.f32.mrf.mxu0
    %v432 = vadd.f32 0.0, %v431
    %433 = vmatmul.bf16.gmra.mxu0 %v412
    %v434 = vpop.f32.mrf.mxu0
    %v435 = vadd.f32 0.0, %v434
    %v436 = vpop.f32.mrf.mxu0
    %v437 = vadd.f32 0.0, %v436
    %438 = vmatmul.bf16.gmra.mxu0 %v415
    %v439 = vpop.f32.mrf.mxu0
    %v440 = vadd.f32 0.0, %v439
    %v441 = vpop.f32.mrf.mxu0
    %v442 = vadd.f32 0.0, %v441
    %443 = vmatmul.bf16.gmra.mxu0 %v418
    %v444 = vpop.f32.mrf.mxu0
    %v445 = vadd.f32 0.0, %v444
    %v446 = vpop.f32.mrf.mxu0
    %v447 = vadd.f32 0.0, %v446
    %448 = vdwg.mxu0
    %451 = vrot.lane.b32.xlu0 %v435, 16
    %v452 = vpop.permute.xlu0 %451
    %453 = vrot.lane.b32.xlu0 %v437, 16
    %v454 = vpop.permute.xlu0 %453
    %459 = vrot.lane.b32.xlu0 %v440, 32
    %v460 = vpop.permute.xlu0 %459
    %461 = vrot.lane.b32.xlu0 %v442, 32
    %v462 = vpop.permute.xlu0 %461
    %467 = vrot.lane.b32.xlu0 %v445, 48
    %v468 = vpop.permute.xlu0 %467
    %469 = vrot.lane.b32.xlu0 %v447, 48
    %v470 = vpop.permute.xlu0 %469
    %v473 = vsel %vm246, %v430, %v452
    %v474 = vsel %vm246, %v432, %v454
    %vm475 = vcmask 261120
    %v476 = vsel %vm475, %v473, %v460
    %v477 = vsel %vm475, %v474, %v462
    %vm478 = vcmask 392192
    %v479 = vsel %vm478, %v476, %v468
    %v480 = vsel %vm478, %v477, %v470
    %v481 = vpack.c.bf16 %v480, %v479
    %v482 = vld [vmem:[%s3] sm:$0xf]
    %v483 = vld [vmem:[%s3 + $0x4] sm:$0xf]
    %v484 = vld [vmem:[%s3 + $0x8] sm:$0xf]
    %v485 = vld [vmem:[%s3 + $0xc] sm:$0xf]
    %v486 = vld [vmem:[%s3 + $0x10] sm:$0xf]
    %v487 = vld [vmem:[%s3 + $0x14] sm:$0xf]
    %v488 = vld [vmem:[%s3 + $0x18] sm:$0xf]
    %v489 = vld [vmem:[%s3 + $0x1c] sm:$0xf]
    %v490 = vperm.slane %v47, 0
    %v499 = vunpack.c.l.b16 %v482
    %v500 = vunpack.c.l.b16 %v483
    %v501 = vunpack.c.l.b16 %v484
    %v502 = vunpack.c.l.b16 %v485
    %v503 = vunpack.c.l.b16 %v486
    %v504 = vunpack.c.l.b16 %v487
    %v505 = vunpack.c.l.b16 %v488
    %v506 = vunpack.c.l.b16 %v489
    %v507 = vpack.c.b16 %v500, %v499
    %v508 = vpack.c.b16 %v502, %v501
    %v509 = vpack.c.b16 %v504, %v503
    %v510 = vpack.c.b16 %v506, %v505
    %v516 = vsel %vm48, %v481, 0
    %518 = vmatpush.bf16.msra.mxu0 0
    %519 = vmatpush.bf16.msra.mxu0 0
    %520 = vmatpush.bf16.msra.mxu0 0
    %521 = vmatpush.bf16.msra.mxu0 0
    %522 = vmatpush.bf16.msra.mxu0 %v510
    %523 = vmatpush.bf16.msra.mxu0 %v509
    %524 = vmatpush.bf16.msra.mxu0 %v508
    %525 = vmatpush.bf16.msra.mxu0 %v507
    %526 = vmatmul.bf16.gmra.mxu0 %v516
    %v527 = vpop.f32.mrf.mxu0
    %v528 = vadd.f32 %v490, %v527
    %v529 = vpop.f32.mrf.mxu0
    %v530 = vadd.f32 %v490, %v529
    %531 = vdwg.mxu0
    %v532 = vadd.f32 %v37, %v528
    %v533 = vadd.f32 %v38, %v530
    %v534 = vsel %vm48, %v532, 0.0
    %535 = vadd.xlane.f32.xlu0 %v534
    %v536 = vpop.xlane.xlu0 %535
    %v537 = vsel %vm48, %v533, 0.0
    %538 = vadd.xlane.f32.xlu0 %v537
    %v539 = vpop.xlane.xlu0 %538
    %v540 = vmul.f32 %v536, %v61
    %v541 = vmul.f32 %v539, %v61
    %v542 = vsub.f32 %v532, %v540
    %v543 = vsub.f32 %v533, %v541
    %v544 = vmul.f32 %v542, %v542
    %v545 = vmul.f32 %v543, %v543
    %v546 = vsel %vm48, %v544, 0.0
    %547 = vadd.xlane.f32.xlu0 %v546
    %v548 = vpop.xlane.xlu0 %547
    %v549 = vsel %vm48, %v545, 0.0
    %550 = vadd.xlane.f32.xlu0 %v549
    %v551 = vpop.xlane.xlu0 %550
    %v552 = vmul.f32 %v548, %v61
    %v553 = vmul.f32 %v551, %v61
    %v554 = vadd.f32 %v552, 1e-05
    %v555 = vadd.f32 %v553, 1e-05
    %v556 = vrsqrt.pop %v554
    %v557 = vmul.f32 %v556, %v554
    %v558 = vmul.f32 %v557, %v556
    %v559 = vmul.f32 0.5, %v558
    %v560 = vsub.f32 1.5, %v559
    %v561 = vmul.f32 %v556, %v560
    %vm562 = vweird.f32 %v554
    %vm563 = vweird.f32 %v556
    %vm564 = vmor %vm562, %vm563
    %v565 = vsel %vm564, %v556, %v561
    %v566 = vrsqrt.pop %v555
    %v567 = vmul.f32 %v566, %v555
    %v568 = vmul.f32 %v567, %v566
    %v569 = vmul.f32 0.5, %v568
    %v570 = vsub.f32 1.5, %v569
    %v571 = vmul.f32 %v566, %v570
    %vm572 = vweird.f32 %v555
    %vm573 = vweird.f32 %v566
    %vm574 = vmor %vm572, %vm573
    %v575 = vsel %vm574, %v566, %v571
    %v576 = vmul.f32 %v542, %v565
    %v577 = vmul.f32 %v543, %v575
    %v578 = vperm.slane %v47, 3
    %v579 = vmul.f32 %v576, %v578
    %v580 = vmul.f32 %v577, %v578
    %v581 = vperm.slane %v47, 4
    %v582 = vadd.f32 %v579, %v581
    %v583 = vadd.f32 %v580, %v581
    %v584 = vpack.c.bf16 %v583, %v582
    %v585 = vld [vmem:[%s5] sm:$0xff]
    %v586 = vld [vmem:[%s5 + $0x8] sm:$0xff]
    %v587 = vld [vmem:[%s5 + $0x10] sm:$0xff]
    %v588 = vld [vmem:[%s5 + $0x18] sm:$0xff]
    %v589 = vld [vmem:[%s5 + $0x20] sm:$0xff]
    %v590 = vld [vmem:[%s5 + $0x28] sm:$0xff]
    %v591 = vld [vmem:[%s5 + $0x30] sm:$0xff]
    %v592 = vld [vmem:[%s5 + $0x38] sm:$0xff]
    %v593 = vld [vmem:[%s6] sm:$0x3]
    %v595 = vperm.slane %v593, 0
    %v596 = vperm.slane %v593, 1
    %v607 = vunpack.c.l.b16 %v585
    %v608 = vunpack.c.h.b16 %v585
    %v609 = vunpack.c.l.b16 %v586
    %v610 = vunpack.c.h.b16 %v586
    %v611 = vunpack.c.l.b16 %v587
    %v612 = vunpack.c.h.b16 %v587
    %v613 = vunpack.c.l.b16 %v588
    %v614 = vunpack.c.h.b16 %v588
    %v615 = vunpack.c.l.b16 %v589
    %v616 = vunpack.c.h.b16 %v589
    %v617 = vunpack.c.l.b16 %v590
    %v618 = vunpack.c.h.b16 %v590
    %v619 = vunpack.c.l.b16 %v591
    %v620 = vunpack.c.h.b16 %v591
    %v621 = vunpack.c.l.b16 %v592
    %v622 = vunpack.c.h.b16 %v592
    %v623 = vpack.c.b16 %v609, %v607
    %v624 = vpack.c.b16 %v610, %v608
    %v625 = vpack.c.b16 %v613, %v611
    %v626 = vpack.c.b16 %v614, %v612
    %v627 = vpack.c.b16 %v617, %v615
    %v628 = vpack.c.b16 %v618, %v616
    %v629 = vpack.c.b16 %v621, %v619
    %v630 = vpack.c.b16 %v622, %v620
    %v640 = vsel %vm48, %v584, 0
    %642 = vmatpush.bf16.msra.mxu0 0
    %643 = vmatpush.bf16.msra.mxu0 0
    %644 = vmatpush.bf16.msra.mxu0 0
    %645 = vmatpush.bf16.msra.mxu0 0
    %646 = vmatpush.bf16.msra.mxu0 %v629
    %647 = vmatpush.bf16.msra.mxu0 %v627
    %648 = vmatpush.bf16.msra.mxu0 %v625
    %649 = vmatpush.bf16.msra.mxu0 %v623
    %650 = vmatmul.bf16.gmra.mxu0 %v640
    %v651 = vpop.f32.mrf.mxu0
    %v652 = vadd.f32 %v595, %v651
    %v653 = vpop.f32.mrf.mxu0
    %v654 = vadd.f32 %v595, %v653
    %655 = vdwg.mxu0
    %656 = vmatpush.bf16.msra.mxu0 0
    %657 = vmatpush.bf16.msra.mxu0 0
    %658 = vmatpush.bf16.msra.mxu0 0
    %659 = vmatpush.bf16.msra.mxu0 0
    %660 = vmatpush.bf16.msra.mxu0 %v630
    %661 = vmatpush.bf16.msra.mxu0 %v628
    %662 = vmatpush.bf16.msra.mxu0 %v626
    %663 = vmatpush.bf16.msra.mxu0 %v624
    %664 = vmatmul.bf16.gmra.mxu0 %v640
    %v665 = vpop.f32.mrf.mxu0
    %v666 = vadd.f32 %v596, %v665
    %v667 = vpop.f32.mrf.mxu0
    %v668 = vadd.f32 %v596, %v667
    %669 = vdwg.mxu0
    %v670 = vmax.f32 %v652, 0.0
    %v671 = vmax.f32 %v666, 0.0
    %v672 = vmax.f32 %v654, 0.0
    %v673 = vmax.f32 %v668, 0.0
    %v674 = vpack.c.bf16 %v672, %v670
    %v675 = vpack.c.bf16 %v673, %v671
    %v676 = vld [vmem:[%s7] sm:$0xf]
    %v677 = vld [vmem:[%s7 + $0x4] sm:$0xf]
    %v678 = vld [vmem:[%s7 + $0x8] sm:$0xf]
    %v679 = vld [vmem:[%s7 + $0xc] sm:$0xf]
    %v680 = vld [vmem:[%s7 + $0x10] sm:$0xf]
    %v681 = vld [vmem:[%s7 + $0x14] sm:$0xf]
    %v682 = vld [vmem:[%s7 + $0x18] sm:$0xf]
    %v683 = vld [vmem:[%s7 + $0x1c] sm:$0xf]
    %v684 = vld [vmem:[%s7 + $0x20] sm:$0xf]
    %v685 = vld [vmem:[%s7 + $0x24] sm:$0xf]
    %v686 = vld [vmem:[%s7 + $0x28] sm:$0xf]
    %v687 = vld [vmem:[%s7 + $0x2c] sm:$0xf]
    %v688 = vld [vmem:[%s7 + $0x30] sm:$0xf]
    %v689 = vld [vmem:[%s7 + $0x34] sm:$0xf]
    %v690 = vld [vmem:[%s7 + $0x38] sm:$0xf]
    %v691 = vld [vmem:[%s7 + $0x3c] sm:$0xf]
    %v692 = vld [vmem:[%s7 + $0x40] sm:$0xf]
    %v693 = vld [vmem:[%s7 + $0x44] sm:$0xf]
    %v694 = vld [vmem:[%s7 + $0x48] sm:$0xf]
    %v695 = vld [vmem:[%s7 + $0x4c] sm:$0xf]
    %v696 = vld [vmem:[%s7 + $0x50] sm:$0xf]
    %v697 = vld [vmem:[%s7 + $0x54] sm:$0xf]
    %v698 = vld [vmem:[%s7 + $0x58] sm:$0xf]
    %v699 = vld [vmem:[%s7 + $0x5c] sm:$0xf]
    %v700 = vld [vmem:[%s7 + $0x60] sm:$0xf]
    %v701 = vld [vmem:[%s7 + $0x64] sm:$0xf]
    %v702 = vld [vmem:[%s7 + $0x68] sm:$0xf]
    %v703 = vld [vmem:[%s7 + $0x6c] sm:$0xf]
    %v704 = vld [vmem:[%s7 + $0x70] sm:$0xf]
    %v705 = vld [vmem:[%s7 + $0x74] sm:$0xf]
    %v706 = vld [vmem:[%s7 + $0x78] sm:$0xf]
    %v707 = vld [vmem:[%s7 + $0x7c] sm:$0xf]
    %v708 = vperm.slane %v47, 5
    %v741 = vunpack.c.l.b16 %v676
    %v742 = vunpack.c.l.b16 %v677
    %v743 = vunpack.c.l.b16 %v678
    %v744 = vunpack.c.l.b16 %v679
    %v745 = vunpack.c.l.b16 %v680
    %v746 = vunpack.c.l.b16 %v681
    %v747 = vunpack.c.l.b16 %v682
    %v748 = vunpack.c.l.b16 %v683
    %v749 = vunpack.c.l.b16 %v684
    %v750 = vunpack.c.l.b16 %v685
    %v751 = vunpack.c.l.b16 %v686
    %v752 = vunpack.c.l.b16 %v687
    %v753 = vunpack.c.l.b16 %v688
    %v754 = vunpack.c.l.b16 %v689
    %v755 = vunpack.c.l.b16 %v690
    %v756 = vunpack.c.l.b16 %v691
    %v757 = vunpack.c.l.b16 %v692
    %v758 = vunpack.c.l.b16 %v693
    %v759 = vunpack.c.l.b16 %v694
    %v760 = vunpack.c.l.b16 %v695
    %v761 = vunpack.c.l.b16 %v696
    %v762 = vunpack.c.l.b16 %v697
    %v763 = vunpack.c.l.b16 %v698
    %v764 = vunpack.c.l.b16 %v699
    %v765 = vunpack.c.l.b16 %v700
    %v766 = vunpack.c.l.b16 %v701
    %v767 = vunpack.c.l.b16 %v702
    %v768 = vunpack.c.l.b16 %v703
    %v769 = vunpack.c.l.b16 %v704
    %v770 = vunpack.c.l.b16 %v705
    %v771 = vunpack.c.l.b16 %v706
    %v772 = vunpack.c.l.b16 %v707
    %v773 = vpack.c.b16 %v742, %v741
    %v774 = vpack.c.b16 %v744, %v743
    %v775 = vpack.c.b16 %v746, %v745
    %v776 = vpack.c.b16 %v748, %v747
    %v777 = vpack.c.b16 %v750, %v749
    %v778 = vpack.c.b16 %v752, %v751
    %v779 = vpack.c.b16 %v754, %v753
    %v780 = vpack.c.b16 %v756, %v755
    %v781 = vpack.c.b16 %v758, %v757
    %v782 = vpack.c.b16 %v760, %v759
    %v783 = vpack.c.b16 %v762, %v761
    %v784 = vpack.c.b16 %v764, %v763
    %v785 = vpack.c.b16 %v766, %v765
    %v786 = vpack.c.b16 %v768, %v767
    %v787 = vpack.c.b16 %v770, %v769
    %v788 = vpack.c.b16 %v772, %v771
    %805 = vmatpush.bf16.msra.mxu0 %v780
    %806 = vmatpush.bf16.msra.mxu0 %v779
    %807 = vmatpush.bf16.msra.mxu0 %v778
    %808 = vmatpush.bf16.msra.mxu0 %v777
    %809 = vmatpush.bf16.msra.mxu0 %v776
    %810 = vmatpush.bf16.msra.mxu0 %v775
    %811 = vmatpush.bf16.msra.mxu0 %v774
    %812 = vmatpush.bf16.msra.mxu0 %v773
    %813 = vmatmul.bf16.gmra.mxu0 %v674
    %v814 = vpop.f32.mrf.mxu0
    %v815 = vadd.f32 %v708, %v814
    %v816 = vpop.f32.mrf.mxu0
    %v817 = vadd.f32 %v708, %v816
    %818 = vdwg.mxu0
    %819 = vmatpush.bf16.msra.mxu0 %v788
    %820 = vmatpush.bf16.msra.mxu0 %v787
    %821 = vmatpush.bf16.msra.mxu0 %v786
    %822 = vmatpush.bf16.msra.mxu0 %v785
    %823 = vmatpush.bf16.msra.mxu0 %v784
    %824 = vmatpush.bf16.msra.mxu0 %v783
    %825 = vmatpush.bf16.msra.mxu0 %v782
    %826 = vmatpush.bf16.msra.mxu0 %v781
    %827 = vmatmul.bf16.gmra.mxu0 %v675
    %v828 = vpop.f32.mrf.mxu0
    %v829 = vadd.f32 %v815, %v828
    %v830 = vpop.f32.mrf.mxu0
    %v831 = vadd.f32 %v817, %v830
    %832 = vdwg.mxu0
    %v833 = vadd.f32 %v532, %v829
    %v834 = vadd.f32 %v533, %v831
    %s835 = scalar_lea.vmem %s4, 8
    %v836 = vld [vmem:[%s835] sm:$0x3f]
    %v837 = vsel %vm48, %v833, 0.0
    %838 = vadd.xlane.f32.xlu0 %v837
    %v839 = vpop.xlane.xlu0 %838
    %v840 = vsel %vm48, %v834, 0.0
    %841 = vadd.xlane.f32.xlu0 %v840
    %v842 = vpop.xlane.xlu0 %841
    %v843 = vmul.f32 %v839, %v61
    %v844 = vmul.f32 %v842, %v61
    %v845 = vsub.f32 %v833, %v843
    %v846 = vsub.f32 %v834, %v844
    %v847 = vmul.f32 %v845, %v845
    %v848 = vmul.f32 %v846, %v846
    %v849 = vsel %vm48, %v847, 0.0
    %850 = vadd.xlane.f32.xlu0 %v849
    %v851 = vpop.xlane.xlu0 %850
    %v852 = vsel %vm48, %v848, 0.0
    %853 = vadd.xlane.f32.xlu0 %v852
    %v854 = vpop.xlane.xlu0 %853
    %v855 = vmul.f32 %v851, %v61
    %v856 = vmul.f32 %v854, %v61
    %v857 = vadd.f32 %v855, 1e-05
    %v858 = vadd.f32 %v856, 1e-05
    %v859 = vrsqrt.pop %v857
    %v860 = vmul.f32 %v859, %v857
    %v861 = vmul.f32 %v860, %v859
    %v862 = vmul.f32 0.5, %v861
    %v863 = vsub.f32 1.5, %v862
    %v864 = vmul.f32 %v859, %v863
    %vm865 = vweird.f32 %v857
    %vm866 = vweird.f32 %v859
    %vm867 = vmor %vm865, %vm866
    %v868 = vsel %vm867, %v859, %v864
    %v869 = vrsqrt.pop %v858
    %v870 = vmul.f32 %v869, %v858
    %v871 = vmul.f32 %v870, %v869
    %v872 = vmul.f32 0.5, %v871
    %v873 = vsub.f32 1.5, %v872
    %v874 = vmul.f32 %v869, %v873
    %vm875 = vweird.f32 %v858
    %vm876 = vweird.f32 %v869
    %vm877 = vmor %vm875, %vm876
    %v878 = vsel %vm877, %v869, %v874
    %v879 = vmul.f32 %v845, %v868
    %v880 = vmul.f32 %v846, %v878
    %v881 = vperm.slane %v836, 1
    %v882 = vmul.f32 %v879, %v881
    %v883 = vmul.f32 %v880, %v881
    %v884 = vperm.slane %v836, 2
    %v885 = vadd.f32 %v882, %v884
    %v886 = vadd.f32 %v883, %v884
    %v887 = vpack.c.bf16 %v886, %v885
    %s888 = scalar_lea.vmem %s2, 64
    %v889 = vld [vmem:[%s888] sm:$0xff]
    %v890 = vld [vmem:[%s888 + $0x8] sm:$0xff]
    %v891 = vld [vmem:[%s888 + $0x10] sm:$0xff]
    %v892 = vld [vmem:[%s888 + $0x18] sm:$0xff]
    %v893 = vld [vmem:[%s888 + $0x20] sm:$0xff]
    %v894 = vld [vmem:[%s888 + $0x28] sm:$0xff]
    %v895 = vld [vmem:[%s888 + $0x30] sm:$0xff]
    %v896 = vld [vmem:[%s888 + $0x38] sm:$0xff]
    %v905 = vunpack.c.l.b16 %v889
    %v906 = vunpack.c.h.b16 %v889
    %v907 = vunpack.c.l.b16 %v890
    %v908 = vunpack.c.h.b16 %v890
    %v909 = vunpack.c.l.b16 %v891
    %v910 = vunpack.c.h.b16 %v891
    %v911 = vunpack.c.l.b16 %v892
    %v912 = vunpack.c.h.b16 %v892
    %v913 = vunpack.c.l.b16 %v893
    %v914 = vunpack.c.h.b16 %v893
    %v915 = vunpack.c.l.b16 %v894
    %v916 = vunpack.c.h.b16 %v894
    %v917 = vunpack.c.l.b16 %v895
    %v918 = vunpack.c.h.b16 %v895
    %v919 = vunpack.c.l.b16 %v896
    %v920 = vunpack.c.h.b16 %v896
    %v921 = vpack.c.b16 %v907, %v905
    %v922 = vpack.c.b16 %v908, %v906
    %v923 = vpack.c.b16 %v911, %v909
    %v924 = vpack.c.b16 %v912, %v910
    %v925 = vpack.c.b16 %v915, %v913
    %v926 = vpack.c.b16 %v916, %v914
    %v927 = vpack.c.b16 %v919, %v917
    %v928 = vpack.c.b16 %v920, %v918
    %v938 = vsel %vm48, %v887, 0
    %940 = vmatpush.bf16.msra.mxu0 0
    %941 = vmatpush.bf16.msra.mxu0 0
    %942 = vmatpush.bf16.msra.mxu0 0
    %943 = vmatpush.bf16.msra.mxu0 0
    %944 = vmatpush.bf16.msra.mxu0 %v927
    %945 = vmatpush.bf16.msra.mxu0 %v925
    %946 = vmatpush.bf16.msra.mxu0 %v923
    %947 = vmatpush.bf16.msra.mxu0 %v921
    %948 = vmatmul.bf16.gmra.mxu0 %v938
    %v949 = vpop.f32.mrf.mxu0
    %v950 = vadd.f32 0.0, %v949
    %v951 = vpop.f32.mrf.mxu0
    %v952 = vadd.f32 0.0, %v951
    %953 = vdwg.mxu0
    %954 = vmatpush.bf16.msra.mxu0 0
    %955 = vmatpush.bf16.msra.mxu0 0
    %956 = vmatpush.bf16.msra.mxu0 0
    %957 = vmatpush.bf16.msra.mxu0 0
    %958 = vmatpush.bf16.msra.mxu0 %v928
    %959 = vmatpush.bf16.msra.mxu0 %v926
    %960 = vmatpush.bf16.msra.mxu0 %v924
    %961 = vmatpush.bf16.msra.mxu0 %v922
    %962 = vmatmul.bf16.gmra.mxu0 %v938
    %v963 = vpop.f32.mrf.mxu0
    %v964 = vadd.f32 0.0, %v963
    %v965 = vpop.f32.mrf.mxu0
    %v966 = vadd.f32 0.0, %v965
    %967 = vdwg.mxu0
    %970 = vrot.lane.b32.xlu0 %v950, 112
    %v971 = vpop.permute.xlu0 %970
    %972 = vrot.lane.b32.xlu0 %v952, 112
    %v973 = vpop.permute.xlu0 %972
    %976 = vrot.lane.b32.xlu0 %v950, 96
    %v977 = vpop.permute.xlu0 %976
    %978 = vrot.lane.b32.xlu0 %v952, 96
    %v979 = vpop.permute.xlu0 %978
    %982 = vrot.lane.b32.xlu0 %v950, 80
    %v983 = vpop.permute.xlu0 %982
    %984 = vrot.lane.b32.xlu0 %v952, 80
    %v985 = vpop.permute.xlu0 %984
    %v988 = vpack.c.bf16 %v952, %v950
    %v989 = vpack.c.bf16 %v973, %v971
    %v990 = vpack.c.bf16 %v979, %v977
    %v991 = vpack.c.bf16 %v985, %v983
    %994 = vrot.lane.b32.xlu0 %v964, 112
    %v995 = vpop.permute.xlu0 %994
    %996 = vrot.lane.b32.xlu0 %v966, 112
    %v997 = vpop.permute.xlu0 %996
    %1000 = vrot.lane.b32.xlu0 %v964, 96
    %v1001 = vpop.permute.xlu0 %1000
    %1002 = vrot.lane.b32.xlu0 %v966, 96
    %v1003 = vpop.permute.xlu0 %1002
    %1006 = vrot.lane.b32.xlu0 %v964, 80
    %v1007 = vpop.permute.xlu0 %1006
    %1008 = vrot.lane.b32.xlu0 %v966, 80
    %v1009 = vpop.permute.xlu0 %1008
    %v1012 = vpack.c.bf16 %v966, %v964
    %v1013 = vpack.c.bf16 %v997, %v995
    %v1014 = vpack.c.bf16 %v1003, %v1001
    %v1015 = vpack.c.bf16 %v1009, %v1007
    %1020 = vrot.lane.b32.xlu0 %v988, 64
    %v1021 = vpop.permute.xlu0 %1020
    %1022 = vrot.lane.b32.xlu0 %v989, 64
    %v1023 = vpop.permute.xlu0 %1022
    %1024 = vrot.lane.b32.xlu0 %v990, 64
    %v1025 = vpop.permute.xlu0 %1024
    %1026 = vrot.lane.b32.xlu0 %v991, 64
    %v1027 = vpop.permute.xlu0 %1026
    %v1029 = vsel %vm246, %v988, 0
    %v1032 = vsel %vm246, %v989, 0
    %v1035 = vsel %vm246, %v990, 0
    %v1038 = vsel %vm246, %v991, 0
    %v1041 = vsel %vm246, %v1021, 0
    %v1044 = vsel %vm246, %v1023, 0
    %v1047 = vsel %vm246, %v1025, 0
    %v1050 = vsel %vm246, %v1027, 0
    %1052 = vmatpush.bf16.xpose.msra.mxu0 0
    %1053 = vmatpush.bf16.xpose.msra.mxu0 0
    %1054 = vmatpush.bf16.xpose.msra.mxu0 0
    %1055 = vmatpush.bf16.xpose.msra.mxu0 0
    %1056 = vmatpush.bf16.xpose.msra.mxu0 %v1050
    %1057 = vmatpush.bf16.xpose.msra.mxu0 %v1047
    %1058 = vmatpush.bf16.xpose.msra.mxu0 %v1044
    %1059 = vmatpush.bf16.xpose.msra.mxu0 %v1041
    %1060 = vmatmul.bf16.gmra.mxu0 %v1029
    %v1061 = vpop.f32.mrf.mxu0
    %v1062 = vadd.f32 0.0, %v1061
    %v1063 = vpop.f32.mrf.mxu0
    %v1064 = vadd.f32 0.0, %v1063
    %1065 = vmatmul.bf16.gmra.mxu0 %v1032
    %v1066 = vpop.f32.mrf.mxu0
    %v1067 = vadd.f32 0.0, %v1066
    %v1068 = vpop.f32.mrf.mxu0
    %v1069 = vadd.f32 0.0, %v1068
    %1070 = vmatmul.bf16.gmra.mxu0 %v1035
    %v1071 = vpop.f32.mrf.mxu0
    %v1072 = vadd.f32 0.0, %v1071
    %v1073 = vpop.f32.mrf.mxu0
    %v1074 = vadd.f32 0.0, %v1073
    %1075 = vmatmul.bf16.gmra.mxu0 %v1038
    %v1076 = vpop.f32.mrf.mxu0
    %v1077 = vadd.f32 0.0, %v1076
    %v1078 = vpop.f32.mrf.mxu0
    %v1079 = vadd.f32 0.0, %v1078
    %1080 = vdwg.mxu0
    %v1081 = vmul.f32 %v1062, 0.125
    %v1082 = vmul.f32 %v1064, 0.125
    %v1083 = vmul.f32 %v1067, 0.125
    %v1084 = vmul.f32 %v1069, 0.125
    %v1085 = vmul.f32 %v1072, 0.125
    %v1086 = vmul.f32 %v1074, 0.125
    %v1087 = vmul.f32 %v1077, 0.125
    %v1088 = vmul.f32 %v1079, 0.125
    %v1089 = vadd.f32 %v1081, %v39
    %v1090 = vadd.f32 %v1082, %v40
    %v1091 = vadd.f32 %v1083, %v41
    %v1092 = vadd.f32 %v1084, %v42
    %v1093 = vadd.f32 %v1085, %v43
    %v1094 = vadd.f32 %v1086, %v44
    %v1095 = vadd.f32 %v1087, %v45
    %v1096 = vadd.f32 %v1088, %v46
    %v1097 = vsel %vm48, %v1089, -inf
    %1098 = vmax.xlane.f32.xlu0 %v1097
    %v1099 = vpop.xlane.xlu0 %1098
    %v1100 = vsel %vm48, %v1090, -inf
    %1101 = vmax.xlane.f32.xlu0 %v1100
    %v1102 = vpop.xlane.xlu0 %1101
    %v1103 = vsel %vm48, %v1091, -inf
    %1104 = vmax.xlane.f32.xlu0 %v1103
    %v1105 = vpop.xlane.xlu0 %1104
    %v1106 = vsel %vm48, %v1092, -inf
    %1107 = vmax.xlane.f32.xlu0 %v1106
    %v1108 = vpop.xlane.xlu0 %1107
    %v1109 = vsel %vm48, %v1093, -inf
    %1110 = vmax.xlane.f32.xlu0 %v1109
    %v1111 = vpop.xlane.xlu0 %1110
    %v1112 = vsel %vm48, %v1094, -inf
    %1113 = vmax.xlane.f32.xlu0 %v1112
    %v1114 = vpop.xlane.xlu0 %1113
    %v1115 = vsel %vm48, %v1095, -inf
    %1116 = vmax.xlane.f32.xlu0 %v1115
    %v1117 = vpop.xlane.xlu0 %1116
    %v1118 = vsel %vm48, %v1096, -inf
    %1119 = vmax.xlane.f32.xlu0 %v1118
    %v1120 = vpop.xlane.xlu0 %1119
    %v1121 = vsub.f32 %v1089, %v1099
    %v1122 = vsub.f32 %v1090, %v1102
    %v1123 = vsub.f32 %v1091, %v1105
    %v1124 = vsub.f32 %v1092, %v1108
    %v1125 = vsub.f32 %v1093, %v1111
    %v1126 = vsub.f32 %v1094, %v1114
    %v1127 = vsub.f32 %v1095, %v1117
    %v1128 = vsub.f32 %v1096, %v1120
    %v1129 = vmul.f32 %v1121, 1.442695
    %v1130 = vpow.pop %v1129
    %v1131 = vmul.f32 %v1122, 1.442695
    %v1132 = vpow.pop %v1131
    %v1133 = vmul.f32 %v1123, 1.442695
    %v1134 = vpow.pop %v1133
    %v1135 = vmul.f32 %v1124, 1.442695
    %v1136 = vpow.pop %v1135
    %v1137 = vmul.f32 %v1125, 1.442695
    %v1138 = vpow.pop %v1137
    %v1139 = vmul.f32 %v1126, 1.442695
    %v1140 = vpow.pop %v1139
    %v1141 = vmul.f32 %v1127, 1.442695
    %v1142 = vpow.pop %v1141
    %v1143 = vmul.f32 %v1128, 1.442695
    %v1144 = vpow.pop %v1143
    %v1145 = vsel %vm48, %v1130, 0.0
    %1146 = vadd.xlane.f32.xlu0 %v1145
    %v1147 = vpop.xlane.xlu0 %1146
    %v1148 = vsel %vm48, %v1132, 0.0
    %1149 = vadd.xlane.f32.xlu0 %v1148
    %v1150 = vpop.xlane.xlu0 %1149
    %v1151 = vsel %vm48, %v1134, 0.0
    %1152 = vadd.xlane.f32.xlu0 %v1151
    %v1153 = vpop.xlane.xlu0 %1152
    %v1154 = vsel %vm48, %v1136, 0.0
    %1155 = vadd.xlane.f32.xlu0 %v1154
    %v1156 = vpop.xlane.xlu0 %1155
    %v1157 = vsel %vm48, %v1138, 0.0
    %1158 = vadd.xlane.f32.xlu0 %v1157
    %v1159 = vpop.xlane.xlu0 %1158
    %v1160 = vsel %vm48, %v1140, 0.0
    %1161 = vadd.xlane.f32.xlu0 %v1160
    %v1162 = vpop.xlane.xlu0 %1161
    %v1163 = vsel %vm48, %v1142, 0.0
    %1164 = vadd.xlane.f32.xlu0 %v1163
    %v1165 = vpop.xlane.xlu0 %1164
    %v1166 = vsel %vm48, %v1144, 0.0
    %1167 = vadd.xlane.f32.xlu0 %v1166
    %v1168 = vpop.xlane.xlu0 %1167
    %v1169 = vrcp.pop %v1147
    %v1170 = vrcp.pop %v1150
    %v1171 = vrcp.pop %v1153
    %v1172 = vrcp.pop %v1156
    %v1173 = vrcp.pop %v1159
    %v1174 = vrcp.pop %v1162
    %v1175 = vrcp.pop %v1165
    %v1176 = vrcp.pop %v1168
    %v1177 = vmul.f32 %v1130, %v1169
    %v1178 = vmul.f32 %v1132, %v1170
    %v1179 = vmul.f32 %v1134, %v1171
    %v1180 = vmul.f32 %v1136, %v1172
    %v1181 = vmul.f32 %v1138, %v1173
    %v1182 = vmul.f32 %v1140, %v1174
    %v1183 = vmul.f32 %v1142, %v1175
    %v1184 = vmul.f32 %v1144, %v1176
    %v1185 = vpack.c.bf16 %v1178, %v1177
    %v1186 = vpack.c.bf16 %v1180, %v1179
    %v1187 = vpack.c.bf16 %v1182, %v1181
    %v1188 = vpack.c.bf16 %v1184, %v1183
    %v1190 = vsel %vm48, %v1185, 0
    %v1193 = vsel %vm48, %v1186, 0
    %v1196 = vsel %vm48, %v1187, 0
    %v1199 = vsel %vm48, %v1188, 0
    %1201 = vmatpush.bf16.msra.mxu0 0
    %1202 = vmatpush.bf16.msra.mxu0 0
    %1203 = vmatpush.bf16.msra.mxu0 0
    %1204 = vmatpush.bf16.msra.mxu0 0
    %1205 = vmatpush.bf16.msra.mxu0 %v1015
    %1206 = vmatpush.bf16.msra.mxu0 %v1014
    %1207 = vmatpush.bf16.msra.mxu0 %v1013
    %1208 = vmatpush.bf16.msra.mxu0 %v1012
    %1209 = vmatmul.bf16.gmra.mxu0 %v1190
    %v1210 = vpop.f32.mrf.mxu0
    %v1211 = vadd.f32 0.0, %v1210
    %v1212 = vpop.f32.mrf.mxu0
    %v1213 = vadd.f32 0.0, %v1212
    %1214 = vmatmul.bf16.gmra.mxu0 %v1193
    %v1215 = vpop.f32.mrf.mxu0
    %v1216 = vadd.f32 0.0, %v1215
    %v1217 = vpop.f32.mrf.mxu0
    %v1218 = vadd.f32 0.0, %v1217
    %1219 = vmatmul.bf16.gmra.mxu0 %v1196
    %v1220 = vpop.f32.mrf.mxu0
    %v1221 = vadd.f32 0.0, %v1220
    %v1222 = vpop.f32.mrf.mxu0
    %v1223 = vadd.f32 0.0, %v1222
    %1224 = vmatmul.bf16.gmra.mxu0 %v1199
    %v1225 = vpop.f32.mrf.mxu0
    %v1226 = vadd.f32 0.0, %v1225
    %v1227 = vpop.f32.mrf.mxu0
    %v1228 = vadd.f32 0.0, %v1227
    %1229 = vdwg.mxu0
    %1232 = vrot.lane.b32.xlu0 %v1216, 16
    %v1233 = vpop.permute.xlu0 %1232
    %1234 = vrot.lane.b32.xlu0 %v1218, 16
    %v1235 = vpop.permute.xlu0 %1234
    %1240 = vrot.lane.b32.xlu0 %v1221, 32
    %v1241 = vpop.permute.xlu0 %1240
    %1242 = vrot.lane.b32.xlu0 %v1223, 32
    %v1243 = vpop.permute.xlu0 %1242
    %1248 = vrot.lane.b32.xlu0 %v1226, 48
    %v1249 = vpop.permute.xlu0 %1248
    %1250 = vrot.lane.b32.xlu0 %v1228, 48
    %v1251 = vpop.permute.xlu0 %1250
    %v1254 = vsel %vm246, %v1211, %v1233
    %v1255 = vsel %vm246, %v1213, %v1235
    %v1256 = vsel %vm475, %v1254, %v1241
    %v1257 = vsel %vm475, %v1255, %v1243
    %v1258 = vsel %vm478, %v1256, %v1249
    %v1259 = vsel %vm478, %v1257, %v1251
    %v1260 = vpack.c.bf16 %v1259, %v1258
    %s1261 = scalar_lea.vmem %s3, 32
    %v1262 = vld [vmem:[%s1261] sm:$0xf]
    %v1263 = vld [vmem:[%s1261 + $0x4] sm:$0xf]
    %v1264 = vld [vmem:[%s1261 + $0x8] sm:$0xf]
    %v1265 = vld [vmem:[%s1261 + $0xc] sm:$0xf]
    %v1266 = vld [vmem:[%s1261 + $0x10] sm:$0xf]
    %v1267 = vld [vmem:[%s1261 + $0x14] sm:$0xf]
    %v1268 = vld [vmem:[%s1261 + $0x18] sm:$0xf]
    %v1269 = vld [vmem:[%s1261 + $0x1c] sm:$0xf]
    %v1270 = vperm.slane %v836, 0
    %v1279 = vunpack.c.l.b16 %v1262
    %v1280 = vunpack.c.l.b16 %v1263
    %v1281 = vunpack.c.l.b16 %v1264
    %v1282 = vunpack.c.l.b16 %v1265
    %v1283 = vunpack.c.l.b16 %v1266
    %v1284 = vunpack.c.l.b16 %v1267
    %v1285 = vunpack.c.l.b16 %v1268
    %v1286 = vunpack.c.l.b16 %v1269
    %v1287 = vpack.c.b16 %v1280, %v1279
    %v1288 = vpack.c.b16 %v1282, %v1281
    %v1289 = vpack.c.b16 %v1284, %v1283
    %v1290 = vpack.c.b16 %v1286, %v1285
    %v1296 = vsel %vm48, %v1260, 0
    %1298 = vmatpush.bf16.msra.mxu0 0
    %1299 = vmatpush.bf16.msra.mxu0 0
    %1300 = vmatpush.bf16.msra.mxu0 0
    %1301 = vmatpush.bf16.msra.mxu0 0
    %1302 = vmatpush.bf16.msra.mxu0 %v1290
    %1303 = vmatpush.bf16.msra.mxu0 %v1289
    %1304 = vmatpush.bf16.msra.mxu0 %v1288
    %1305 = vmatpush.bf16.msra.mxu0 %v1287
    %1306 = vmatmul.bf16.gmra.mxu0 %v1296
    %v1307 = vpop.f32.mrf.mxu0
    %v1308 = vadd.f32 %v1270, %v1307
    %v1309 = vpop.f32.mrf.mxu0
    %v1310 = vadd.f32 %v1270, %v1309
    %1311 = vdwg.mxu0
    %v1312 = vadd.f32 %v833, %v1308
    %v1313 = vadd.f32 %v834, %v1310
    %v1314 = vsel %vm48, %v1312, 0.0
    %1315 = vadd.xlane.f32.xlu0 %v1314
    %v1316 = vpop.xlane.xlu0 %1315
    %v1317 = vsel %vm48, %v1313, 0.0
    %1318 = vadd.xlane.f32.xlu0 %v1317
    %v1319 = vpop.xlane.xlu0 %1318
    %v1320 = vmul.f32 %v1316, %v61
    %v1321 = vmul.f32 %v1319, %v61
    %v1322 = vsub.f32 %v1312, %v1320
    %v1323 = vsub.f32 %v1313, %v1321
    %v1324 = vmul.f32 %v1322, %v1322
    %v1325 = vmul.f32 %v1323, %v1323
    %v1326 = vsel %vm48, %v1324, 0.0
    %1327 = vadd.xlane.f32.xlu0 %v1326
    %v1328 = vpop.xlane.xlu0 %1327
    %v1329 = vsel %vm48, %v1325, 0.0
    %1330 = vadd.xlane.f32.xlu0 %v1329
    %v1331 = vpop.xlane.xlu0 %1330
    %v1332 = vmul.f32 %v1328, %v61
    %v1333 = vmul.f32 %v1331, %v61
    %v1334 = vadd.f32 %v1332, 1e-05
    %v1335 = vadd.f32 %v1333, 1e-05
    %v1336 = vrsqrt.pop %v1334
    %v1337 = vmul.f32 %v1336, %v1334
    %v1338 = vmul.f32 %v1337, %v1336
    %v1339 = vmul.f32 0.5, %v1338
    %v1340 = vsub.f32 1.5, %v1339
    %v1341 = vmul.f32 %v1336, %v1340
    %vm1342 = vweird.f32 %v1334
    %vm1343 = vweird.f32 %v1336
    %vm1344 = vmor %vm1342, %vm1343
    %v1345 = vsel %vm1344, %v1336, %v1341
    %v1346 = vrsqrt.pop %v1335
    %v1347 = vmul.f32 %v1346, %v1335
    %v1348 = vmul.f32 %v1347, %v1346
    %v1349 = vmul.f32 0.5, %v1348
    %v1350 = vsub.f32 1.5, %v1349
    %v1351 = vmul.f32 %v1346, %v1350
    %vm1352 = vweird.f32 %v1335
    %vm1353 = vweird.f32 %v1346
    %vm1354 = vmor %vm1352, %vm1353
    %v1355 = vsel %vm1354, %v1346, %v1351
    %v1356 = vmul.f32 %v1322, %v1345
    %v1357 = vmul.f32 %v1323, %v1355
    %v1358 = vperm.slane %v836, 3
    %v1359 = vmul.f32 %v1356, %v1358
    %v1360 = vmul.f32 %v1357, %v1358
    %v1361 = vperm.slane %v836, 4
    %v1362 = vadd.f32 %v1359, %v1361
    %v1363 = vadd.f32 %v1360, %v1361
    %v1364 = vpack.c.bf16 %v1363, %v1362
    %s1365 = scalar_lea.vmem %s5, 64
    %v1366 = vld [vmem:[%s1365] sm:$0xff]
    %v1367 = vld [vmem:[%s1365 + $0x8] sm:$0xff]
    %v1368 = vld [vmem:[%s1365 + $0x10] sm:$0xff]
    %v1369 = vld [vmem:[%s1365 + $0x18] sm:$0xff]
    %v1370 = vld [vmem:[%s1365 + $0x20] sm:$0xff]
    %v1371 = vld [vmem:[%s1365 + $0x28] sm:$0xff]
    %v1372 = vld [vmem:[%s1365 + $0x30] sm:$0xff]
    %v1373 = vld [vmem:[%s1365 + $0x38] sm:$0xff]
    %s1374 = scalar_lea.vmem %s6, 2
    %v1375 = vld [vmem:[%s1374] sm:$0x3]
    %v1377 = vperm.slane %v1375, 0
    %v1378 = vperm.slane %v1375, 1
    %v1389 = vunpack.c.l.b16 %v1366
    %v1390 = vunpack.c.h.b16 %v1366
    %v1391 = vunpack.c.l.b16 %v1367
    %v1392 = vunpack.c.h.b16 %v1367
    %v1393 = vunpack.c.l.b16 %v1368
    %v1394 = vunpack.c.h.b16 %v1368
    %v1395 = vunpack.c.l.b16 %v1369
    %v1396 = vunpack.c.h.b16 %v1369
    %v1397 = vunpack.c.l.b16 %v1370
    %v1398 = vunpack.c.h.b16 %v1370
    %v1399 = vunpack.c.l.b16 %v1371
    %v1400 = vunpack.c.h.b16 %v1371
    %v1401 = vunpack.c.l.b16 %v1372
    %v1402 = vunpack.c.h.b16 %v1372
    %v1403 = vunpack.c.l.b16 %v1373
    %v1404 = vunpack.c.h.b16 %v1373
    %v1405 = vpack.c.b16 %v1391, %v1389
    %v1406 = vpack.c.b16 %v1392, %v1390
    %v1407 = vpack.c.b16 %v1395, %v1393
    %v1408 = vpack.c.b16 %v1396, %v1394
    %v1409 = vpack.c.b16 %v1399, %v1397
    %v1410 = vpack.c.b16 %v1400, %v1398
    %v1411 = vpack.c.b16 %v1403, %v1401
    %v1412 = vpack.c.b16 %v1404, %v1402
    %v1422 = vsel %vm48, %v1364, 0
    %1424 = vmatpush.bf16.msra.mxu0 0
    %1425 = vmatpush.bf16.msra.mxu0 0
    %1426 = vmatpush.bf16.msra.mxu0 0
    %1427 = vmatpush.bf16.msra.mxu0 0
    %1428 = vmatpush.bf16.msra.mxu0 %v1411
    %1429 = vmatpush.bf16.msra.mxu0 %v1409
    %1430 = vmatpush.bf16.msra.mxu0 %v1407
    %1431 = vmatpush.bf16.msra.mxu0 %v1405
    %1432 = vmatmul.bf16.gmra.mxu0 %v1422
    %v1433 = vpop.f32.mrf.mxu0
    %v1434 = vadd.f32 %v1377, %v1433
    %v1435 = vpop.f32.mrf.mxu0
    %v1436 = vadd.f32 %v1377, %v1435
    %1437 = vdwg.mxu0
    %1438 = vmatpush.bf16.msra.mxu0 0
    %1439 = vmatpush.bf16.msra.mxu0 0
    %1440 = vmatpush.bf16.msra.mxu0 0
    %1441 = vmatpush.bf16.msra.mxu0 0
    %1442 = vmatpush.bf16.msra.mxu0 %v1412
    %1443 = vmatpush.bf16.msra.mxu0 %v1410
    %1444 = vmatpush.bf16.msra.mxu0 %v1408
    %1445 = vmatpush.bf16.msra.mxu0 %v1406
    %1446 = vmatmul.bf16.gmra.mxu0 %v1422
    %v1447 = vpop.f32.mrf.mxu0
    %v1448 = vadd.f32 %v1378, %v1447
    %v1449 = vpop.f32.mrf.mxu0
    %v1450 = vadd.f32 %v1378, %v1449
    %1451 = vdwg.mxu0
    %v1452 = vmax.f32 %v1434, 0.0
    %v1453 = vmax.f32 %v1448, 0.0
    %v1454 = vmax.f32 %v1436, 0.0
    %v1455 = vmax.f32 %v1450, 0.0
    %v1456 = vpack.c.bf16 %v1454, %v1452
    %v1457 = vpack.c.bf16 %v1455, %v1453
    %s1458 = scalar_lea.vmem %s7, 128
    %v1459 = vld [vmem:[%s1458] sm:$0xf]
    %v1460 = vld [vmem:[%s1458 + $0x4] sm:$0xf]
    %v1461 = vld [vmem:[%s1458 + $0x8] sm:$0xf]
    %v1462 = vld [vmem:[%s1458 + $0xc] sm:$0xf]
    %v1463 = vld [vmem:[%s1458 + $0x10] sm:$0xf]
    %v1464 = vld [vmem:[%s1458 + $0x14] sm:$0xf]
    %v1465 = vld [vmem:[%s1458 + $0x18] sm:$0xf]
    %v1466 = vld [vmem:[%s1458 + $0x1c] sm:$0xf]
    %v1467 = vld [vmem:[%s1458 + $0x20] sm:$0xf]
    %v1468 = vld [vmem:[%s1458 + $0x24] sm:$0xf]
    %v1469 = vld [vmem:[%s1458 + $0x28] sm:$0xf]
    %v1470 = vld [vmem:[%s1458 + $0x2c] sm:$0xf]
    %v1471 = vld [vmem:[%s1458 + $0x30] sm:$0xf]
    %v1472 = vld [vmem:[%s1458 + $0x34] sm:$0xf]
    %v1473 = vld [vmem:[%s1458 + $0x38] sm:$0xf]
    %v1474 = vld [vmem:[%s1458 + $0x3c] sm:$0xf]
    %v1475 = vld [vmem:[%s1458 + $0x40] sm:$0xf]
    %v1476 = vld [vmem:[%s1458 + $0x44] sm:$0xf]
    %v1477 = vld [vmem:[%s1458 + $0x48] sm:$0xf]
    %v1478 = vld [vmem:[%s1458 + $0x4c] sm:$0xf]
    %v1479 = vld [vmem:[%s1458 + $0x50] sm:$0xf]
    %v1480 = vld [vmem:[%s1458 + $0x54] sm:$0xf]
    %v1481 = vld [vmem:[%s1458 + $0x58] sm:$0xf]
    %v1482 = vld [vmem:[%s1458 + $0x5c] sm:$0xf]
    %v1483 = vld [vmem:[%s1458 + $0x60] sm:$0xf]
    %v1484 = vld [vmem:[%s1458 + $0x64] sm:$0xf]
    %v1485 = vld [vmem:[%s1458 + $0x68] sm:$0xf]
    %v1486 = vld [vmem:[%s1458 + $0x6c] sm:$0xf]
    %v1487 = vld [vmem:[%s1458 + $0x70] sm:$0xf]
    %v1488 = vld [vmem:[%s1458 + $0x74] sm:$0xf]
    %v1489 = vld [vmem:[%s1458 + $0x78] sm:$0xf]
    %v1490 = vld [vmem:[%s1458 + $0x7c] sm:$0xf]
    %v1491 = vperm.slane %v836, 5
    %v1524 = vunpack.c.l.b16 %v1459
    %v1525 = vunpack.c.l.b16 %v1460
    %v1526 = vunpack.c.l.b16 %v1461
    %v1527 = vunpack.c.l.b16 %v1462
    %v1528 = vunpack.c.l.b16 %v1463
    %v1529 = vunpack.c.l.b16 %v1464
    %v1530 = vunpack.c.l.b16 %v1465
    %v1531 = vunpack.c.l.b16 %v1466
    %v1532 = vunpack.c.l.b16 %v1467
    %v1533 = vunpack.c.l.b16 %v1468
    %v1534 = vunpack.c.l.b16 %v1469
    %v1535 = vunpack.c.l.b16 %v1470
    %v1536 = vunpack.c.l.b16 %v1471
    %v1537 = vunpack.c.l.b16 %v1472
    %v1538 = vunpack.c.l.b16 %v1473
    %v1539 = vunpack.c.l.b16 %v1474
    %v1540 = vunpack.c.l.b16 %v1475
    %v1541 = vunpack.c.l.b16 %v1476
    %v1542 = vunpack.c.l.b16 %v1477
    %v1543 = vunpack.c.l.b16 %v1478
    %v1544 = vunpack.c.l.b16 %v1479
    %v1545 = vunpack.c.l.b16 %v1480
    %v1546 = vunpack.c.l.b16 %v1481
    %v1547 = vunpack.c.l.b16 %v1482
    %v1548 = vunpack.c.l.b16 %v1483
    %v1549 = vunpack.c.l.b16 %v1484
    %v1550 = vunpack.c.l.b16 %v1485
    %v1551 = vunpack.c.l.b16 %v1486
    %v1552 = vunpack.c.l.b16 %v1487
    %v1553 = vunpack.c.l.b16 %v1488
    %v1554 = vunpack.c.l.b16 %v1489
    %v1555 = vunpack.c.l.b16 %v1490
    %v1556 = vpack.c.b16 %v1525, %v1524
    %v1557 = vpack.c.b16 %v1527, %v1526
    %v1558 = vpack.c.b16 %v1529, %v1528
    %v1559 = vpack.c.b16 %v1531, %v1530
    %v1560 = vpack.c.b16 %v1533, %v1532
    %v1561 = vpack.c.b16 %v1535, %v1534
    %v1562 = vpack.c.b16 %v1537, %v1536
    %v1563 = vpack.c.b16 %v1539, %v1538
    %v1564 = vpack.c.b16 %v1541, %v1540
    %v1565 = vpack.c.b16 %v1543, %v1542
    %v1566 = vpack.c.b16 %v1545, %v1544
    %v1567 = vpack.c.b16 %v1547, %v1546
    %v1568 = vpack.c.b16 %v1549, %v1548
    %v1569 = vpack.c.b16 %v1551, %v1550
    %v1570 = vpack.c.b16 %v1553, %v1552
    %v1571 = vpack.c.b16 %v1555, %v1554
    %1588 = vmatpush.bf16.msra.mxu0 %v1563
    %1589 = vmatpush.bf16.msra.mxu0 %v1562
    %1590 = vmatpush.bf16.msra.mxu0 %v1561
    %1591 = vmatpush.bf16.msra.mxu0 %v1560
    %1592 = vmatpush.bf16.msra.mxu0 %v1559
    %1593 = vmatpush.bf16.msra.mxu0 %v1558
    %1594 = vmatpush.bf16.msra.mxu0 %v1557
    %1595 = vmatpush.bf16.msra.mxu0 %v1556
    %1596 = vmatmul.bf16.gmra.mxu0 %v1456
    %v1597 = vpop.f32.mrf.mxu0
    %v1598 = vadd.f32 %v1491, %v1597
    %v1599 = vpop.f32.mrf.mxu0
    %v1600 = vadd.f32 %v1491, %v1599
    %1601 = vdwg.mxu0
    %1602 = vmatpush.bf16.msra.mxu0 %v1571
    %1603 = vmatpush.bf16.msra.mxu0 %v1570
    %1604 = vmatpush.bf16.msra.mxu0 %v1569
    %1605 = vmatpush.bf16.msra.mxu0 %v1568
    %1606 = vmatpush.bf16.msra.mxu0 %v1567
    %1607 = vmatpush.bf16.msra.mxu0 %v1566
    %1608 = vmatpush.bf16.msra.mxu0 %v1565
    %1609 = vmatpush.bf16.msra.mxu0 %v1564
    %1610 = vmatmul.bf16.gmra.mxu0 %v1457
    %v1611 = vpop.f32.mrf.mxu0
    %v1612 = vadd.f32 %v1598, %v1611
    %v1613 = vpop.f32.mrf.mxu0
    %v1614 = vadd.f32 %v1600, %v1613
    %1615 = vdwg.mxu0
    %v1616 = vadd.f32 %v1312, %v1612
    %v1617 = vadd.f32 %v1313, %v1614
    %s1618 = scalar_lea.vmem %s4, 16
    %v1619 = vld [vmem:[%s1618] sm:$0x3f]
    %v1620 = vsel %vm48, %v1616, 0.0
    %1621 = vadd.xlane.f32.xlu0 %v1620
    %v1622 = vpop.xlane.xlu0 %1621
    %v1623 = vsel %vm48, %v1617, 0.0
    %1624 = vadd.xlane.f32.xlu0 %v1623
    %v1625 = vpop.xlane.xlu0 %1624
    %v1626 = vmul.f32 %v1622, %v61
    %v1627 = vmul.f32 %v1625, %v61
    %v1628 = vsub.f32 %v1616, %v1626
    %v1629 = vsub.f32 %v1617, %v1627
    %v1630 = vmul.f32 %v1628, %v1628
    %v1631 = vmul.f32 %v1629, %v1629
    %v1632 = vsel %vm48, %v1630, 0.0
    %1633 = vadd.xlane.f32.xlu0 %v1632
    %v1634 = vpop.xlane.xlu0 %1633
    %v1635 = vsel %vm48, %v1631, 0.0
    %1636 = vadd.xlane.f32.xlu0 %v1635
    %v1637 = vpop.xlane.xlu0 %1636
    %v1638 = vmul.f32 %v1634, %v61
    %v1639 = vmul.f32 %v1637, %v61
    %v1640 = vadd.f32 %v1638, 1e-05
    %v1641 = vadd.f32 %v1639, 1e-05
    %v1642 = vrsqrt.pop %v1640
    %v1643 = vmul.f32 %v1642, %v1640
    %v1644 = vmul.f32 %v1643, %v1642
    %v1645 = vmul.f32 0.5, %v1644
    %v1646 = vsub.f32 1.5, %v1645
    %v1647 = vmul.f32 %v1642, %v1646
    %vm1648 = vweird.f32 %v1640
    %vm1649 = vweird.f32 %v1642
    %vm1650 = vmor %vm1648, %vm1649
    %v1651 = vsel %vm1650, %v1642, %v1647
    %v1652 = vrsqrt.pop %v1641
    %v1653 = vmul.f32 %v1652, %v1641
    %v1654 = vmul.f32 %v1653, %v1652
    %v1655 = vmul.f32 0.5, %v1654
    %v1656 = vsub.f32 1.5, %v1655
    %v1657 = vmul.f32 %v1652, %v1656
    %vm1658 = vweird.f32 %v1641
    %vm1659 = vweird.f32 %v1652
    %vm1660 = vmor %vm1658, %vm1659
    %v1661 = vsel %vm1660, %v1652, %v1657
    %v1662 = vmul.f32 %v1628, %v1651
    %v1663 = vmul.f32 %v1629, %v1661
    %v1664 = vperm.slane %v1619, 1
    %v1665 = vmul.f32 %v1662, %v1664
    %v1666 = vmul.f32 %v1663, %v1664
    %v1667 = vperm.slane %v1619, 2
    %v1668 = vadd.f32 %v1665, %v1667
    %v1669 = vadd.f32 %v1666, %v1667
    %v1670 = vpack.c.bf16 %v1669, %v1668
    %s1671 = scalar_lea.vmem %s2, 128
    %v1672 = vld [vmem:[%s1671] sm:$0xff]
    %v1673 = vld [vmem:[%s1671 + $0x8] sm:$0xff]
    %v1674 = vld [vmem:[%s1671 + $0x10] sm:$0xff]
    %v1675 = vld [vmem:[%s1671 + $0x18] sm:$0xff]
    %v1676 = vld [vmem:[%s1671 + $0x20] sm:$0xff]
    %v1677 = vld [vmem:[%s1671 + $0x28] sm:$0xff]
    %v1678 = vld [vmem:[%s1671 + $0x30] sm:$0xff]
    %v1679 = vld [vmem:[%s1671 + $0x38] sm:$0xff]
    %v1688 = vunpack.c.l.b16 %v1672
    %v1689 = vunpack.c.h.b16 %v1672
    %v1690 = vunpack.c.l.b16 %v1673
    %v1691 = vunpack.c.h.b16 %v1673
    %v1692 = vunpack.c.l.b16 %v1674
    %v1693 = vunpack.c.h.b16 %v1674
    %v1694 = vunpack.c.l.b16 %v1675
    %v1695 = vunpack.c.h.b16 %v1675
    %v1696 = vunpack.c.l.b16 %v1676
    %v1697 = vunpack.c.h.b16 %v1676
    %v1698 = vunpack.c.l.b16 %v1677
    %v1699 = vunpack.c.h.b16 %v1677
    %v1700 = vunpack.c.l.b16 %v1678
    %v1701 = vunpack.c.h.b16 %v1678
    %v1702 = vunpack.c.l.b16 %v1679
    %v1703 = vunpack.c.h.b16 %v1679
    %v1704 = vpack.c.b16 %v1690, %v1688
    %v1705 = vpack.c.b16 %v1691, %v1689
    %v1706 = vpack.c.b16 %v1694, %v1692
    %v1707 = vpack.c.b16 %v1695, %v1693
    %v1708 = vpack.c.b16 %v1698, %v1696
    %v1709 = vpack.c.b16 %v1699, %v1697
    %v1710 = vpack.c.b16 %v1702, %v1700
    %v1711 = vpack.c.b16 %v1703, %v1701
    %v1721 = vsel %vm48, %v1670, 0
    %1723 = vmatpush.bf16.msra.mxu0 0
    %1724 = vmatpush.bf16.msra.mxu0 0
    %1725 = vmatpush.bf16.msra.mxu0 0
    %1726 = vmatpush.bf16.msra.mxu0 0
    %1727 = vmatpush.bf16.msra.mxu0 %v1710
    %1728 = vmatpush.bf16.msra.mxu0 %v1708
    %1729 = vmatpush.bf16.msra.mxu0 %v1706
    %1730 = vmatpush.bf16.msra.mxu0 %v1704
    %1731 = vmatmul.bf16.gmra.mxu0 %v1721
    %v1732 = vpop.f32.mrf.mxu0
    %v1733 = vadd.f32 0.0, %v1732
    %v1734 = vpop.f32.mrf.mxu0
    %v1735 = vadd.f32 0.0, %v1734
    %1736 = vdwg.mxu0
    %1737 = vmatpush.bf16.msra.mxu0 0
    %1738 = vmatpush.bf16.msra.mxu0 0
    %1739 = vmatpush.bf16.msra.mxu0 0
    %1740 = vmatpush.bf16.msra.mxu0 0
    %1741 = vmatpush.bf16.msra.mxu0 %v1711
    %1742 = vmatpush.bf16.msra.mxu0 %v1709
    %1743 = vmatpush.bf16.msra.mxu0 %v1707
    %1744 = vmatpush.bf16.msra.mxu0 %v1705
    %1745 = vmatmul.bf16.gmra.mxu0 %v1721
    %v1746 = vpop.f32.mrf.mxu0
    %v1747 = vadd.f32 0.0, %v1746
    %v1748 = vpop.f32.mrf.mxu0
    %v1749 = vadd.f32 0.0, %v1748
    %1750 = vdwg.mxu0
    %1753 = vrot.lane.b32.xlu0 %v1733, 112
    %v1754 = vpop.permute.xlu0 %1753
    %1755 = vrot.lane.b32.xlu0 %v1735, 112
    %v1756 = vpop.permute.xlu0 %1755
    %1759 = vrot.lane.b32.xlu0 %v1733, 96
    %v1760 = vpop.permute.xlu0 %1759
    %1761 = vrot.lane.b32.xlu0 %v1735, 96
    %v1762 = vpop.permute.xlu0 %1761
    %1765 = vrot.lane.b32.xlu0 %v1733, 80
    %v1766 = vpop.permute.xlu0 %1765
    %1767 = vrot.lane.b32.xlu0 %v1735, 80
    %v1768 = vpop.permute.xlu0 %1767
    %v1771 = vpack.c.bf16 %v1735, %v1733
    %v1772 = vpack.c.bf16 %v1756, %v1754
    %v1773 = vpack.c.bf16 %v1762, %v1760
    %v1774 = vpack.c.bf16 %v1768, %v1766
    %1777 = vrot.lane.b32.xlu0 %v1747, 112
    %v1778 = vpop.permute.xlu0 %1777
    %1779 = vrot.lane.b32.xlu0 %v1749, 112
    %v1780 = vpop.permute.xlu0 %1779
    %1783 = vrot.lane.b32.xlu0 %v1747, 96
    %v1784 = vpop.permute.xlu0 %1783
    %1785 = vrot.lane.b32.xlu0 %v1749, 96
    %v1786 = vpop.permute.xlu0 %1785
    %1789 = vrot.lane.b32.xlu0 %v1747, 80
    %v1790 = vpop.permute.xlu0 %1789
    %1791 = vrot.lane.b32.xlu0 %v1749, 80
    %v1792 = vpop.permute.xlu0 %1791
    %v1795 = vpack.c.bf16 %v1749, %v1747
    %v1796 = vpack.c.bf16 %v1780, %v1778
    %v1797 = vpack.c.bf16 %v1786, %v1784
    %v1798 = vpack.c.bf16 %v1792, %v1790
    %1803 = vrot.lane.b32.xlu0 %v1771, 64
    %v1804 = vpop.permute.xlu0 %1803
    %1805 = vrot.lane.b32.xlu0 %v1772, 64
    %v1806 = vpop.permute.xlu0 %1805
    %1807 = vrot.lane.b32.xlu0 %v1773, 64
    %v1808 = vpop.permute.xlu0 %1807
    %1809 = vrot.lane.b32.xlu0 %v1774, 64
    %v1810 = vpop.permute.xlu0 %1809
    %v1812 = vsel %vm246, %v1771, 0
    %v1815 = vsel %vm246, %v1772, 0
    %v1818 = vsel %vm246, %v1773, 0
    %v1821 = vsel %vm246, %v1774, 0
    %v1824 = vsel %vm246, %v1804, 0
    %v1827 = vsel %vm246, %v1806, 0
    %v1830 = vsel %vm246, %v1808, 0
    %v1833 = vsel %vm246, %v1810, 0
    %1835 = vmatpush.bf16.xpose.msra.mxu0 0
    %1836 = vmatpush.bf16.xpose.msra.mxu0 0
    %1837 = vmatpush.bf16.xpose.msra.mxu0 0
    %1838 = vmatpush.bf16.xpose.msra.mxu0 0
    %1839 = vmatpush.bf16.xpose.msra.mxu0 %v1833
    %1840 = vmatpush.bf16.xpose.msra.mxu0 %v1830
    %1841 = vmatpush.bf16.xpose.msra.mxu0 %v1827
    %1842 = vmatpush.bf16.xpose.msra.mxu0 %v1824
    %1843 = vmatmul.bf16.gmra.mxu0 %v1812
    %v1844 = vpop.f32.mrf.mxu0
    %v1845 = vadd.f32 0.0, %v1844
    %v1846 = vpop.f32.mrf.mxu0
    %v1847 = vadd.f32 0.0, %v1846
    %1848 = vmatmul.bf16.gmra.mxu0 %v1815
    %v1849 = vpop.f32.mrf.mxu0
    %v1850 = vadd.f32 0.0, %v1849
    %v1851 = vpop.f32.mrf.mxu0
    %v1852 = vadd.f32 0.0, %v1851
    %1853 = vmatmul.bf16.gmra.mxu0 %v1818
    %v1854 = vpop.f32.mrf.mxu0
    %v1855 = vadd.f32 0.0, %v1854
    %v1856 = vpop.f32.mrf.mxu0
    %v1857 = vadd.f32 0.0, %v1856
    %1858 = vmatmul.bf16.gmra.mxu0 %v1821
    %v1859 = vpop.f32.mrf.mxu0
    %v1860 = vadd.f32 0.0, %v1859
    %v1861 = vpop.f32.mrf.mxu0
    %v1862 = vadd.f32 0.0, %v1861
    %1863 = vdwg.mxu0
    %v1864 = vmul.f32 %v1845, 0.125
    %v1865 = vmul.f32 %v1847, 0.125
    %v1866 = vmul.f32 %v1850, 0.125
    %v1867 = vmul.f32 %v1852, 0.125
    %v1868 = vmul.f32 %v1855, 0.125
    %v1869 = vmul.f32 %v1857, 0.125
    %v1870 = vmul.f32 %v1860, 0.125
    %v1871 = vmul.f32 %v1862, 0.125
    %v1872 = vadd.f32 %v1864, %v39
    %v1873 = vadd.f32 %v1865, %v40
    %v1874 = vadd.f32 %v1866, %v41
    %v1875 = vadd.f32 %v1867, %v42
    %v1876 = vadd.f32 %v1868, %v43
    %v1877 = vadd.f32 %v1869, %v44
    %v1878 = vadd.f32 %v1870, %v45
    %v1879 = vadd.f32 %v1871, %v46
    %v1880 = vsel %vm48, %v1872, -inf
    %1881 = vmax.xlane.f32.xlu0 %v1880
    %v1882 = vpop.xlane.xlu0 %1881
    %v1883 = vsel %vm48, %v1873, -inf
    %1884 = vmax.xlane.f32.xlu0 %v1883
    %v1885 = vpop.xlane.xlu0 %1884
    %v1886 = vsel %vm48, %v1874, -inf
    %1887 = vmax.xlane.f32.xlu0 %v1886
    %v1888 = vpop.xlane.xlu0 %1887
    %v1889 = vsel %vm48, %v1875, -inf
    %1890 = vmax.xlane.f32.xlu0 %v1889
    %v1891 = vpop.xlane.xlu0 %1890
    %v1892 = vsel %vm48, %v1876, -inf
    %1893 = vmax.xlane.f32.xlu0 %v1892
    %v1894 = vpop.xlane.xlu0 %1893
    %v1895 = vsel %vm48, %v1877, -inf
    %1896 = vmax.xlane.f32.xlu0 %v1895
    %v1897 = vpop.xlane.xlu0 %1896
    %v1898 = vsel %vm48, %v1878, -inf
    %1899 = vmax.xlane.f32.xlu0 %v1898
    %v1900 = vpop.xlane.xlu0 %1899
    %v1901 = vsel %vm48, %v1879, -inf
    %1902 = vmax.xlane.f32.xlu0 %v1901
    %v1903 = vpop.xlane.xlu0 %1902
    %v1904 = vsub.f32 %v1872, %v1882
    %v1905 = vsub.f32 %v1873, %v1885
    %v1906 = vsub.f32 %v1874, %v1888
    %v1907 = vsub.f32 %v1875, %v1891
    %v1908 = vsub.f32 %v1876, %v1894
    %v1909 = vsub.f32 %v1877, %v1897
    %v1910 = vsub.f32 %v1878, %v1900
    %v1911 = vsub.f32 %v1879, %v1903
    %v1912 = vmul.f32 %v1904, 1.442695
    %v1913 = vpow.pop %v1912
    %v1914 = vmul.f32 %v1905, 1.442695
    %v1915 = vpow.pop %v1914
    %v1916 = vmul.f32 %v1906, 1.442695
    %v1917 = vpow.pop %v1916
    %v1918 = vmul.f32 %v1907, 1.442695
    %v1919 = vpow.pop %v1918
    %v1920 = vmul.f32 %v1908, 1.442695
    %v1921 = vpow.pop %v1920
    %v1922 = vmul.f32 %v1909, 1.442695
    %v1923 = vpow.pop %v1922
    %v1924 = vmul.f32 %v1910, 1.442695
    %v1925 = vpow.pop %v1924
    %v1926 = vmul.f32 %v1911, 1.442695
    %v1927 = vpow.pop %v1926
    %v1928 = vsel %vm48, %v1913, 0.0
    %1929 = vadd.xlane.f32.xlu0 %v1928
    %v1930 = vpop.xlane.xlu0 %1929
    %v1931 = vsel %vm48, %v1915, 0.0
    %1932 = vadd.xlane.f32.xlu0 %v1931
    %v1933 = vpop.xlane.xlu0 %1932
    %v1934 = vsel %vm48, %v1917, 0.0
    %1935 = vadd.xlane.f32.xlu0 %v1934
    %v1936 = vpop.xlane.xlu0 %1935
    %v1937 = vsel %vm48, %v1919, 0.0
    %1938 = vadd.xlane.f32.xlu0 %v1937
    %v1939 = vpop.xlane.xlu0 %1938
    %v1940 = vsel %vm48, %v1921, 0.0
    %1941 = vadd.xlane.f32.xlu0 %v1940
    %v1942 = vpop.xlane.xlu0 %1941
    %v1943 = vsel %vm48, %v1923, 0.0
    %1944 = vadd.xlane.f32.xlu0 %v1943
    %v1945 = vpop.xlane.xlu0 %1944
    %v1946 = vsel %vm48, %v1925, 0.0
    %1947 = vadd.xlane.f32.xlu0 %v1946
    %v1948 = vpop.xlane.xlu0 %1947
    %v1949 = vsel %vm48, %v1927, 0.0
    %1950 = vadd.xlane.f32.xlu0 %v1949
    %v1951 = vpop.xlane.xlu0 %1950
    %v1952 = vrcp.pop %v1930
    %v1953 = vrcp.pop %v1933
    %v1954 = vrcp.pop %v1936
    %v1955 = vrcp.pop %v1939
    %v1956 = vrcp.pop %v1942
    %v1957 = vrcp.pop %v1945
    %v1958 = vrcp.pop %v1948
    %v1959 = vrcp.pop %v1951
    %v1960 = vmul.f32 %v1913, %v1952
    %v1961 = vmul.f32 %v1915, %v1953
    %v1962 = vmul.f32 %v1917, %v1954
    %v1963 = vmul.f32 %v1919, %v1955
    %v1964 = vmul.f32 %v1921, %v1956
    %v1965 = vmul.f32 %v1923, %v1957
    %v1966 = vmul.f32 %v1925, %v1958
    %v1967 = vmul.f32 %v1927, %v1959
    %v1968 = vpack.c.bf16 %v1961, %v1960
    %v1969 = vpack.c.bf16 %v1963, %v1962
    %v1970 = vpack.c.bf16 %v1965, %v1964
    %v1971 = vpack.c.bf16 %v1967, %v1966
    %v1973 = vsel %vm48, %v1968, 0
    %v1976 = vsel %vm48, %v1969, 0
    %v1979 = vsel %vm48, %v1970, 0
    %v1982 = vsel %vm48, %v1971, 0
    %1984 = vmatpush.bf16.msra.mxu0 0
    %1985 = vmatpush.bf16.msra.mxu0 0
    %1986 = vmatpush.bf16.msra.mxu0 0
    %1987 = vmatpush.bf16.msra.mxu0 0
    %1988 = vmatpush.bf16.msra.mxu0 %v1798
    %1989 = vmatpush.bf16.msra.mxu0 %v1797
    %1990 = vmatpush.bf16.msra.mxu0 %v1796
    %1991 = vmatpush.bf16.msra.mxu0 %v1795
    %1992 = vmatmul.bf16.gmra.mxu0 %v1973
    %v1993 = vpop.f32.mrf.mxu0
    %v1994 = vadd.f32 0.0, %v1993
    %v1995 = vpop.f32.mrf.mxu0
    %v1996 = vadd.f32 0.0, %v1995
    %1997 = vmatmul.bf16.gmra.mxu0 %v1976
    %v1998 = vpop.f32.mrf.mxu0
    %v1999 = vadd.f32 0.0, %v1998
    %v2000 = vpop.f32.mrf.mxu0
    %v2001 = vadd.f32 0.0, %v2000
    %2002 = vmatmul.bf16.gmra.mxu0 %v1979
    %v2003 = vpop.f32.mrf.mxu0
    %v2004 = vadd.f32 0.0, %v2003
    %v2005 = vpop.f32.mrf.mxu0
    %v2006 = vadd.f32 0.0, %v2005
    %2007 = vmatmul.bf16.gmra.mxu0 %v1982
    %v2008 = vpop.f32.mrf.mxu0
    %v2009 = vadd.f32 0.0, %v2008
    %v2010 = vpop.f32.mrf.mxu0
    %v2011 = vadd.f32 0.0, %v2010
    %2012 = vdwg.mxu0
    %2015 = vrot.lane.b32.xlu0 %v1999, 16
    %v2016 = vpop.permute.xlu0 %2015
    %2017 = vrot.lane.b32.xlu0 %v2001, 16
    %v2018 = vpop.permute.xlu0 %2017
    %2023 = vrot.lane.b32.xlu0 %v2004, 32
    %v2024 = vpop.permute.xlu0 %2023
    %2025 = vrot.lane.b32.xlu0 %v2006, 32
    %v2026 = vpop.permute.xlu0 %2025
    %2031 = vrot.lane.b32.xlu0 %v2009, 48
    %v2032 = vpop.permute.xlu0 %2031
    %2033 = vrot.lane.b32.xlu0 %v2011, 48
    %v2034 = vpop.permute.xlu0 %2033
    %v2037 = vsel %vm246, %v1994, %v2016
    %v2038 = vsel %vm246, %v1996, %v2018
    %v2039 = vsel %vm475, %v2037, %v2024
    %v2040 = vsel %vm475, %v2038, %v2026
    %v2041 = vsel %vm478, %v2039, %v2032
    %v2042 = vsel %vm478, %v2040, %v2034
    %v2043 = vpack.c.bf16 %v2042, %v2041
    %s2044 = scalar_lea.vmem %s3, 64
    %v2045 = vld [vmem:[%s2044] sm:$0xf]
    %v2046 = vld [vmem:[%s2044 + $0x4] sm:$0xf]
    %v2047 = vld [vmem:[%s2044 + $0x8] sm:$0xf]
    %v2048 = vld [vmem:[%s2044 + $0xc] sm:$0xf]
    %v2049 = vld [vmem:[%s2044 + $0x10] sm:$0xf]
    %v2050 = vld [vmem:[%s2044 + $0x14] sm:$0xf]
    %v2051 = vld [vmem:[%s2044 + $0x18] sm:$0xf]
    %v2052 = vld [vmem:[%s2044 + $0x1c] sm:$0xf]
    %v2053 = vperm.slane %v1619, 0
    %v2062 = vunpack.c.l.b16 %v2045
    %v2063 = vunpack.c.l.b16 %v2046
    %v2064 = vunpack.c.l.b16 %v2047
    %v2065 = vunpack.c.l.b16 %v2048
    %v2066 = vunpack.c.l.b16 %v2049
    %v2067 = vunpack.c.l.b16 %v2050
    %v2068 = vunpack.c.l.b16 %v2051
    %v2069 = vunpack.c.l.b16 %v2052
    %v2070 = vpack.c.b16 %v2063, %v2062
    %v2071 = vpack.c.b16 %v2065, %v2064
    %v2072 = vpack.c.b16 %v2067, %v2066
    %v2073 = vpack.c.b16 %v2069, %v2068
    %v2079 = vsel %vm48, %v2043, 0
    %2081 = vmatpush.bf16.msra.mxu0 0
    %2082 = vmatpush.bf16.msra.mxu0 0
    %2083 = vmatpush.bf16.msra.mxu0 0
    %2084 = vmatpush.bf16.msra.mxu0 0
    %2085 = vmatpush.bf16.msra.mxu0 %v2073
    %2086 = vmatpush.bf16.msra.mxu0 %v2072
    %2087 = vmatpush.bf16.msra.mxu0 %v2071
    %2088 = vmatpush.bf16.msra.mxu0 %v2070
    %2089 = vmatmul.bf16.gmra.mxu0 %v2079
    %v2090 = vpop.f32.mrf.mxu0
    %v2091 = vadd.f32 %v2053, %v2090
    %v2092 = vpop.f32.mrf.mxu0
    %v2093 = vadd.f32 %v2053, %v2092
    %2094 = vdwg.mxu0
    %v2095 = vadd.f32 %v1616, %v2091
    %v2096 = vadd.f32 %v1617, %v2093
    %v2097 = vsel %vm48, %v2095, 0.0
    %2098 = vadd.xlane.f32.xlu0 %v2097
    %v2099 = vpop.xlane.xlu0 %2098
    %v2100 = vsel %vm48, %v2096, 0.0
    %2101 = vadd.xlane.f32.xlu0 %v2100
    %v2102 = vpop.xlane.xlu0 %2101
    %v2103 = vmul.f32 %v2099, %v61
    %v2104 = vmul.f32 %v2102, %v61
    %v2105 = vsub.f32 %v2095, %v2103
    %v2106 = vsub.f32 %v2096, %v2104
    %v2107 = vmul.f32 %v2105, %v2105
    %v2108 = vmul.f32 %v2106, %v2106
    %v2109 = vsel %vm48, %v2107, 0.0
    %2110 = vadd.xlane.f32.xlu0 %v2109
    %v2111 = vpop.xlane.xlu0 %2110
    %v2112 = vsel %vm48, %v2108, 0.0
    %2113 = vadd.xlane.f32.xlu0 %v2112
    %v2114 = vpop.xlane.xlu0 %2113
    %v2115 = vmul.f32 %v2111, %v61
    %v2116 = vmul.f32 %v2114, %v61
    %v2117 = vadd.f32 %v2115, 1e-05
    %v2118 = vadd.f32 %v2116, 1e-05
    %v2119 = vrsqrt.pop %v2117
    %v2120 = vmul.f32 %v2119, %v2117
    %v2121 = vmul.f32 %v2120, %v2119
    %v2122 = vmul.f32 0.5, %v2121
    %v2123 = vsub.f32 1.5, %v2122
    %v2124 = vmul.f32 %v2119, %v2123
    %vm2125 = vweird.f32 %v2117
    %vm2126 = vweird.f32 %v2119
    %vm2127 = vmor %vm2125, %vm2126
    %v2128 = vsel %vm2127, %v2119, %v2124
    %v2129 = vrsqrt.pop %v2118
    %v2130 = vmul.f32 %v2129, %v2118
    %v2131 = vmul.f32 %v2130, %v2129
    %v2132 = vmul.f32 0.5, %v2131
    %v2133 = vsub.f32 1.5, %v2132
    %v2134 = vmul.f32 %v2129, %v2133
    %vm2135 = vweird.f32 %v2118
    %vm2136 = vweird.f32 %v2129
    %vm2137 = vmor %vm2135, %vm2136
    %v2138 = vsel %vm2137, %v2129, %v2134
    %v2139 = vmul.f32 %v2105, %v2128
    %v2140 = vmul.f32 %v2106, %v2138
    %v2141 = vperm.slane %v1619, 3
    %v2142 = vmul.f32 %v2139, %v2141
    %v2143 = vmul.f32 %v2140, %v2141
    %v2144 = vperm.slane %v1619, 4
    %v2145 = vadd.f32 %v2142, %v2144
    %v2146 = vadd.f32 %v2143, %v2144
    %v2147 = vpack.c.bf16 %v2146, %v2145
    %s2148 = scalar_lea.vmem %s5, 128
    %v2149 = vld [vmem:[%s2148] sm:$0xff]
    %v2150 = vld [vmem:[%s2148 + $0x8] sm:$0xff]
    %v2151 = vld [vmem:[%s2148 + $0x10] sm:$0xff]
    %v2152 = vld [vmem:[%s2148 + $0x18] sm:$0xff]
    %v2153 = vld [vmem:[%s2148 + $0x20] sm:$0xff]
    %v2154 = vld [vmem:[%s2148 + $0x28] sm:$0xff]
    %v2155 = vld [vmem:[%s2148 + $0x30] sm:$0xff]
    %v2156 = vld [vmem:[%s2148 + $0x38] sm:$0xff]
    %s2157 = scalar_lea.vmem %s6, 4
    %v2158 = vld [vmem:[%s2157] sm:$0x3]
    %v2160 = vperm.slane %v2158, 0
    %v2161 = vperm.slane %v2158, 1
    %v2172 = vunpack.c.l.b16 %v2149
    %v2173 = vunpack.c.h.b16 %v2149
    %v2174 = vunpack.c.l.b16 %v2150
    %v2175 = vunpack.c.h.b16 %v2150
    %v2176 = vunpack.c.l.b16 %v2151
    %v2177 = vunpack.c.h.b16 %v2151
    %v2178 = vunpack.c.l.b16 %v2152
    %v2179 = vunpack.c.h.b16 %v2152
    %v2180 = vunpack.c.l.b16 %v2153
    %v2181 = vunpack.c.h.b16 %v2153
    %v2182 = vunpack.c.l.b16 %v2154
    %v2183 = vunpack.c.h.b16 %v2154
    %v2184 = vunpack.c.l.b16 %v2155
    %v2185 = vunpack.c.h.b16 %v2155
    %v2186 = vunpack.c.l.b16 %v2156
    %v2187 = vunpack.c.h.b16 %v2156
    %v2188 = vpack.c.b16 %v2174, %v2172
    %v2189 = vpack.c.b16 %v2175, %v2173
    %v2190 = vpack.c.b16 %v2178, %v2176
    %v2191 = vpack.c.b16 %v2179, %v2177
    %v2192 = vpack.c.b16 %v2182, %v2180
    %v2193 = vpack.c.b16 %v2183, %v2181
    %v2194 = vpack.c.b16 %v2186, %v2184
    %v2195 = vpack.c.b16 %v2187, %v2185
    %v2205 = vsel %vm48, %v2147, 0
    %2207 = vmatpush.bf16.msra.mxu0 0
    %2208 = vmatpush.bf16.msra.mxu0 0
    %2209 = vmatpush.bf16.msra.mxu0 0
    %2210 = vmatpush.bf16.msra.mxu0 0
    %2211 = vmatpush.bf16.msra.mxu0 %v2194
    %2212 = vmatpush.bf16.msra.mxu0 %v2192
    %2213 = vmatpush.bf16.msra.mxu0 %v2190
    %2214 = vmatpush.bf16.msra.mxu0 %v2188
    %2215 = vmatmul.bf16.gmra.mxu0 %v2205
    %v2216 = vpop.f32.mrf.mxu0
    %v2217 = vadd.f32 %v2160, %v2216
    %v2218 = vpop.f32.mrf.mxu0
    %v2219 = vadd.f32 %v2160, %v2218
    %2220 = vdwg.mxu0
    %2221 = vmatpush.bf16.msra.mxu0 0
    %2222 = vmatpush.bf16.msra.mxu0 0
    %2223 = vmatpush.bf16.msra.mxu0 0
    %2224 = vmatpush.bf16.msra.mxu0 0
    %2225 = vmatpush.bf16.msra.mxu0 %v2195
    %2226 = vmatpush.bf16.msra.mxu0 %v2193
    %2227 = vmatpush.bf16.msra.mxu0 %v2191
    %2228 = vmatpush.bf16.msra.mxu0 %v2189
    %2229 = vmatmul.bf16.gmra.mxu0 %v2205
    %v2230 = vpop.f32.mrf.mxu0
    %v2231 = vadd.f32 %v2161, %v2230
    %v2232 = vpop.f32.mrf.mxu0
    %v2233 = vadd.f32 %v2161, %v2232
    %2234 = vdwg.mxu0
    %v2235 = vmax.f32 %v2217, 0.0
    %v2236 = vmax.f32 %v2231, 0.0
    %v2237 = vmax.f32 %v2219, 0.0
    %v2238 = vmax.f32 %v2233, 0.0
    %v2239 = vpack.c.bf16 %v2237, %v2235
    %v2240 = vpack.c.bf16 %v2238, %v2236
    %s2241 = scalar_lea.vmem %s7, 256
    %v2242 = vld [vmem:[%s2241] sm:$0xf]
    %v2243 = vld [vmem:[%s2241 + $0x4] sm:$0xf]
    %v2244 = vld [vmem:[%s2241 + $0x8] sm:$0xf]
    %v2245 = vld [vmem:[%s2241 + $0xc] sm:$0xf]
    %v2246 = vld [vmem:[%s2241 + $0x10] sm:$0xf]
    %v2247 = vld [vmem:[%s2241 + $0x14] sm:$0xf]
    %v2248 = vld [vmem:[%s2241 + $0x18] sm:$0xf]
    %v2249 = vld [vmem:[%s2241 + $0x1c] sm:$0xf]
    %v2250 = vld [vmem:[%s2241 + $0x20] sm:$0xf]
    %v2251 = vld [vmem:[%s2241 + $0x24] sm:$0xf]
    %v2252 = vld [vmem:[%s2241 + $0x28] sm:$0xf]
    %v2253 = vld [vmem:[%s2241 + $0x2c] sm:$0xf]
    %v2254 = vld [vmem:[%s2241 + $0x30] sm:$0xf]
    %v2255 = vld [vmem:[%s2241 + $0x34] sm:$0xf]
    %v2256 = vld [vmem:[%s2241 + $0x38] sm:$0xf]
    %v2257 = vld [vmem:[%s2241 + $0x3c] sm:$0xf]
    %v2258 = vld [vmem:[%s2241 + $0x40] sm:$0xf]
    %v2259 = vld [vmem:[%s2241 + $0x44] sm:$0xf]
    %v2260 = vld [vmem:[%s2241 + $0x48] sm:$0xf]
    %v2261 = vld [vmem:[%s2241 + $0x4c] sm:$0xf]
    %v2262 = vld [vmem:[%s2241 + $0x50] sm:$0xf]
    %v2263 = vld [vmem:[%s2241 + $0x54] sm:$0xf]
    %v2264 = vld [vmem:[%s2241 + $0x58] sm:$0xf]
    %v2265 = vld [vmem:[%s2241 + $0x5c] sm:$0xf]
    %v2266 = vld [vmem:[%s2241 + $0x60] sm:$0xf]
    %v2267 = vld [vmem:[%s2241 + $0x64] sm:$0xf]
    %v2268 = vld [vmem:[%s2241 + $0x68] sm:$0xf]
    %v2269 = vld [vmem:[%s2241 + $0x6c] sm:$0xf]
    %v2270 = vld [vmem:[%s2241 + $0x70] sm:$0xf]
    %v2271 = vld [vmem:[%s2241 + $0x74] sm:$0xf]
    %v2272 = vld [vmem:[%s2241 + $0x78] sm:$0xf]
    %v2273 = vld [vmem:[%s2241 + $0x7c] sm:$0xf]
    %v2274 = vperm.slane %v1619, 5
    %v2307 = vunpack.c.l.b16 %v2242
    %v2308 = vunpack.c.l.b16 %v2243
    %v2309 = vunpack.c.l.b16 %v2244
    %v2310 = vunpack.c.l.b16 %v2245
    %v2311 = vunpack.c.l.b16 %v2246
    %v2312 = vunpack.c.l.b16 %v2247
    %v2313 = vunpack.c.l.b16 %v2248
    %v2314 = vunpack.c.l.b16 %v2249
    %v2315 = vunpack.c.l.b16 %v2250
    %v2316 = vunpack.c.l.b16 %v2251
    %v2317 = vunpack.c.l.b16 %v2252
    %v2318 = vunpack.c.l.b16 %v2253
    %v2319 = vunpack.c.l.b16 %v2254
    %v2320 = vunpack.c.l.b16 %v2255
    %v2321 = vunpack.c.l.b16 %v2256
    %v2322 = vunpack.c.l.b16 %v2257
    %v2323 = vunpack.c.l.b16 %v2258
    %v2324 = vunpack.c.l.b16 %v2259
    %v2325 = vunpack.c.l.b16 %v2260
    %v2326 = vunpack.c.l.b16 %v2261
    %v2327 = vunpack.c.l.b16 %v2262
    %v2328 = vunpack.c.l.b16 %v2263
    %v2329 = vunpack.c.l.b16 %v2264
    %v2330 = vunpack.c.l.b16 %v2265
    %v2331 = vunpack.c.l.b16 %v2266
    %v2332 = vunpack.c.l.b16 %v2267
    %v2333 = vunpack.c.l.b16 %v2268
    %v2334 = vunpack.c.l.b16 %v2269
    %v2335 = vunpack.c.l.b16 %v2270
    %v2336 = vunpack.c.l.b16 %v2271
    %v2337 = vunpack.c.l.b16 %v2272
    %v2338 = vunpack.c.l.b16 %v2273
    %v2339 = vpack.c.b16 %v2308, %v2307
    %v2340 = vpack.c.b16 %v2310, %v2309
    %v2341 = vpack.c.b16 %v2312, %v2311
    %v2342 = vpack.c.b16 %v2314, %v2313
    %v2343 = vpack.c.b16 %v2316, %v2315
    %v2344 = vpack.c.b16 %v2318, %v2317
    %v2345 = vpack.c.b16 %v2320, %v2319
    %v2346 = vpack.c.b16 %v2322, %v2321
    %v2347 = vpack.c.b16 %v2324, %v2323
    %v2348 = vpack.c.b16 %v2326, %v2325
    %v2349 = vpack.c.b16 %v2328, %v2327
    %v2350 = vpack.c.b16 %v2330, %v2329
    %v2351 = vpack.c.b16 %v2332, %v2331
    %v2352 = vpack.c.b16 %v2334, %v2333
    %v2353 = vpack.c.b16 %v2336, %v2335
    %v2354 = vpack.c.b16 %v2338, %v2337
    %2371 = vmatpush.bf16.msra.mxu0 %v2346
    %2372 = vmatpush.bf16.msra.mxu0 %v2345
    %2373 = vmatpush.bf16.msra.mxu0 %v2344
    %2374 = vmatpush.bf16.msra.mxu0 %v2343
    %2375 = vmatpush.bf16.msra.mxu0 %v2342
    %2376 = vmatpush.bf16.msra.mxu0 %v2341
    %2377 = vmatpush.bf16.msra.mxu0 %v2340
    %2378 = vmatpush.bf16.msra.mxu0 %v2339
    %2379 = vmatmul.bf16.gmra.mxu0 %v2239
    %v2380 = vpop.f32.mrf.mxu0
    %v2381 = vadd.f32 %v2274, %v2380
    %v2382 = vpop.f32.mrf.mxu0
    %v2383 = vadd.f32 %v2274, %v2382
    %2384 = vdwg.mxu0
    %2385 = vmatpush.bf16.msra.mxu0 %v2354
    %2386 = vmatpush.bf16.msra.mxu0 %v2353
    %2387 = vmatpush.bf16.msra.mxu0 %v2352
    %2388 = vmatpush.bf16.msra.mxu0 %v2351
    %2389 = vmatpush.bf16.msra.mxu0 %v2350
    %2390 = vmatpush.bf16.msra.mxu0 %v2349
    %2391 = vmatpush.bf16.msra.mxu0 %v2348
    %2392 = vmatpush.bf16.msra.mxu0 %v2347
    %2393 = vmatmul.bf16.gmra.mxu0 %v2240
    %v2394 = vpop.f32.mrf.mxu0
    %v2395 = vadd.f32 %v2381, %v2394
    %v2396 = vpop.f32.mrf.mxu0
    %v2397 = vadd.f32 %v2383, %v2396
    %2398 = vdwg.mxu0
    %v2399 = vadd.f32 %v2095, %v2395
    %v2400 = vadd.f32 %v2096, %v2397
    %s2401 = scalar_lea.vmem %s4, 24
    %v2402 = vld [vmem:[%s2401] sm:$0x3f]
    %v2403 = vsel %vm48, %v2399, 0.0
    %2404 = vadd.xlane.f32.xlu0 %v2403
    %v2405 = vpop.xlane.xlu0 %2404
    %v2406 = vsel %vm48, %v2400, 0.0
    %2407 = vadd.xlane.f32.xlu0 %v2406
    %v2408 = vpop.xlane.xlu0 %2407
    %v2409 = vmul.f32 %v2405, %v61
    %v2410 = vmul.f32 %v2408, %v61
    %v2411 = vsub.f32 %v2399, %v2409
    %v2412 = vsub.f32 %v2400, %v2410
    %v2413 = vmul.f32 %v2411, %v2411
    %v2414 = vmul.f32 %v2412, %v2412
    %v2415 = vsel %vm48, %v2413, 0.0
    %2416 = vadd.xlane.f32.xlu0 %v2415
    %v2417 = vpop.xlane.xlu0 %2416
    %v2418 = vsel %vm48, %v2414, 0.0
    %2419 = vadd.xlane.f32.xlu0 %v2418
    %v2420 = vpop.xlane.xlu0 %2419
    %v2421 = vmul.f32 %v2417, %v61
    %v2422 = vmul.f32 %v2420, %v61
    %v2423 = vadd.f32 %v2421, 1e-05
    %v2424 = vadd.f32 %v2422, 1e-05
    %v2425 = vrsqrt.pop %v2423
    %v2426 = vmul.f32 %v2425, %v2423
    %v2427 = vmul.f32 %v2426, %v2425
    %v2428 = vmul.f32 0.5, %v2427
    %v2429 = vsub.f32 1.5, %v2428
    %v2430 = vmul.f32 %v2425, %v2429
    %vm2431 = vweird.f32 %v2423
    %vm2432 = vweird.f32 %v2425
    %vm2433 = vmor %vm2431, %vm2432
    %v2434 = vsel %vm2433, %v2425, %v2430
    %v2435 = vrsqrt.pop %v2424
    %v2436 = vmul.f32 %v2435, %v2424
    %v2437 = vmul.f32 %v2436, %v2435
    %v2438 = vmul.f32 0.5, %v2437
    %v2439 = vsub.f32 1.5, %v2438
    %v2440 = vmul.f32 %v2435, %v2439
    %vm2441 = vweird.f32 %v2424
    %vm2442 = vweird.f32 %v2435
    %vm2443 = vmor %vm2441, %vm2442
    %v2444 = vsel %vm2443, %v2435, %v2440
    %v2445 = vmul.f32 %v2411, %v2434
    %v2446 = vmul.f32 %v2412, %v2444
    %v2447 = vperm.slane %v2402, 1
    %v2448 = vmul.f32 %v2445, %v2447
    %v2449 = vmul.f32 %v2446, %v2447
    %v2450 = vperm.slane %v2402, 2
    %v2451 = vadd.f32 %v2448, %v2450
    %v2452 = vadd.f32 %v2449, %v2450
    %v2453 = vpack.c.bf16 %v2452, %v2451
    %s2454 = scalar_lea.vmem %s2, 192
    %v2455 = vld [vmem:[%s2454] sm:$0xff]
    %v2456 = vld [vmem:[%s2454 + $0x8] sm:$0xff]
    %v2457 = vld [vmem:[%s2454 + $0x10] sm:$0xff]
    %v2458 = vld [vmem:[%s2454 + $0x18] sm:$0xff]
    %v2459 = vld [vmem:[%s2454 + $0x20] sm:$0xff]
    %v2460 = vld [vmem:[%s2454 + $0x28] sm:$0xff]
    %v2461 = vld [vmem:[%s2454 + $0x30] sm:$0xff]
    %v2462 = vld [vmem:[%s2454 + $0x38] sm:$0xff]
    %v2471 = vunpack.c.l.b16 %v2455
    %v2472 = vunpack.c.h.b16 %v2455
    %v2473 = vunpack.c.l.b16 %v2456
    %v2474 = vunpack.c.h.b16 %v2456
    %v2475 = vunpack.c.l.b16 %v2457
    %v2476 = vunpack.c.h.b16 %v2457
    %v2477 = vunpack.c.l.b16 %v2458
    %v2478 = vunpack.c.h.b16 %v2458
    %v2479 = vunpack.c.l.b16 %v2459
    %v2480 = vunpack.c.h.b16 %v2459
    %v2481 = vunpack.c.l.b16 %v2460
    %v2482 = vunpack.c.h.b16 %v2460
    %v2483 = vunpack.c.l.b16 %v2461
    %v2484 = vunpack.c.h.b16 %v2461
    %v2485 = vunpack.c.l.b16 %v2462
    %v2486 = vunpack.c.h.b16 %v2462
    %v2487 = vpack.c.b16 %v2473, %v2471
    %v2488 = vpack.c.b16 %v2474, %v2472
    %v2489 = vpack.c.b16 %v2477, %v2475
    %v2490 = vpack.c.b16 %v2478, %v2476
    %v2491 = vpack.c.b16 %v2481, %v2479
    %v2492 = vpack.c.b16 %v2482, %v2480
    %v2493 = vpack.c.b16 %v2485, %v2483
    %v2494 = vpack.c.b16 %v2486, %v2484
    %v2504 = vsel %vm48, %v2453, 0
    %2506 = vmatpush.bf16.msra.mxu0 0
    %2507 = vmatpush.bf16.msra.mxu0 0
    %2508 = vmatpush.bf16.msra.mxu0 0
    %2509 = vmatpush.bf16.msra.mxu0 0
    %2510 = vmatpush.bf16.msra.mxu0 %v2493
    %2511 = vmatpush.bf16.msra.mxu0 %v2491
    %2512 = vmatpush.bf16.msra.mxu0 %v2489
    %2513 = vmatpush.bf16.msra.mxu0 %v2487
    %2514 = vmatmul.bf16.gmra.mxu0 %v2504
    %v2515 = vpop.f32.mrf.mxu0
    %v2516 = vadd.f32 0.0, %v2515
    %v2517 = vpop.f32.mrf.mxu0
    %v2518 = vadd.f32 0.0, %v2517
    %2519 = vdwg.mxu0
    %2520 = vmatpush.bf16.msra.mxu0 0
    %2521 = vmatpush.bf16.msra.mxu0 0
    %2522 = vmatpush.bf16.msra.mxu0 0
    %2523 = vmatpush.bf16.msra.mxu0 0
    %2524 = vmatpush.bf16.msra.mxu0 %v2494
    %2525 = vmatpush.bf16.msra.mxu0 %v2492
    %2526 = vmatpush.bf16.msra.mxu0 %v2490
    %2527 = vmatpush.bf16.msra.mxu0 %v2488
    %2528 = vmatmul.bf16.gmra.mxu0 %v2504
    %v2529 = vpop.f32.mrf.mxu0
    %v2530 = vadd.f32 0.0, %v2529
    %v2531 = vpop.f32.mrf.mxu0
    %v2532 = vadd.f32 0.0, %v2531
    %2533 = vdwg.mxu0
    %2536 = vrot.lane.b32.xlu0 %v2516, 112
    %v2537 = vpop.permute.xlu0 %2536
    %2538 = vrot.lane.b32.xlu0 %v2518, 112
    %v2539 = vpop.permute.xlu0 %2538
    %2542 = vrot.lane.b32.xlu0 %v2516, 96
    %v2543 = vpop.permute.xlu0 %2542
    %2544 = vrot.lane.b32.xlu0 %v2518, 96
    %v2545 = vpop.permute.xlu0 %2544
    %2548 = vrot.lane.b32.xlu0 %v2516, 80
    %v2549 = vpop.permute.xlu0 %2548
    %2550 = vrot.lane.b32.xlu0 %v2518, 80
    %v2551 = vpop.permute.xlu0 %2550
    %v2554 = vpack.c.bf16 %v2518, %v2516
    %v2555 = vpack.c.bf16 %v2539, %v2537
    %v2556 = vpack.c.bf16 %v2545, %v2543
    %v2557 = vpack.c.bf16 %v2551, %v2549
    %2560 = vrot.lane.b32.xlu0 %v2530, 112
    %v2561 = vpop.permute.xlu0 %2560
    %2562 = vrot.lane.b32.xlu0 %v2532, 112
    %v2563 = vpop.permute.xlu0 %2562
    %2566 = vrot.lane.b32.xlu0 %v2530, 96
    %v2567 = vpop.permute.xlu0 %2566
    %2568 = vrot.lane.b32.xlu0 %v2532, 96
    %v2569 = vpop.permute.xlu0 %2568
    %2572 = vrot.lane.b32.xlu0 %v2530, 80
    %v2573 = vpop.permute.xlu0 %2572
    %2574 = vrot.lane.b32.xlu0 %v2532, 80
    %v2575 = vpop.permute.xlu0 %2574
    %v2578 = vpack.c.bf16 %v2532, %v2530
    %v2579 = vpack.c.bf16 %v2563, %v2561
    %v2580 = vpack.c.bf16 %v2569, %v2567
    %v2581 = vpack.c.bf16 %v2575, %v2573
    %2586 = vrot.lane.b32.xlu0 %v2554, 64
    %v2587 = vpop.permute.xlu0 %2586
    %2588 = vrot.lane.b32.xlu0 %v2555, 64
    %v2589 = vpop.permute.xlu0 %2588
    %2590 = vrot.lane.b32.xlu0 %v2556, 64
    %v2591 = vpop.permute.xlu0 %2590
    %2592 = vrot.lane.b32.xlu0 %v2557, 64
    %v2593 = vpop.permute.xlu0 %2592
    %v2595 = vsel %vm246, %v2554, 0
    %v2598 = vsel %vm246, %v2555, 0
    %v2601 = vsel %vm246, %v2556, 0
    %v2604 = vsel %vm246, %v2557, 0
    %v2607 = vsel %vm246, %v2587, 0
    %v2610 = vsel %vm246, %v2589, 0
    %v2613 = vsel %vm246, %v2591, 0
    %v2616 = vsel %vm246, %v2593, 0
    %2618 = vmatpush.bf16.xpose.msra.mxu0 0
    %2619 = vmatpush.bf16.xpose.msra.mxu0 0
    %2620 = vmatpush.bf16.xpose.msra.mxu0 0
    %2621 = vmatpush.bf16.xpose.msra.mxu0 0
    %2622 = vmatpush.bf16.xpose.msra.mxu0 %v2616
    %2623 = vmatpush.bf16.xpose.msra.mxu0 %v2613
    %2624 = vmatpush.bf16.xpose.msra.mxu0 %v2610
    %2625 = vmatpush.bf16.xpose.msra.mxu0 %v2607
    %2626 = vmatmul.bf16.gmra.mxu0 %v2595
    %v2627 = vpop.f32.mrf.mxu0
    %v2628 = vadd.f32 0.0, %v2627
    %v2629 = vpop.f32.mrf.mxu0
    %v2630 = vadd.f32 0.0, %v2629
    %2631 = vmatmul.bf16.gmra.mxu0 %v2598
    %v2632 = vpop.f32.mrf.mxu0
    %v2633 = vadd.f32 0.0, %v2632
    %v2634 = vpop.f32.mrf.mxu0
    %v2635 = vadd.f32 0.0, %v2634
    %2636 = vmatmul.bf16.gmra.mxu0 %v2601
    %v2637 = vpop.f32.mrf.mxu0
    %v2638 = vadd.f32 0.0, %v2637
    %v2639 = vpop.f32.mrf.mxu0
    %v2640 = vadd.f32 0.0, %v2639
    %2641 = vmatmul.bf16.gmra.mxu0 %v2604
    %v2642 = vpop.f32.mrf.mxu0
    %v2643 = vadd.f32 0.0, %v2642
    %v2644 = vpop.f32.mrf.mxu0
    %v2645 = vadd.f32 0.0, %v2644
    %2646 = vdwg.mxu0
    %v2647 = vmul.f32 %v2628, 0.125
    %v2648 = vmul.f32 %v2630, 0.125
    %v2649 = vmul.f32 %v2633, 0.125
    %v2650 = vmul.f32 %v2635, 0.125
    %v2651 = vmul.f32 %v2638, 0.125
    %v2652 = vmul.f32 %v2640, 0.125
    %v2653 = vmul.f32 %v2643, 0.125
    %v2654 = vmul.f32 %v2645, 0.125
    %v2655 = vadd.f32 %v2647, %v39
    %v2656 = vadd.f32 %v2648, %v40
    %v2657 = vadd.f32 %v2649, %v41
    %v2658 = vadd.f32 %v2650, %v42
    %v2659 = vadd.f32 %v2651, %v43
    %v2660 = vadd.f32 %v2652, %v44
    %v2661 = vadd.f32 %v2653, %v45
    %v2662 = vadd.f32 %v2654, %v46
    %v2663 = vsel %vm48, %v2655, -inf
    %2664 = vmax.xlane.f32.xlu0 %v2663
    %v2665 = vpop.xlane.xlu0 %2664
    %v2666 = vsel %vm48, %v2656, -inf
    %2667 = vmax.xlane.f32.xlu0 %v2666
    %v2668 = vpop.xlane.xlu0 %2667
    %v2669 = vsel %vm48, %v2657, -inf
    %2670 = vmax.xlane.f32.xlu0 %v2669
    %v2671 = vpop.xlane.xlu0 %2670
    %v2672 = vsel %vm48, %v2658, -inf
    %2673 = vmax.xlane.f32.xlu0 %v2672
    %v2674 = vpop.xlane.xlu0 %2673
    %v2675 = vsel %vm48, %v2659, -inf
    %2676 = vmax.xlane.f32.xlu0 %v2675
    %v2677 = vpop.xlane.xlu0 %2676
    %v2678 = vsel %vm48, %v2660, -inf
    %2679 = vmax.xlane.f32.xlu0 %v2678
    %v2680 = vpop.xlane.xlu0 %2679
    %v2681 = vsel %vm48, %v2661, -inf
    %2682 = vmax.xlane.f32.xlu0 %v2681
    %v2683 = vpop.xlane.xlu0 %2682
    %v2684 = vsel %vm48, %v2662, -inf
    %2685 = vmax.xlane.f32.xlu0 %v2684
    %v2686 = vpop.xlane.xlu0 %2685
    %v2687 = vsub.f32 %v2655, %v2665
    %v2688 = vsub.f32 %v2656, %v2668
    %v2689 = vsub.f32 %v2657, %v2671
    %v2690 = vsub.f32 %v2658, %v2674
    %v2691 = vsub.f32 %v2659, %v2677
    %v2692 = vsub.f32 %v2660, %v2680
    %v2693 = vsub.f32 %v2661, %v2683
    %v2694 = vsub.f32 %v2662, %v2686
    %v2695 = vmul.f32 %v2687, 1.442695
    %v2696 = vpow.pop %v2695
    %v2697 = vmul.f32 %v2688, 1.442695
    %v2698 = vpow.pop %v2697
    %v2699 = vmul.f32 %v2689, 1.442695
    %v2700 = vpow.pop %v2699
    %v2701 = vmul.f32 %v2690, 1.442695
    %v2702 = vpow.pop %v2701
    %v2703 = vmul.f32 %v2691, 1.442695
    %v2704 = vpow.pop %v2703
    %v2705 = vmul.f32 %v2692, 1.442695
    %v2706 = vpow.pop %v2705
    %v2707 = vmul.f32 %v2693, 1.442695
    %v2708 = vpow.pop %v2707
    %v2709 = vmul.f32 %v2694, 1.442695
    %v2710 = vpow.pop %v2709
    %v2711 = vsel %vm48, %v2696, 0.0
    %2712 = vadd.xlane.f32.xlu0 %v2711
    %v2713 = vpop.xlane.xlu0 %2712
    %v2714 = vsel %vm48, %v2698, 0.0
    %2715 = vadd.xlane.f32.xlu0 %v2714
    %v2716 = vpop.xlane.xlu0 %2715
    %v2717 = vsel %vm48, %v2700, 0.0
    %2718 = vadd.xlane.f32.xlu0 %v2717
    %v2719 = vpop.xlane.xlu0 %2718
    %v2720 = vsel %vm48, %v2702, 0.0
    %2721 = vadd.xlane.f32.xlu0 %v2720
    %v2722 = vpop.xlane.xlu0 %2721
    %v2723 = vsel %vm48, %v2704, 0.0
    %2724 = vadd.xlane.f32.xlu0 %v2723
    %v2725 = vpop.xlane.xlu0 %2724
    %v2726 = vsel %vm48, %v2706, 0.0
    %2727 = vadd.xlane.f32.xlu0 %v2726
    %v2728 = vpop.xlane.xlu0 %2727
    %v2729 = vsel %vm48, %v2708, 0.0
    %2730 = vadd.xlane.f32.xlu0 %v2729
    %v2731 = vpop.xlane.xlu0 %2730
    %v2732 = vsel %vm48, %v2710, 0.0
    %2733 = vadd.xlane.f32.xlu0 %v2732
    %v2734 = vpop.xlane.xlu0 %2733
    %v2735 = vrcp.pop %v2713
    %v2736 = vrcp.pop %v2716
    %v2737 = vrcp.pop %v2719
    %v2738 = vrcp.pop %v2722
    %v2739 = vrcp.pop %v2725
    %v2740 = vrcp.pop %v2728
    %v2741 = vrcp.pop %v2731
    %v2742 = vrcp.pop %v2734
    %v2743 = vmul.f32 %v2696, %v2735
    %v2744 = vmul.f32 %v2698, %v2736
    %v2745 = vmul.f32 %v2700, %v2737
    %v2746 = vmul.f32 %v2702, %v2738
    %v2747 = vmul.f32 %v2704, %v2739
    %v2748 = vmul.f32 %v2706, %v2740
    %v2749 = vmul.f32 %v2708, %v2741
    %v2750 = vmul.f32 %v2710, %v2742
    %v2751 = vpack.c.bf16 %v2744, %v2743
    %v2752 = vpack.c.bf16 %v2746, %v2745
    %v2753 = vpack.c.bf16 %v2748, %v2747
    %v2754 = vpack.c.bf16 %v2750, %v2749
    %v2756 = vsel %vm48, %v2751, 0
    %v2759 = vsel %vm48, %v2752, 0
    %v2762 = vsel %vm48, %v2753, 0
    %v2765 = vsel %vm48, %v2754, 0
    %2767 = vmatpush.bf16.msra.mxu0 0
    %2768 = vmatpush.bf16.msra.mxu0 0
    %2769 = vmatpush.bf16.msra.mxu0 0
    %2770 = vmatpush.bf16.msra.mxu0 0
    %2771 = vmatpush.bf16.msra.mxu0 %v2581
    %2772 = vmatpush.bf16.msra.mxu0 %v2580
    %2773 = vmatpush.bf16.msra.mxu0 %v2579
    %2774 = vmatpush.bf16.msra.mxu0 %v2578
    %2775 = vmatmul.bf16.gmra.mxu0 %v2756
    %v2776 = vpop.f32.mrf.mxu0
    %v2777 = vadd.f32 0.0, %v2776
    %v2778 = vpop.f32.mrf.mxu0
    %v2779 = vadd.f32 0.0, %v2778
    %2780 = vmatmul.bf16.gmra.mxu0 %v2759
    %v2781 = vpop.f32.mrf.mxu0
    %v2782 = vadd.f32 0.0, %v2781
    %v2783 = vpop.f32.mrf.mxu0
    %v2784 = vadd.f32 0.0, %v2783
    %2785 = vmatmul.bf16.gmra.mxu0 %v2762
    %v2786 = vpop.f32.mrf.mxu0
    %v2787 = vadd.f32 0.0, %v2786
    %v2788 = vpop.f32.mrf.mxu0
    %v2789 = vadd.f32 0.0, %v2788
    %2790 = vmatmul.bf16.gmra.mxu0 %v2765
    %v2791 = vpop.f32.mrf.mxu0
    %v2792 = vadd.f32 0.0, %v2791
    %v2793 = vpop.f32.mrf.mxu0
    %v2794 = vadd.f32 0.0, %v2793
    %2795 = vdwg.mxu0
    %2798 = vrot.lane.b32.xlu0 %v2782, 16
    %v2799 = vpop.permute.xlu0 %2798
    %2800 = vrot.lane.b32.xlu0 %v2784, 16
    %v2801 = vpop.permute.xlu0 %2800
    %2806 = vrot.lane.b32.xlu0 %v2787, 32
    %v2807 = vpop.permute.xlu0 %2806
    %2808 = vrot.lane.b32.xlu0 %v2789, 32
    %v2809 = vpop.permute.xlu0 %2808
    %2814 = vrot.lane.b32.xlu0 %v2792, 48
    %v2815 = vpop.permute.xlu0 %2814
    %2816 = vrot.lane.b32.xlu0 %v2794, 48
    %v2817 = vpop.permute.xlu0 %2816
    %v2820 = vsel %vm246, %v2777, %v2799
    %v2821 = vsel %vm246, %v2779, %v2801
    %v2822 = vsel %vm475, %v2820, %v2807
    %v2823 = vsel %vm475, %v2821, %v2809
    %v2824 = vsel %vm478, %v2822, %v2815
    %v2825 = vsel %vm478, %v2823, %v2817
    %v2826 = vpack.c.bf16 %v2825, %v2824
    %s2827 = scalar_lea.vmem %s3, 96
    %v2828 = vld [vmem:[%s2827] sm:$0xf]
    %v2829 = vld [vmem:[%s2827 + $0x4] sm:$0xf]
    %v2830 = vld [vmem:[%s2827 + $0x8] sm:$0xf]
    %v2831 = vld [vmem:[%s2827 + $0xc] sm:$0xf]
    %v2832 = vld [vmem:[%s2827 + $0x10] sm:$0xf]
    %v2833 = vld [vmem:[%s2827 + $0x14] sm:$0xf]
    %v2834 = vld [vmem:[%s2827 + $0x18] sm:$0xf]
    %v2835 = vld [vmem:[%s2827 + $0x1c] sm:$0xf]
    %v2836 = vperm.slane %v2402, 0
    %v2845 = vunpack.c.l.b16 %v2828
    %v2846 = vunpack.c.l.b16 %v2829
    %v2847 = vunpack.c.l.b16 %v2830
    %v2848 = vunpack.c.l.b16 %v2831
    %v2849 = vunpack.c.l.b16 %v2832
    %v2850 = vunpack.c.l.b16 %v2833
    %v2851 = vunpack.c.l.b16 %v2834
    %v2852 = vunpack.c.l.b16 %v2835
    %v2853 = vpack.c.b16 %v2846, %v2845
    %v2854 = vpack.c.b16 %v2848, %v2847
    %v2855 = vpack.c.b16 %v2850, %v2849
    %v2856 = vpack.c.b16 %v2852, %v2851
    %v2862 = vsel %vm48, %v2826, 0
    %2864 = vmatpush.bf16.msra.mxu0 0
    %2865 = vmatpush.bf16.msra.mxu0 0
    %2866 = vmatpush.bf16.msra.mxu0 0
    %2867 = vmatpush.bf16.msra.mxu0 0
    %2868 = vmatpush.bf16.msra.mxu0 %v2856
    %2869 = vmatpush.bf16.msra.mxu0 %v2855
    %2870 = vmatpush.bf16.msra.mxu0 %v2854
    %2871 = vmatpush.bf16.msra.mxu0 %v2853
    %2872 = vmatmul.bf16.gmra.mxu0 %v2862
    %v2873 = vpop.f32.mrf.mxu0
    %v2874 = vadd.f32 %v2836, %v2873
    %v2875 = vpop.f32.mrf.mxu0
    %v2876 = vadd.f32 %v2836, %v2875
    %2877 = vdwg.mxu0
    %v2878 = vadd.f32 %v2399, %v2874
    %v2879 = vadd.f32 %v2400, %v2876
    %v2880 = vsel %vm48, %v2878, 0.0
    %2881 = vadd.xlane.f32.xlu0 %v2880
    %v2882 = vpop.xlane.xlu0 %2881
    %v2883 = vsel %vm48, %v2879, 0.0
    %2884 = vadd.xlane.f32.xlu0 %v2883
    %v2885 = vpop.xlane.xlu0 %2884
    %v2886 = vmul.f32 %v2882, %v61
    %v2887 = vmul.f32 %v2885, %v61
    %v2888 = vsub.f32 %v2878, %v2886
    %v2889 = vsub.f32 %v2879, %v2887
    %v2890 = vmul.f32 %v2888, %v2888
    %v2891 = vmul.f32 %v2889, %v2889
    %v2892 = vsel %vm48, %v2890, 0.0
    %2893 = vadd.xlane.f32.xlu0 %v2892
    %v2894 = vpop.xlane.xlu0 %2893
    %v2895 = vsel %vm48, %v2891, 0.0
    %2896 = vadd.xlane.f32.xlu0 %v2895
    %v2897 = vpop.xlane.xlu0 %2896
    %v2898 = vmul.f32 %v2894, %v61
    %v2899 = vmul.f32 %v2897, %v61
    %v2900 = vadd.f32 %v2898, 1e-05
    %v2901 = vadd.f32 %v2899, 1e-05
    %v2902 = vrsqrt.pop %v2900
    %v2903 = vmul.f32 %v2902, %v2900
    %v2904 = vmul.f32 %v2903, %v2902
    %v2905 = vmul.f32 0.5, %v2904
    %v2906 = vsub.f32 1.5, %v2905
    %v2907 = vmul.f32 %v2902, %v2906
    %vm2908 = vweird.f32 %v2900
    %vm2909 = vweird.f32 %v2902
    %vm2910 = vmor %vm2908, %vm2909
    %v2911 = vsel %vm2910, %v2902, %v2907
    %v2912 = vrsqrt.pop %v2901
    %v2913 = vmul.f32 %v2912, %v2901
    %v2914 = vmul.f32 %v2913, %v2912
    %v2915 = vmul.f32 0.5, %v2914
    %v2916 = vsub.f32 1.5, %v2915
    %v2917 = vmul.f32 %v2912, %v2916
    %vm2918 = vweird.f32 %v2901
    %vm2919 = vweird.f32 %v2912
    %vm2920 = vmor %vm2918, %vm2919
    %v2921 = vsel %vm2920, %v2912, %v2917
    %v2922 = vmul.f32 %v2888, %v2911
    %v2923 = vmul.f32 %v2889, %v2921
    %v2924 = vperm.slane %v2402, 3
    %v2925 = vmul.f32 %v2922, %v2924
    %v2926 = vmul.f32 %v2923, %v2924
    %v2927 = vperm.slane %v2402, 4
    %v2928 = vadd.f32 %v2925, %v2927
    %v2929 = vadd.f32 %v2926, %v2927
    %v2930 = vpack.c.bf16 %v2929, %v2928
    %s2931 = scalar_lea.vmem %s5, 192
    %v2932 = vld [vmem:[%s2931] sm:$0xff]
    %v2933 = vld [vmem:[%s2931 + $0x8] sm:$0xff]
    %v2934 = vld [vmem:[%s2931 + $0x10] sm:$0xff]
    %v2935 = vld [vmem:[%s2931 + $0x18] sm:$0xff]
    %v2936 = vld [vmem:[%s2931 + $0x20] sm:$0xff]
    %v2937 = vld [vmem:[%s2931 + $0x28] sm:$0xff]
    %v2938 = vld [vmem:[%s2931 + $0x30] sm:$0xff]
    %v2939 = vld [vmem:[%s2931 + $0x38] sm:$0xff]
    %s2940 = scalar_lea.vmem %s6, 6
    %v2941 = vld [vmem:[%s2940] sm:$0x3]
    %v2943 = vperm.slane %v2941, 0
    %v2944 = vperm.slane %v2941, 1
    %v2955 = vunpack.c.l.b16 %v2932
    %v2956 = vunpack.c.h.b16 %v2932
    %v2957 = vunpack.c.l.b16 %v2933
    %v2958 = vunpack.c.h.b16 %v2933
    %v2959 = vunpack.c.l.b16 %v2934
    %v2960 = vunpack.c.h.b16 %v2934
    %v2961 = vunpack.c.l.b16 %v2935
    %v2962 = vunpack.c.h.b16 %v2935
    %v2963 = vunpack.c.l.b16 %v2936
    %v2964 = vunpack.c.h.b16 %v2936
    %v2965 = vunpack.c.l.b16 %v2937
    %v2966 = vunpack.c.h.b16 %v2937
    %v2967 = vunpack.c.l.b16 %v2938
    %v2968 = vunpack.c.h.b16 %v2938
    %v2969 = vunpack.c.l.b16 %v2939
    %v2970 = vunpack.c.h.b16 %v2939
    %v2971 = vpack.c.b16 %v2957, %v2955
    %v2972 = vpack.c.b16 %v2958, %v2956
    %v2973 = vpack.c.b16 %v2961, %v2959
    %v2974 = vpack.c.b16 %v2962, %v2960
    %v2975 = vpack.c.b16 %v2965, %v2963
    %v2976 = vpack.c.b16 %v2966, %v2964
    %v2977 = vpack.c.b16 %v2969, %v2967
    %v2978 = vpack.c.b16 %v2970, %v2968
    %v2988 = vsel %vm48, %v2930, 0
    %2990 = vmatpush.bf16.msra.mxu0 0
    %2991 = vmatpush.bf16.msra.mxu0 0
    %2992 = vmatpush.bf16.msra.mxu0 0
    %2993 = vmatpush.bf16.msra.mxu0 0
    %2994 = vmatpush.bf16.msra.mxu0 %v2977
    %2995 = vmatpush.bf16.msra.mxu0 %v2975
    %2996 = vmatpush.bf16.msra.mxu0 %v2973
    %2997 = vmatpush.bf16.msra.mxu0 %v2971
    %2998 = vmatmul.bf16.gmra.mxu0 %v2988
    %v2999 = vpop.f32.mrf.mxu0
    %v3000 = vadd.f32 %v2943, %v2999
    %v3001 = vpop.f32.mrf.mxu0
    %v3002 = vadd.f32 %v2943, %v3001
    %3003 = vdwg.mxu0
    %3004 = vmatpush.bf16.msra.mxu0 0
    %3005 = vmatpush.bf16.msra.mxu0 0
    %3006 = vmatpush.bf16.msra.mxu0 0
    %3007 = vmatpush.bf16.msra.mxu0 0
    %3008 = vmatpush.bf16.msra.mxu0 %v2978
    %3009 = vmatpush.bf16.msra.mxu0 %v2976
    %3010 = vmatpush.bf16.msra.mxu0 %v2974
    %3011 = vmatpush.bf16.msra.mxu0 %v2972
    %3012 = vmatmul.bf16.gmra.mxu0 %v2988
    %v3013 = vpop.f32.mrf.mxu0
    %v3014 = vadd.f32 %v2944, %v3013
    %v3015 = vpop.f32.mrf.mxu0
    %v3016 = vadd.f32 %v2944, %v3015
    %3017 = vdwg.mxu0
    %v3018 = vmax.f32 %v3000, 0.0
    %v3019 = vmax.f32 %v3014, 0.0
    %v3020 = vmax.f32 %v3002, 0.0
    %v3021 = vmax.f32 %v3016, 0.0
    %v3022 = vpack.c.bf16 %v3020, %v3018
    %v3023 = vpack.c.bf16 %v3021, %v3019
    %s3024 = scalar_lea.vmem %s7, 384
    %v3025 = vld [vmem:[%s3024] sm:$0xf]
    %v3026 = vld [vmem:[%s3024 + $0x4] sm:$0xf]
    %v3027 = vld [vmem:[%s3024 + $0x8] sm:$0xf]
    %v3028 = vld [vmem:[%s3024 + $0xc] sm:$0xf]
    %v3029 = vld [vmem:[%s3024 + $0x10] sm:$0xf]
    %v3030 = vld [vmem:[%s3024 + $0x14] sm:$0xf]
    %v3031 = vld [vmem:[%s3024 + $0x18] sm:$0xf]
    %v3032 = vld [vmem:[%s3024 + $0x1c] sm:$0xf]
    %v3033 = vld [vmem:[%s3024 + $0x20] sm:$0xf]
    %v3034 = vld [vmem:[%s3024 + $0x24] sm:$0xf]
    %v3035 = vld [vmem:[%s3024 + $0x28] sm:$0xf]
    %v3036 = vld [vmem:[%s3024 + $0x2c] sm:$0xf]
    %v3037 = vld [vmem:[%s3024 + $0x30] sm:$0xf]
    %v3038 = vld [vmem:[%s3024 + $0x34] sm:$0xf]
    %v3039 = vld [vmem:[%s3024 + $0x38] sm:$0xf]
    %v3040 = vld [vmem:[%s3024 + $0x3c] sm:$0xf]
    %v3041 = vld [vmem:[%s3024 + $0x40] sm:$0xf]
    %v3042 = vld [vmem:[%s3024 + $0x44] sm:$0xf]
    %v3043 = vld [vmem:[%s3024 + $0x48] sm:$0xf]
    %v3044 = vld [vmem:[%s3024 + $0x4c] sm:$0xf]
    %v3045 = vld [vmem:[%s3024 + $0x50] sm:$0xf]
    %v3046 = vld [vmem:[%s3024 + $0x54] sm:$0xf]
    %v3047 = vld [vmem:[%s3024 + $0x58] sm:$0xf]
    %v3048 = vld [vmem:[%s3024 + $0x5c] sm:$0xf]
    %v3049 = vld [vmem:[%s3024 + $0x60] sm:$0xf]
    %v3050 = vld [vmem:[%s3024 + $0x64] sm:$0xf]
    %v3051 = vld [vmem:[%s3024 + $0x68] sm:$0xf]
    %v3052 = vld [vmem:[%s3024 + $0x6c] sm:$0xf]
    %v3053 = vld [vmem:[%s3024 + $0x70] sm:$0xf]
    %v3054 = vld [vmem:[%s3024 + $0x74] sm:$0xf]
    %v3055 = vld [vmem:[%s3024 + $0x78] sm:$0xf]
    %v3056 = vld [vmem:[%s3024 + $0x7c] sm:$0xf]
    %v3057 = vperm.slane %v2402, 5
    %v3090 = vunpack.c.l.b16 %v3025
    %v3091 = vunpack.c.l.b16 %v3026
    %v3092 = vunpack.c.l.b16 %v3027
    %v3093 = vunpack.c.l.b16 %v3028
    %v3094 = vunpack.c.l.b16 %v3029
    %v3095 = vunpack.c.l.b16 %v3030
    %v3096 = vunpack.c.l.b16 %v3031
    %v3097 = vunpack.c.l.b16 %v3032
    %v3098 = vunpack.c.l.b16 %v3033
    %v3099 = vunpack.c.l.b16 %v3034
    %v3100 = vunpack.c.l.b16 %v3035
    %v3101 = vunpack.c.l.b16 %v3036
    %v3102 = vunpack.c.l.b16 %v3037
    %v3103 = vunpack.c.l.b16 %v3038
    %v3104 = vunpack.c.l.b16 %v3039
    %v3105 = vunpack.c.l.b16 %v3040
    %v3106 = vunpack.c.l.b16 %v3041
    %v3107 = vunpack.c.l.b16 %v3042
    %v3108 = vunpack.c.l.b16 %v3043
    %v3109 = vunpack.c.l.b16 %v3044
    %v3110 = vunpack.c.l.b16 %v3045
    %v3111 = vunpack.c.l.b16 %v3046
    %v3112 = vunpack.c.l.b16 %v3047
    %v3113 = vunpack.c.l.b16 %v3048
    %v3114 = vunpack.c.l.b16 %v3049
    %v3115 = vunpack.c.l.b16 %v3050
    %v3116 = vunpack.c.l.b16 %v3051
    %v3117 = vunpack.c.l.b16 %v3052
    %v3118 = vunpack.c.l.b16 %v3053
    %v3119 = vunpack.c.l.b16 %v3054
    %v3120 = vunpack.c.l.b16 %v3055
    %v3121 = vunpack.c.l.b16 %v3056
    %v3122 = vpack.c.b16 %v3091, %v3090
    %v3123 = vpack.c.b16 %v3093, %v3092
    %v3124 = vpack.c.b16 %v3095, %v3094
    %v3125 = vpack.c.b16 %v3097, %v3096
    %v3126 = vpack.c.b16 %v3099, %v3098
    %v3127 = vpack.c.b16 %v3101, %v3100
    %v3128 = vpack.c.b16 %v3103, %v3102
    %v3129 = vpack.c.b16 %v3105, %v3104
    %v3130 = vpack.c.b16 %v3107, %v3106
    %v3131 = vpack.c.b16 %v3109, %v3108
    %v3132 = vpack.c.b16 %v3111, %v3110
    %v3133 = vpack.c.b16 %v3113, %v3112
    %v3134 = vpack.c.b16 %v3115, %v3114
    %v3135 = vpack.c.b16 %v3117, %v3116
    %v3136 = vpack.c.b16 %v3119, %v3118
    %v3137 = vpack.c.b16 %v3121, %v3120
    %3154 = vmatpush.bf16.msra.mxu0 %v3129
    %3155 = vmatpush.bf16.msra.mxu0 %v3128
    %3156 = vmatpush.bf16.msra.mxu0 %v3127
    %3157 = vmatpush.bf16.msra.mxu0 %v3126
    %3158 = vmatpush.bf16.msra.mxu0 %v3125
    %3159 = vmatpush.bf16.msra.mxu0 %v3124
    %3160 = vmatpush.bf16.msra.mxu0 %v3123
    %3161 = vmatpush.bf16.msra.mxu0 %v3122
    %3162 = vmatmul.bf16.gmra.mxu0 %v3022
    %v3163 = vpop.f32.mrf.mxu0
    %v3164 = vadd.f32 %v3057, %v3163
    %v3165 = vpop.f32.mrf.mxu0
    %v3166 = vadd.f32 %v3057, %v3165
    %3167 = vdwg.mxu0
    %3168 = vmatpush.bf16.msra.mxu0 %v3137
    %3169 = vmatpush.bf16.msra.mxu0 %v3136
    %3170 = vmatpush.bf16.msra.mxu0 %v3135
    %3171 = vmatpush.bf16.msra.mxu0 %v3134
    %3172 = vmatpush.bf16.msra.mxu0 %v3133
    %3173 = vmatpush.bf16.msra.mxu0 %v3132
    %3174 = vmatpush.bf16.msra.mxu0 %v3131
    %3175 = vmatpush.bf16.msra.mxu0 %v3130
    %3176 = vmatmul.bf16.gmra.mxu0 %v3023
    %v3177 = vpop.f32.mrf.mxu0
    %v3178 = vadd.f32 %v3164, %v3177
    %v3179 = vpop.f32.mrf.mxu0
    %v3180 = vadd.f32 %v3166, %v3179
    %3181 = vdwg.mxu0
    %v3182 = vadd.f32 %v2878, %v3178
    %v3183 = vadd.f32 %v2879, %v3180
    %v3184 = vpack.c.bf16 %v3183, %v3182
    %v3185 = vld [vmem:[%s8] sm:$0xf]
    %v3186 = vld [vmem:[%s8 + $0x4] sm:$0xf]
    %v3187 = vld [vmem:[%s8 + $0x8] sm:$0xf]
    %v3188 = vld [vmem:[%s8 + $0xc] sm:$0xf]
    %v3189 = vld [vmem:[%s8 + $0x10] sm:$0xf]
    %v3190 = vld [vmem:[%s8 + $0x14] sm:$0xf]
    %v3191 = vld [vmem:[%s8 + $0x18] sm:$0xf]
    %v3192 = vld [vmem:[%s8 + $0x1c] sm:$0xf]
    %v3193 = vld [vmem:[%s9] sm:$0x1]
    %v3195 = vperm.slane %v3193, 0
    %v3205 = vunpack.c.l.b16 %v3185
    %v3206 = vunpack.c.l.b16 %v3186
    %v3207 = vunpack.c.l.b16 %v3187
    %v3208 = vunpack.c.l.b16 %v3188
    %v3209 = vunpack.c.l.b16 %v3189
    %v3210 = vunpack.c.l.b16 %v3190
    %v3211 = vunpack.c.l.b16 %v3191
    %v3212 = vunpack.c.l.b16 %v3192
    %v3213 = vpack.c.b16 %v3206, %v3205
    %v3214 = vpack.c.b16 %v3208, %v3207
    %v3215 = vpack.c.b16 %v3210, %v3209
    %v3216 = vpack.c.b16 %v3212, %v3211
    %v3222 = vsel %vm48, %v3184, 0
    %3224 = vmatpush.bf16.msra.mxu0 0
    %3225 = vmatpush.bf16.msra.mxu0 0
    %3226 = vmatpush.bf16.msra.mxu0 0
    %3227 = vmatpush.bf16.msra.mxu0 0
    %3228 = vmatpush.bf16.msra.mxu0 %v3216
    %3229 = vmatpush.bf16.msra.mxu0 %v3215
    %3230 = vmatpush.bf16.msra.mxu0 %v3214
    %3231 = vmatpush.bf16.msra.mxu0 %v3213
    %3232 = vmatmul.bf16.gmra.mxu0 %v3222
    %v3233 = vpop.f32.mrf.mxu0
    %v3234 = vadd.f32 %v3195, %v3233
    %v3235 = vpop.f32.mrf.mxu0
    %v3236 = vadd.f32 %v3195, %v3235
    %3237 = vdwg.mxu0
    %3238 = vst [vmem:[#allocation2] sm:$0xff] %v3234
    %3239 = vst [vmem:[#allocation2 + $0x8] sm:$0xff] %v3236
    // Predicated region
    $region42: #{forward.1} parent=1 // pred_check
      _
    $region43: #{forward.1} parent=1 // pred_check_branch
      %3241 = sbr.rel (0) target = $region45
    $region44: #{forward.1} parent=1 // pred_region
      %3243 = vsyncadd [#allocation3], 0
      %s3244 = sshll.u32 [#allocation2], 4
      %s3245 = int_to_ptr.vmem [resolvable:$true] %s3244
      %s3246 = sshll.u32 %s10, 4
      %s3247 = int_to_ptr.hbm [resolvable:$true] %s3246
      %3252 = dma.vmem_to_hbm [thread:$0]  %s3245, 256, %s3247, [#allocation3], 128, 128, 8
    $region45: #{forward.1} parent=1 // pred_fallthru
      _
    // Predicated region
    $region46: #{forward.1} parent=1 // pred_check
      _
    $region47: #{forward.1} parent=1 // pred_check_branch
      %3254 = sbr.rel (0) target = $region49
    $region48: #{forward.1} parent=1 // pred_region
      %3256 = dma.done [#allocation3], 256
    $region49: #{forward.1} parent=1 // pred_fallthru
      _
    %3257 = vsyncpa [#allocation3], 1

</llo_original>
